<compile_context>
chip_gen: v7x
topology: tpu7x:2x2x1
jax: 0.10.0
libtpu: 0.0.40
codegen_flags: <defaults>
</compile_context>

<pallas_src>
from functools import partial

import jax
import jax.numpy as jnp
from jax.experimental import pallas as pl
from jax.experimental.pallas import tpu as pltpu

BN_EPS = 1e-5


# ---------------------------------------------------------------------------
# Fused conv (+ optional BN/ReLU prologue) kernel, also emits BN partial stats
# ---------------------------------------------------------------------------
def _make_conv_kernel(H, W, Cin, Cout, ksize, stride, with_prologue):
    assert ksize in (1, 3) and stride in (1, 2)
    if with_prologue:
        assert ksize == 3 and stride == 1
    Ho, Wo = H // stride, W // stride
    NPIX = Ho * Wo
    K = ksize * ksize * Cin

    def kernel(*refs):
        if with_prologue:
            x_ref, w_ref, sc_ref, sh_ref, out_ref, st_ref = refs[:6]
        else:
            x_ref, w_ref, out_ref, st_ref = refs[:4]

        if ksize == 1:
            if stride == 1:
                pee = x_ref[0]                                # (H, W, Cin)
            else:
                # phase-split view: even input rows / even input cols only
                pee = x_ref[0][:, 0, :, :Cin]                 # (Ho, Wo, Cin)
            patches = pee.reshape(NPIX, Cin)
        else:
            p3_ref = refs[-1]                                 # (Ho, Wo, 9*Cin) VMEM scratch
            if stride == 1:
                x = x_ref[0]                                  # (H, W, Cin)
                if with_prologue:
                    # fused BN(+ReLU) of the previous conv output (training-mode batch stats)
                    scale = sc_ref[...].reshape(1, 1, Cin)
                    shift = sh_ref[...].reshape(1, 1, Cin)
                    x = jnp.maximum(x * scale + shift, 0.0)
                planes = {("e", "e"): x}
            else:
                xr = x_ref[0]                                 # (Ho, 2, Wo, 2*Cin)
                er = xr[:, 0]                                 # even input rows
                od = xr[:, 1]                                 # odd input rows
                planes = {("e", "e"): er[..., :Cin], ("e", "o"): er[..., Cin:],
                          ("o", "e"): od[..., :Cin], ("o", "o"): od[..., Cin:]}

            # scatter the 9 shifted taps into a zero-initialised im2col scratch:
            #   p3[ho, wo, t*Cin:(t+1)*Cin] = plane_t[ho + dr, wo + dc]   (0 outside = halo)
            p3_ref[...] = jnp.zeros((Ho, Wo, K), jnp.float32)
            for i in range(3):
                for j in range(3):
                    t = i * 3 + j
                    if stride == 1:
                        plane, dr, dc = planes[("e", "e")], i - 1, j - 1
                    else:
                        plane = planes[("e" if i == 1 else "o", "e" if j == 1 else "o")]
                        dr, dc = (-1 if i == 0 else 0), (-1 if j == 0 else 0)
                    r0, r1 = max(0, -dr), Ho - max(0, dr)
                    c0, c1 = max(0, -dc), Wo - max(0, dc)
                    p3_ref[r0:r1, c0:c1, t * Cin:(t + 1) * Cin] = (
                        plane[r0 + dr:r1 + dr, c0 + dc:c1 + dc, :])
            patches = p3_ref[...].reshape(NPIX, K)

        # one fat MXU dot: bf16 operands, f32 accumulation
        y = jnp.dot(patches.astype(jnp.bfloat16), w_ref[...],
                    preferred_element_type=jnp.float32)       # (NPIX, Cout)

        # epilogue: per-image per-channel sum / sum^2 for the *following* BatchNorm
        ssum = jnp.sum(y, axis=0, keepdims=True)              # (1, Cout)
        ssq = jnp.sum(y * y, axis=0, keepdims=True)           # (1, Cout)
        st_ref[...] = jnp.concatenate([ssum, ssq], axis=0).reshape(1, 2, Cout)

        out_ref[...] = y.reshape(1, Ho, Wo, Cout)

    return kernel


def conv_bn_stats(x, w, stride, prologue=None):
    """Conv2d (3x3 pad 1, or 1x1 pad 0), bias=False, stride in {1,2}.

    x: (N, H, W, Cin) f32, w: (KH, KW, Cin, Cout) f32.
    Optional `prologue=(scale, shift)` applies relu(x*scale + shift) per channel before the
    conv (used to fuse the previous BN+ReLU).  Returns (y, stats) where stats[n] holds the
    per-image per-channel (sum, sum^2) of y needed by the next BatchNorm.
    """
    N, H, W, Cin = x.shape
    KH, KW, _, Cout = w.shape
    assert KH == KW and KH in (1, 3)
    if stride == 2:
        assert H % 2 == 0 and W % 2 == 0
    Ho, Wo = H // stride, W // stride

    wmat = w.reshape(KH * KW * Cin, Cout).astype(jnp.bfloat16)
    kernel = _make_conv_kernel(H, W, Cin, Cout, KH, stride, prologue is not None)

    if stride == 1:
        xv = x
        x_spec = pl.BlockSpec((1, H, W, Cin), lambda n: (n, 0, 0, 0))
    else:
        # free space-to-depth view: x[n, 2a+p, 2b+q, c] == xv[n, a, p, b, q*Cin + c]
        xv = x.reshape(N, Ho, 2, Wo, 2 * Cin)
        x_spec = pl.BlockSpec((1, Ho, 2, Wo, 2 * Cin), lambda n: (n, 0, 0, 0, 0))

    in_specs = [x_spec, pl.BlockSpec((KH * KW * Cin, Cout), lambda n: (0, 0))]
    args = [xv, wmat]
    if prologue is not None:
        scale, shift = prologue                                # each (1, Cin) f32
        in_specs += [pl.BlockSpec((1, Cin), lambda n: (0, 0)),
                     pl.BlockSpec((1, Cin), lambda n: (0, 0))]
        args += [scale, shift]

    scratch_shapes = ([pltpu.VMEM((Ho, Wo, KH * KW * Cin), jnp.float32)]
                      if KH == 3 else [])

    y, stats = pl.pallas_call(
        kernel,
        grid=(N,),
        in_specs=in_specs,
        out_specs=[pl.BlockSpec((1, Ho, Wo, Cout), lambda n: (n, 0, 0, 0)),
                   pl.BlockSpec((1, 2, Cout), lambda n: (n, 0, 0))],
        out_shape=[jax.ShapeDtypeStruct((N, Ho, Wo, Cout), jnp.float32),
                   jax.ShapeDtypeStruct((N, 2, Cout), jnp.float32)],
        scratch_shapes=scratch_shapes,
        compiler_params=pltpu.CompilerParams(dimension_semantics=("parallel",)),
    )(*args)
    return y, stats


def bn_affine_from_stats(stats, count):
    """Tiny XLA reduction: (N, 2, C) partial sums -> per-channel (scale, shift) of a
    training-mode BatchNorm with gamma=1, beta=0 (y_norm = y*scale + shift)."""
    s = jnp.sum(stats, axis=0)                                 # (2, C)
    mean = s[0] / count
    var = jnp.maximum(s[1] / count - mean * mean, 0.0)         # biased batch variance
    inv = jax.lax.rsqrt(var + BN_EPS)
    return inv.reshape(1, -1), (-mean * inv).reshape(1, -1)


# ---------------------------------------------------------------------------
# Fused epilogue: bn2 (+ shortcut BN) + residual add + ReLU
# ---------------------------------------------------------------------------
def _make_fuse_kernel(projection):
    def kernel(*refs):
        if projection:
            y_ref, s_ref, a2_ref, b2_ref, as_ref, bs_ref, o_ref = refs
            shortcut = s_ref[0] * as_ref[...] + bs_ref[...]    # BN of the 1x1-conv shortcut
        else:
            y_ref, s_ref, a2_ref, b2_ref, o_ref = refs
            shortcut = s_ref[0]                                # identity shortcut
        main = y_ref[0] * a2_ref[...] + b2_ref[...]            # bn2
        o_ref[0] = jnp.maximum(main + shortcut, 0.0)           # add + relu
    return kernel


def fuse_bn_add_relu(y2, scale2, shift2, shortcut, scale_s=None, shift_s=None):
    N, Ho, Wo, C = y2.shape
    proj = scale_s is not None
    yv = y2.reshape(N, Ho, Wo * C)                             # lane-dense views (free reshapes)
    sv = shortcut.reshape(N, Ho, Wo * C)
    tile = lambda a: jnp.tile(a, (1, Wo))                      # (1,C) -> (1, Wo*C)

    args = [yv, sv, tile(scale2), tile(shift2)]
    specs = [pl.BlockSpec((1, Ho, Wo * C), lambda n: (n, 0, 0)),
             pl.BlockSpec((1, Ho, Wo * C), lambda n: (n, 0, 0)),
             pl.BlockSpec((1, Wo * C), lambda n: (0, 0)),
             pl.BlockSpec((1, Wo * C), lambda n: (0, 0))]
    if proj:
        args += [tile(scale_s), tile(shift_s)]
        specs += [pl.BlockSpec((1, Wo * C), lambda n: (0, 0)),
                  pl.BlockSpec((1, Wo * C), lambda n: (0, 0))]

    out = pl.pallas_call(
        _make_fuse_kernel(proj),
        grid=(N,),
        in_specs=specs,
        out_specs=pl.BlockSpec((1, Ho, Wo * C), lambda n: (n, 0, 0)),
        out_shape=jax.ShapeDtypeStruct((N, Ho, Wo * C), jnp.float32),
        compiler_params=pltpu.CompilerParams(dimension_semantics=("parallel",)),
    )(*args)
    return out.reshape(N, Ho, Wo, C)


# ---------------------------------------------------------------------------
# BasicBlock forward (mirrors the PyTorch module) + parameter init
# ---------------------------------------------------------------------------
def init_basic_block(key, in_planes, planes, stride):
    k1, k2, k3 = jax.random.split(key, 3)

    def cinit(k, kh, kw, ci, co):
        bound = 1.0 / float(kh * kw * ci) ** 0.5
        return jax.random.uniform(k, (kh, kw, ci, co), jnp.float32, -bound, bound)

    params = {"w1": cinit(k1, 3, 3, in_planes, planes),
              "w2": cinit(k2, 3, 3, planes, planes)}
    if stride != 1 or in_planes != planes:
        params["ws"] = cinit(k3, 1, 1, in_planes, planes)      # 1x1 projection shortcut
    return params


@partial(jax.jit, static_argnums=(2,))
def basic_block_forward(params, x_nchw, stride):
    # layout: PyTorch NCHW at the boundary, NHWC inside.
    x = jnp.transpose(x_nchw, (0, 2, 3, 1)).astype(jnp.float32)
    N, H, W, _ = x.shape
    Ho, Wo = H // stride, W // stride
    cnt = N * Ho * Wo

    y1, st1 = conv_bn_stats(x, params["w1"], stride)                     # conv1 (+ bn1 stats)
    sc1, sh1 = bn_affine_from_stats(st1, cnt)                            # bn1 affine
    y2, st2 = conv_bn_stats(y1, params["w2"], 1, prologue=(sc1, sh1))    # relu(bn1) fused into conv2
    sc2, sh2 = bn_affine_from_stats(st2, cnt)                            # bn2 affine

    if "ws" in params:
        ys, sts = conv_bn_stats(x, params["ws"], stride)                 # 1x1 shortcut conv
        scs, shs = bn_affine_from_stats(sts, cnt)
        out = fuse_bn_add_relu(y2, sc2, sh2, ys, scs, shs)               # bn2 + bn_sc + add + relu
    else:
        out = fuse_bn_add_relu(y2, sc2, sh2, x)                          # bn2 + x + relu
    return jnp.transpose(out, (0, 3, 1, 2))                              # back to NCHW


# ---------------------------------------------------------------------------
# Pure-JAX reference (same math, f32) for a correctness sanity check
# ---------------------------------------------------------------------------
def _ref_bn(y):
    mean = jnp.mean(y, axis=(0, 1, 2), keepdims=True)
    var = jnp.mean(jnp.square(y - mean), axis=(0, 1, 2), keepdims=True)
    return (y - mean) * jax.lax.rsqrt(var + BN_EPS)


def _ref_conv(x, w, stride, pad):
    return jax.lax.conv_general_dilated(
        x, w, (stride, stride), ((pad, pad), (pad, pad)),
        dimension_numbers=("NHWC", "HWIO", "NHWC"),
        precision=jax.lax.Precision.HIGHEST)


def basic_block_ref(params, x_nchw, stride):
    x = jnp.transpose(x_nchw, (0, 2, 3, 1)).astype(jnp.float32)
    h = jax.nn.relu(_ref_bn(_ref_conv(x, params["w1"], stride, 1)))
    h = _ref_bn(_ref_conv(h, params["w2"], 1, 1))
    sc = _ref_bn(_ref_conv(x, params["ws"], stride, 0)) if "ws" in params else x
    return jnp.transpose(jax.nn.relu(h + sc), (0, 3, 1, 2))


if __name__ == "__main__":
    key = jax.random.PRNGKey(0)
    k1, k2, kx = jax.random.split(key, 3)

    N, Cin, Hsz, Wsz = 2, 16, 16, 16
    x = jax.random.normal(kx, (N, Cin, Hsz, Wsz), jnp.float32)           # NCHW, like PyTorch

    # Case 1: identity shortcut (stride=1, in_planes == planes)
    p1 = init_basic_block(k1, Cin, Cin, 1)
    o1 = basic_block_forward(p1, x, 1)
    jax.block_until_ready(o1)
    assert o1.shape == (N, Cin, Hsz, Wsz) and o1.dtype == jnp.float32
    err1 = float(jnp.max(jnp.abs(o1 - basic_block_ref(p1, x, 1))))

    # Case 2: projection shortcut (stride=2, planes = 2 * in_planes)
    p2 = init_basic_block(k2, Cin, 2 * Cin, 2)
    o2 = basic_block_forward(p2, x, 2)
    jax.block_until_ready(o2)
    assert o2.shape == (N, 2 * Cin, Hsz // 2, Wsz // 2) and o2.dtype == jnp.float32
    err2 = float(jnp.max(jnp.abs(o2 - basic_block_ref(p2, x, 2))))

    # bf16 MXU operands vs f32 reference -> loose tolerance
    assert err1 < 0.3 and err2 < 0.3, (err1, err2)
    print("KERNEL_OK")
</pallas_src>

<mosaic_0001>
module attributes {stable_mosaic.version = 11 : i64} {
  func.func @kernel(%arg0: i32, %arg1: memref<1x16x16x16xf32, #tpu.memory_space<vmem>>, %arg2: memref<144x16xbf16, #tpu.memory_space<vmem>>, %arg3: memref<1x16x16x16xf32, #tpu.memory_space<vmem>>, %arg4: memref<1x2x16xf32, #tpu.memory_space<vmem>>, %arg5: memref<16x16x144xf32, #tpu.memory_space<vmem>>) attributes {dimension_semantics = [#tpu.dimension_semantics<parallel>], iteration_bounds = array<i64: 2>, scalar_prefetch = 0 : i64, scratch_operands = 1 : i64, tpu.core_type = #tpu.core_type<tc>, window_params = [{transform_indices = @transform_0, window_bounds = array<i64: 1, 16, 16, 16>}, {pipeline_mode = #tpu.pipeline_mode<synchronous>, transform_indices = @transform_1, window_bounds = array<i64: 144, 16>}, {transform_indices = @transform_2, window_bounds = array<i64: 1, 16, 16, 16>}, {transform_indices = @transform_3, window_bounds = array<i64: 1, 2, 16>}]} {
    %c0 = arith.constant 0 : index
    %c0_0 = arith.constant 0 : index
    %c0_1 = arith.constant 0 : index
    %c0_2 = arith.constant 0 : index
    %0 = vector.load %arg1[%c0, %c0_0, %c0_1, %c0_2] : memref<1x16x16x16xf32, #tpu.memory_space<vmem>>, vector<1x16x16x16xf32>
    %1 = vector.shape_cast %0 : vector<1x16x16x16xf32> to vector<16x16x16xf32>
    %cst = arith.constant 0.000000e+00 : f32
    %2 = vector.broadcast %cst : f32 to vector<16x16x144xf32>
    %c0_3 = arith.constant 0 : index
    %c0_4 = arith.constant 0 : index
    %c0_5 = arith.constant 0 : index
    %3 = vector.load %arg5[%c0_3, %c0_4, %c0_5] : memref<16x16x144xf32, #tpu.memory_space<vmem>>, vector<16x16x144xf32>
    tpu.vector_store %arg5[%c0_3, %c0_4, %c0_5], %2 {strides = array<i32>} : memref<16x16x144xf32, #tpu.memory_space<vmem>>, vector<16x16x144xf32>,
    %4 = vector.extract_strided_slice %1 {offsets = [0, 0, 0], sizes = [15, 15, 16], strides = [1, 1, 1]} : vector<16x16x16xf32> to vector<15x15x16xf32>
    %c1 = arith.constant 1 : index
    %c1_6 = arith.constant 1 : index
    %c0_7 = arith.constant 0 : index
    %5 = vector.load %arg5[%c1, %c1_6, %c0_7] : memref<16x16x144xf32, #tpu.memory_space<vmem>>, vector<15x15x16xf32>
    tpu.vector_store %arg5[%c1, %c1_6, %c0_7], %4 {strides = array<i32>} : memref<16x16x144xf32, #tpu.memory_space<vmem>>, vector<15x15x16xf32>,
    %6 = vector.extract_strided_slice %1 {offsets = [0, 0, 0], sizes = [15, 16, 16], strides = [1, 1, 1]} : vector<16x16x16xf32> to vector<15x16x16xf32>
    %c1_8 = arith.constant 1 : index
    %c0_9 = arith.constant 0 : index
    %c16 = arith.constant 16 : index
    %7 = vector.load %arg5[%c1_8, %c0_9, %c16] : memref<16x16x144xf32, #tpu.memory_space<vmem>>, vector<15x16x16xf32>
    tpu.vector_store %arg5[%c1_8, %c0_9, %c16], %6 {strides = array<i32>} : memref<16x16x144xf32, #tpu.memory_space<vmem>>, vector<15x16x16xf32>,
    %8 = vector.extract_strided_slice %1 {offsets = [0, 1, 0], sizes = [15, 15, 16], strides = [1, 1, 1]} : vector<16x16x16xf32> to vector<15x15x16xf32>
    %c1_10 = arith.constant 1 : index
    %c0_11 = arith.constant 0 : index
    %c32 = arith.constant 32 : index
    %9 = vector.load %arg5[%c1_10, %c0_11, %c32] : memref<16x16x144xf32, #tpu.memory_space<vmem>>, vector<15x15x16xf32>
    tpu.vector_store %arg5[%c1_10, %c0_11, %c32], %8 {strides = array<i32>} : memref<16x16x144xf32, #tpu.memory_space<vmem>>, vector<15x15x16xf32>,
    %10 = vector.extract_strided_slice %1 {offsets = [0, 0, 0], sizes = [16, 15, 16], strides = [1, 1, 1]} : vector<16x16x16xf32> to vector<16x15x16xf32>
    %c0_12 = arith.constant 0 : index
    %c1_13 = arith.constant 1 : index
    %c48 = arith.constant 48 : index
    %11 = vector.load %arg5[%c0_12, %c1_13, %c48] : memref<16x16x144xf32, #tpu.memory_space<vmem>>, vector<16x15x16xf32>
    tpu.vector_store %arg5[%c0_12, %c1_13, %c48], %10 {strides = array<i32>} : memref<16x16x144xf32, #tpu.memory_space<vmem>>, vector<16x15x16xf32>,
    %c0_14 = arith.constant 0 : index
    %c0_15 = arith.constant 0 : index
    %c64 = arith.constant 64 : index
    %12 = vector.load %arg5[%c0_14, %c0_15, %c64] : memref<16x16x144xf32, #tpu.memory_space<vmem>>, vector<16x16x16xf32>
    tpu.vector_store %arg5[%c0_14, %c0_15, %c64], %1 {strides = array<i32>} : memref<16x16x144xf32, #tpu.memory_space<vmem>>, vector<16x16x16xf32>,
    %13 = vector.extract_strided_slice %1 {offsets = [0, 1, 0], sizes = [16, 15, 16], strides = [1, 1, 1]} : vector<16x16x16xf32> to vector<16x15x16xf32>
    %c0_16 = arith.constant 0 : index
    %c0_17 = arith.constant 0 : index
    %c80 = arith.constant 80 : index
    %14 = vector.load %arg5[%c0_16, %c0_17, %c80] : memref<16x16x144xf32, #tpu.memory_space<vmem>>, vector<16x15x16xf32>
    tpu.vector_store %arg5[%c0_16, %c0_17, %c80], %13 {strides = array<i32>} : memref<16x16x144xf32, #tpu.memory_space<vmem>>, vector<16x15x16xf32>,
    %15 = vector.extract_strided_slice %1 {offsets = [1, 0, 0], sizes = [15, 15, 16], strides = [1, 1, 1]} : vector<16x16x16xf32> to vector<15x15x16xf32>
    %c0_18 = arith.constant 0 : index
    %c1_19 = arith.constant 1 : index
    %c96 = arith.constant 96 : index
    %16 = vector.load %arg5[%c0_18, %c1_19, %c96] : memref<16x16x144xf32, #tpu.memory_space<vmem>>, vector<15x15x16xf32>
    tpu.vector_store %arg5[%c0_18, %c1_19, %c96], %15 {strides = array<i32>} : memref<16x16x144xf32, #tpu.memory_space<vmem>>, vector<15x15x16xf32>,
    %17 = vector.extract_strided_slice %1 {offsets = [1, 0, 0], sizes = [15, 16, 16], strides = [1, 1, 1]} : vector<16x16x16xf32> to vector<15x16x16xf32>
    %c0_20 = arith.constant 0 : index
    %c0_21 = arith.constant 0 : index
    %c112 = arith.constant 112 : index
    %18 = vector.load %arg5[%c0_20, %c0_21, %c112] : memref<16x16x144xf32, #tpu.memory_space<vmem>>, vector<15x16x16xf32>
    tpu.vector_store %arg5[%c0_20, %c0_21, %c112], %17 {strides = array<i32>} : memref<16x16x144xf32, #tpu.memory_space<vmem>>, vector<15x16x16xf32>,
    %19 = vector.extract_strided_slice %1 {offsets = [1, 1, 0], sizes = [15, 15, 16], strides = [1, 1, 1]} : vector<16x16x16xf32> to vector<15x15x16xf32>
    %c0_22 = arith.constant 0 : index
    %c0_23 = arith.constant 0 : index
    %c128 = arith.constant 128 : index
    %20 = vector.load %arg5[%c0_22, %c0_23, %c128] : memref<16x16x144xf32, #tpu.memory_space<vmem>>, vector<15x15x16xf32>
    tpu.vector_store %arg5[%c0_22, %c0_23, %c128], %19 {strides = array<i32>} : memref<16x16x144xf32, #tpu.memory_space<vmem>>, vector<15x15x16xf32>,
    %c0_24 = arith.constant 0 : index
    %c0_25 = arith.constant 0 : index
    %c0_26 = arith.constant 0 : index
    %21 = vector.load %arg5[%c0_24, %c0_25, %c0_26] : memref<16x16x144xf32, #tpu.memory_space<vmem>>, vector<16x16x144xf32>
    %22 = vector.shape_cast %21 : vector<16x16x144xf32> to vector<256x144xf32>
    %23 = arith.truncf %22 : vector<256x144xf32> to vector<256x144xbf16>
    %c0_27 = arith.constant 0 : index
    %c0_28 = arith.constant 0 : index
    %24 = vector.load %arg2[%c0_27, %c0_28] : memref<144x16xbf16, #tpu.memory_space<vmem>>, vector<144x16xbf16>
    %cst_29 = arith.constant dense<0.000000e+00> : vector<256x16xf32>
    %25 = tpu.matmul %23, %24, %cst_29 {dimension_numbers = #tpu.dot_dimension_numbers<[1], [0], [0], [1], [0, 0, 1, 1], [], []>} : vector<256x144xbf16>, vector<144x16xbf16>, vector<256x16xf32> -> vector<256x16xf32>
    %cst_30 = arith.constant dense<0.000000e+00> : vector<16xf32>
    %26 = vector.multi_reduction <add>, %25, %cst_30 [0] : vector<256x16xf32> to vector<16xf32>
    %27 = vector.shape_cast %26 : vector<16xf32> to vector<1x16xf32>
    %28 = arith.mulf %25, %25 : vector<256x16xf32>
    %cst_31 = arith.constant dense<0.000000e+00> : vector<16xf32>
    %29 = vector.multi_reduction <add>, %28, %cst_31 [0] : vector<256x16xf32> to vector<16xf32>
    %30 = vector.shape_cast %29 : vector<16xf32> to vector<1x16xf32>
    %31 = tpu.concatenate %27, %30 in 0 : vector<1x16xf32>, vector<1x16xf32> -> vector<2x16xf32>
    %32 = vector.shape_cast %31 : vector<2x16xf32> to vector<1x2x16xf32>
    %c0_32 = arith.constant 0 : index
    %c0_33 = arith.constant 0 : index
    %c0_34 = arith.constant 0 : index
    %33 = vector.load %arg4[%c0_32, %c0_33, %c0_34] : memref<1x2x16xf32, #tpu.memory_space<vmem>>, vector<1x2x16xf32>
    tpu.vector_store %arg4[%c0_32, %c0_33, %c0_34], %32 {strides = array<i32>} : memref<1x2x16xf32, #tpu.memory_space<vmem>>, vector<1x2x16xf32>,
    %34 = vector.shape_cast %25 : vector<256x16xf32> to vector<1x16x16x16xf32>
    %c0_35 = arith.constant 0 : index
    %c0_36 = arith.constant 0 : index
    %c0_37 = arith.constant 0 : index
    %c0_38 = arith.constant 0 : index
    %35 = vector.load %arg3[%c0_35, %c0_36, %c0_37, %c0_38] : memref<1x16x16x16xf32, #tpu.memory_space<vmem>>, vector<1x16x16x16xf32>
    tpu.vector_store %arg3[%c0_35, %c0_36, %c0_37, %c0_38], %34 {strides = array<i32>} : memref<1x16x16x16xf32, #tpu.memory_space<vmem>>, vector<1x16x16x16xf32>,
    return
  }
  func.func @transform_0(%arg0: i32) -> (i32, i32, i32, i32) {
    %c0_i32 = arith.constant 0 : i32
    %c0_i32_0 = arith.constant 0 : i32
    %c0_i32_1 = arith.constant 0 : i32
    %c0_i32_2 = arith.constant 0 : i32
    return %arg0, %c0_i32, %c0_i32_0, %c0_i32_1 : i32, i32, i32, i32
  }
  func.func @transform_1(%arg0: i32) -> (i32, i32) {
    %c0_i32 = arith.constant 0 : i32
    %c0_i32_0 = arith.constant 0 : i32
    %c0_i32_1 = arith.constant 0 : i32
    return %c0_i32, %c0_i32_0 : i32, i32
  }
  func.func @transform_2(%arg0: i32) -> (i32, i32, i32, i32) {
    %c0_i32 = arith.constant 0 : i32
    %c0_i32_0 = arith.constant 0 : i32
    %c0_i32_1 = arith.constant 0 : i32
    %c0_i32_2 = arith.constant 0 : i32
    return %arg0, %c0_i32, %c0_i32_0, %c0_i32_1 : i32, i32, i32, i32
  }
  func.func @transform_3(%arg0: i32) -> (i32, i32, i32) {
    %c0_i32 = arith.constant 0 : i32
    %c0_i32_0 = arith.constant 0 : i32
    %c0_i32_1 = arith.constant 0 : i32
    return %arg0, %c0_i32, %c0_i32_0 : i32, i32, i32
  }
}

module attributes {stable_mosaic.version = 11 : i64} {
  func.func @kernel(%arg0: i32, %arg1: memref<1x16x16x16xf32, #tpu.memory_space<vmem>>, %arg2: memref<144x16xbf16, #tpu.memory_space<vmem>>, %arg3: memref<1x16xf32, #tpu.memory_space<vmem>>, %arg4: memref<1x16xf32, #tpu.memory_space<vmem>>, %arg5: memref<1x16x16x16xf32, #tpu.memory_space<vmem>>, %arg6: memref<1x2x16xf32, #tpu.memory_space<vmem>>, %arg7: memref<16x16x144xf32, #tpu.memory_space<vmem>>) attributes {dimension_semantics = [#tpu.dimension_semantics<parallel>], iteration_bounds = array<i64: 2>, scalar_prefetch = 0 : i64, scratch_operands = 1 : i64, tpu.core_type = #tpu.core_type<tc>, window_params = [{transform_indices = @transform_0, window_bounds = array<i64: 1, 16, 16, 16>}, {pipeline_mode = #tpu.pipeline_mode<synchronous>, transform_indices = @transform_1, window_bounds = array<i64: 144, 16>}, {pipeline_mode = #tpu.pipeline_mode<synchronous>, transform_indices = @transform_2, window_bounds = array<i64: 1, 16>}, {pipeline_mode = #tpu.pipeline_mode<synchronous>, transform_indices = @transform_3, window_bounds = array<i64: 1, 16>}, {transform_indices = @transform_4, window_bounds = array<i64: 1, 16, 16, 16>}, {transform_indices = @transform_5, window_bounds = array<i64: 1, 2, 16>}]} {
    %c0 = arith.constant 0 : index
    %c0_0 = arith.constant 0 : index
    %c0_1 = arith.constant 0 : index
    %c0_2 = arith.constant 0 : index
    %0 = vector.load %arg1[%c0, %c0_0, %c0_1, %c0_2] : memref<1x16x16x16xf32, #tpu.memory_space<vmem>>, vector<1x16x16x16xf32>
    %1 = vector.shape_cast %0 : vector<1x16x16x16xf32> to vector<16x16x16xf32>
    %c0_3 = arith.constant 0 : index
    %c0_4 = arith.constant 0 : index
    %2 = vector.load %arg3[%c0_3, %c0_4] : memref<1x16xf32, #tpu.memory_space<vmem>>, vector<1x16xf32>
    %3 = vector.shape_cast %2 : vector<1x16xf32> to vector<1x1x16xf32>
    %c0_5 = arith.constant 0 : index
    %c0_6 = arith.constant 0 : index
    %4 = vector.load %arg4[%c0_5, %c0_6] : memref<1x16xf32, #tpu.memory_space<vmem>>, vector<1x16xf32>
    %5 = vector.shape_cast %4 : vector<1x16xf32> to vector<1x1x16xf32>
    %6 = vector.broadcast %3 : vector<1x1x16xf32> to vector<16x16x16xf32>
    %7 = arith.mulf %1, %6 : vector<16x16x16xf32>
    %8 = vector.broadcast %5 : vector<1x1x16xf32> to vector<16x16x16xf32>
    %9 = arith.addf %7, %8 : vector<16x16x16xf32>
    %cst = arith.constant 0.000000e+00 : f32
    %10 = vector.broadcast %cst : f32 to vector<16x16x16xf32>
    %11 = arith.maximumf %9, %10 : vector<16x16x16xf32>
    %cst_7 = arith.constant 0.000000e+00 : f32
    %12 = vector.broadcast %cst_7 : f32 to vector<16x16x144xf32>
    %c0_8 = arith.constant 0 : index
    %c0_9 = arith.constant 0 : index
    %c0_10 = arith.constant 0 : index
    %13 = vector.load %arg7[%c0_8, %c0_9, %c0_10] : memref<16x16x144xf32, #tpu.memory_space<vmem>>, vector<16x16x144xf32>
    tpu.vector_store %arg7[%c0_8, %c0_9, %c0_10], %12 {strides = array<i32>} : memref<16x16x144xf32, #tpu.memory_space<vmem>>, vector<16x16x144xf32>,
    %14 = vector.extract_strided_slice %11 {offsets = [0, 0, 0], sizes = [15, 15, 16], strides = [1, 1, 1]} : vector<16x16x16xf32> to vector<15x15x16xf32>
    %c1 = arith.constant 1 : index
    %c1_11 = arith.constant 1 : index
    %c0_12 = arith.constant 0 : index
    %15 = vector.load %arg7[%c1, %c1_11, %c0_12] : memref<16x16x144xf32, #tpu.memory_space<vmem>>, vector<15x15x16xf32>
    tpu.vector_store %arg7[%c1, %c1_11, %c0_12], %14 {strides = array<i32>} : memref<16x16x144xf32, #tpu.memory_space<vmem>>, vector<15x15x16xf32>,
    %16 = vector.extract_strided_slice %11 {offsets = [0, 0, 0], sizes = [15, 16, 16], strides = [1, 1, 1]} : vector<16x16x16xf32> to vector<15x16x16xf32>
    %c1_13 = arith.constant 1 : index
    %c0_14 = arith.constant 0 : index
    %c16 = arith.constant 16 : index
    %17 = vector.load %arg7[%c1_13, %c0_14, %c16] : memref<16x16x144xf32, #tpu.memory_space<vmem>>, vector<15x16x16xf32>
    tpu.vector_store %arg7[%c1_13, %c0_14, %c16], %16 {strides = array<i32>} : memref<16x16x144xf32, #tpu.memory_space<vmem>>, vector<15x16x16xf32>,
    %18 = vector.extract_strided_slice %11 {offsets = [0, 1, 0], sizes = [15, 15, 16], strides = [1, 1, 1]} : vector<16x16x16xf32> to vector<15x15x16xf32>
    %c1_15 = arith.constant 1 : index
    %c0_16 = arith.constant 0 : index
    %c32 = arith.constant 32 : index
    %19 = vector.load %arg7[%c1_15, %c0_16, %c32] : memref<16x16x144xf32, #tpu.memory_space<vmem>>, vector<15x15x16xf32>
    tpu.vector_store %arg7[%c1_15, %c0_16, %c32], %18 {strides = array<i32>} : memref<16x16x144xf32, #tpu.memory_space<vmem>>, vector<15x15x16xf32>,
    %20 = vector.extract_strided_slice %11 {offsets = [0, 0, 0], sizes = [16, 15, 16], strides = [1, 1, 1]} : vector<16x16x16xf32> to vector<16x15x16xf32>
    %c0_17 = arith.constant 0 : index
    %c1_18 = arith.constant 1 : index
    %c48 = arith.constant 48 : index
    %21 = vector.load %arg7[%c0_17, %c1_18, %c48] : memref<16x16x144xf32, #tpu.memory_space<vmem>>, vector<16x15x16xf32>
    tpu.vector_store %arg7[%c0_17, %c1_18, %c48], %20 {strides = array<i32>} : memref<16x16x144xf32, #tpu.memory_space<vmem>>, vector<16x15x16xf32>,
    %c0_19 = arith.constant 0 : index
    %c0_20 = arith.constant 0 : index
    %c64 = arith.constant 64 : index
    %22 = vector.load %arg7[%c0_19, %c0_20, %c64] : memref<16x16x144xf32, #tpu.memory_space<vmem>>, vector<16x16x16xf32>
    tpu.vector_store %arg7[%c0_19, %c0_20, %c64], %11 {strides = array<i32>} : memref<16x16x144xf32, #tpu.memory_space<vmem>>, vector<16x16x16xf32>,
    %23 = vector.extract_strided_slice %11 {offsets = [0, 1, 0], sizes = [16, 15, 16], strides = [1, 1, 1]} : vector<16x16x16xf32> to vector<16x15x16xf32>
    %c0_21 = arith.constant 0 : index
    %c0_22 = arith.constant 0 : index
    %c80 = arith.constant 80 : index
    %24 = vector.load %arg7[%c0_21, %c0_22, %c80] : memref<16x16x144xf32, #tpu.memory_space<vmem>>, vector<16x15x16xf32>
    tpu.vector_store %arg7[%c0_21, %c0_22, %c80], %23 {strides = array<i32>} : memref<16x16x144xf32, #tpu.memory_space<vmem>>, vector<16x15x16xf32>,
    %25 = vector.extract_strided_slice %11 {offsets = [1, 0, 0], sizes = [15, 15, 16], strides = [1, 1, 1]} : vector<16x16x16xf32> to vector<15x15x16xf32>
    %c0_23 = arith.constant 0 : index
    %c1_24 = arith.constant 1 : index
    %c96 = arith.constant 96 : index
    %26 = vector.load %arg7[%c0_23, %c1_24, %c96] : memref<16x16x144xf32, #tpu.memory_space<vmem>>, vector<15x15x16xf32>
    tpu.vector_store %arg7[%c0_23, %c1_24, %c96], %25 {strides = array<i32>} : memref<16x16x144xf32, #tpu.memory_space<vmem>>, vector<15x15x16xf32>,
    %27 = vector.extract_strided_slice %11 {offsets = [1, 0, 0], sizes = [15, 16, 16], strides = [1, 1, 1]} : vector<16x16x16xf32> to vector<15x16x16xf32>
    %c0_25 = arith.constant 0 : index
    %c0_26 = arith.constant 0 : index
    %c112 = arith.constant 112 : index
    %28 = vector.load %arg7[%c0_25, %c0_26, %c112] : memref<16x16x144xf32, #tpu.memory_space<vmem>>, vector<15x16x16xf32>
    tpu.vector_store %arg7[%c0_25, %c0_26, %c112], %27 {strides = array<i32>} : memref<16x16x144xf32, #tpu.memory_space<vmem>>, vector<15x16x16xf32>,
    %29 = vector.extract_strided_slice %11 {offsets = [1, 1, 0], sizes = [15, 15, 16], strides = [1, 1, 1]} : vector<16x16x16xf32> to vector<15x15x16xf32>
    %c0_27 = arith.constant 0 : index
    %c0_28 = arith.constant 0 : index
    %c128 = arith.constant 128 : index
    %30 = vector.load %arg7[%c0_27, %c0_28, %c128] : memref<16x16x144xf32, #tpu.memory_space<vmem>>, vector<15x15x16xf32>
    tpu.vector_store %arg7[%c0_27, %c0_28, %c128], %29 {strides = array<i32>} : memref<16x16x144xf32, #tpu.memory_space<vmem>>, vector<15x15x16xf32>,
    %c0_29 = arith.constant 0 : index
    %c0_30 = arith.constant 0 : index
    %c0_31 = arith.constant 0 : index
    %31 = vector.load %arg7[%c0_29, %c0_30, %c0_31] : memref<16x16x144xf32, #tpu.memory_space<vmem>>, vector<16x16x144xf32>
    %32 = vector.shape_cast %31 : vector<16x16x144xf32> to vector<256x144xf32>
    %33 = arith.truncf %32 : vector<256x144xf32> to vector<256x144xbf16>
    %c0_32 = arith.constant 0 : index
    %c0_33 = arith.constant 0 : index
    %34 = vector.load %arg2[%c0_32, %c0_33] : memref<144x16xbf16, #tpu.memory_space<vmem>>, vector<144x16xbf16>
    %cst_34 = arith.constant dense<0.000000e+00> : vector<256x16xf32>
    %35 = tpu.matmul %33, %34, %cst_34 {dimension_numbers = #tpu.dot_dimension_numbers<[1], [0], [0], [1], [0, 0, 1, 1], [], []>} : vector<256x144xbf16>, vector<144x16xbf16>, vector<256x16xf32> -> vector<256x16xf32>
    %cst_35 = arith.constant dense<0.000000e+00> : vector<16xf32>
    %36 = vector.multi_reduction <add>, %35, %cst_35 [0] : vector<256x16xf32> to vector<16xf32>
    %37 = vector.shape_cast %36 : vector<16xf32> to vector<1x16xf32>
    %38 = arith.mulf %35, %35 : vector<256x16xf32>
    %cst_36 = arith.constant dense<0.000000e+00> : vector<16xf32>
    %39 = vector.multi_reduction <add>, %38, %cst_36 [0] : vector<256x16xf32> to vector<16xf32>
    %40 = vector.shape_cast %39 : vector<16xf32> to vector<1x16xf32>
    %41 = tpu.concatenate %37, %40 in 0 : vector<1x16xf32>, vector<1x16xf32> -> vector<2x16xf32>
    %42 = vector.shape_cast %41 : vector<2x16xf32> to vector<1x2x16xf32>
    %c0_37 = arith.constant 0 : index
    %c0_38 = arith.constant 0 : index
    %c0_39 = arith.constant 0 : index
    %43 = vector.load %arg6[%c0_37, %c0_38, %c0_39] : memref<1x2x16xf32, #tpu.memory_space<vmem>>, vector<1x2x16xf32>
    tpu.vector_store %arg6[%c0_37, %c0_38, %c0_39], %42 {strides = array<i32>} : memref<1x2x16xf32, #tpu.memory_space<vmem>>, vector<1x2x16xf32>,
    %44 = vector.shape_cast %35 : vector<256x16xf32> to vector<1x16x16x16xf32>
    %c0_40 = arith.constant 0 : index
    %c0_41 = arith.constant 0 : index
    %c0_42 = arith.constant 0 : index
    %c0_43 = arith.constant 0 : index
    %45 = vector.load %arg5[%c0_40, %c0_41, %c0_42, %c0_43] : memref<1x16x16x16xf32, #tpu.memory_space<vmem>>, vector<1x16x16x16xf32>
    tpu.vector_store %arg5[%c0_40, %c0_41, %c0_42, %c0_43], %44 {strides = array<i32>} : memref<1x16x16x16xf32, #tpu.memory_space<vmem>>, vector<1x16x16x16xf32>,
    return
  }
  func.func @transform_0(%arg0: i32) -> (i32, i32, i32, i32) {
    %c0_i32 = arith.constant 0 : i32
    %c0_i32_0 = arith.constant 0 : i32
    %c0_i32_1 = arith.constant 0 : i32
    %c0_i32_2 = arith.constant 0 : i32
    return %arg0, %c0_i32, %c0_i32_0, %c0_i32_1 : i32, i32, i32, i32
  }
  func.func @transform_1(%arg0: i32) -> (i32, i32) {
    %c0_i32 = arith.constant 0 : i32
    %c0_i32_0 = arith.constant 0 : i32
    %c0_i32_1 = arith.constant 0 : i32
    return %c0_i32, %c0_i32_0 : i32, i32
  }
  func.func @transform_2(%arg0: i32) -> (i32, i32) {
    %c0_i32 = arith.constant 0 : i32
    %c0_i32_0 = arith.constant 0 : i32
    %c0_i32_1 = arith.constant 0 : i32
    return %c0_i32, %c0_i32_0 : i32, i32
  }
  func.func @transform_3(%arg0: i32) -> (i32, i32) {
    %c0_i32 = arith.constant 0 : i32
    %c0_i32_0 = arith.constant 0 : i32
    %c0_i32_1 = arith.constant 0 : i32
    return %c0_i32, %c0_i32_0 : i32, i32
  }
  func.func @transform_4(%arg0: i32) -> (i32, i32, i32, i32) {
    %c0_i32 = arith.constant 0 : i32
    %c0_i32_0 = arith.constant 0 : i32
    %c0_i32_1 = arith.constant 0 : i32
    %c0_i32_2 = arith.constant 0 : i32
    return %arg0, %c0_i32, %c0_i32_0, %c0_i32_1 : i32, i32, i32, i32
  }
  func.func @transform_5(%arg0: i32) -> (i32, i32, i32) {
    %c0_i32 = arith.constant 0 : i32
    %c0_i32_0 = arith.constant 0 : i32
    %c0_i32_1 = arith.constant 0 : i32
    return %arg0, %c0_i32, %c0_i32_0 : i32, i32, i32
  }
}

module attributes {stable_mosaic.version = 11 : i64} {
  func.func @kernel(%arg0: i32, %arg1: memref<1x16x256xf32, #tpu.memory_space<vmem>>, %arg2: memref<1x16x256xf32, #tpu.memory_space<vmem>>, %arg3: memref<1x256xf32, #tpu.memory_space<vmem>>, %arg4: memref<1x256xf32, #tpu.memory_space<vmem>>, %arg5: memref<1x16x256xf32, #tpu.memory_space<vmem>>) attributes {dimension_semantics = [#tpu.dimension_semantics<parallel>], iteration_bounds = array<i64: 2>, scalar_prefetch = 0 : i64, scratch_operands = 0 : i64, tpu.core_type = #tpu.core_type<tc>, window_params = [{transform_indices = @transform_0, window_bounds = array<i64: 1, 16, 256>}, {transform_indices = @transform_1, window_bounds = array<i64: 1, 16, 256>}, {pipeline_mode = #tpu.pipeline_mode<synchronous>, transform_indices = @transform_2, window_bounds = array<i64: 1, 256>}, {pipeline_mode = #tpu.pipeline_mode<synchronous>, transform_indices = @transform_3, window_bounds = array<i64: 1, 256>}, {transform_indices = @transform_4, window_bounds = array<i64: 1, 16, 256>}]} {
    %c0 = arith.constant 0 : index
    %c0_0 = arith.constant 0 : index
    %c0_1 = arith.constant 0 : index
    %0 = vector.load %arg2[%c0, %c0_0, %c0_1] : memref<1x16x256xf32, #tpu.memory_space<vmem>>, vector<1x16x256xf32>
    %1 = vector.shape_cast %0 : vector<1x16x256xf32> to vector<16x256xf32>
    %c0_2 = arith.constant 0 : index
    %c0_3 = arith.constant 0 : index
    %c0_4 = arith.constant 0 : index
    %2 = vector.load %arg1[%c0_2, %c0_3, %c0_4] : memref<1x16x256xf32, #tpu.memory_space<vmem>>, vector<1x16x256xf32>
    %3 = vector.shape_cast %2 : vector<1x16x256xf32> to vector<16x256xf32>
    %c0_5 = arith.constant 0 : index
    %c0_6 = arith.constant 0 : index
    %4 = vector.load %arg3[%c0_5, %c0_6] : memref<1x256xf32, #tpu.memory_space<vmem>>, vector<1x256xf32>
    %5 = vector.broadcast %4 : vector<1x256xf32> to vector<16x256xf32>
    %6 = arith.mulf %3, %5 : vector<16x256xf32>
    %c0_7 = arith.constant 0 : index
    %c0_8 = arith.constant 0 : index
    %7 = vector.load %arg4[%c0_7, %c0_8] : memref<1x256xf32, #tpu.memory_space<vmem>>, vector<1x256xf32>
    %8 = vector.broadcast %7 : vector<1x256xf32> to vector<16x256xf32>
    %9 = arith.addf %6, %8 : vector<16x256xf32>
    %10 = arith.addf %9, %1 : vector<16x256xf32>
    %cst = arith.constant 0.000000e+00 : f32
    %11 = vector.broadcast %cst : f32 to vector<16x256xf32>
    %12 = arith.maximumf %10, %11 : vector<16x256xf32>
    %c0_9 = arith.constant 0 : index
    %c0_10 = arith.constant 0 : index
    %c0_11 = arith.constant 0 : index
    %13 = vector.load %arg5[%c0_9, %c0_10, %c0_11] : memref<1x16x256xf32, #tpu.memory_space<vmem>>, vector<1x16x256xf32>
    %14 = vector.shape_cast %13 : vector<1x16x256xf32> to vector<16x256xf32>
    %15 = vector.shape_cast %12 : vector<16x256xf32> to vector<1x16x256xf32>
    tpu.vector_store %arg5[%c0_9, %c0_10, %c0_11], %15 {strides = array<i32>} : memref<1x16x256xf32, #tpu.memory_space<vmem>>, vector<1x16x256xf32>,
    return
  }
  func.func @transform_0(%arg0: i32) -> (i32, i32, i32) {
    %c0_i32 = arith.constant 0 : i32
    %c0_i32_0 = arith.constant 0 : i32
    %c0_i32_1 = arith.constant 0 : i32
    return %arg0, %c0_i32, %c0_i32_0 : i32, i32, i32
  }
  func.func @transform_1(%arg0: i32) -> (i32, i32, i32) {
    %c0_i32 = arith.constant 0 : i32
    %c0_i32_0 = arith.constant 0 : i32
    %c0_i32_1 = arith.constant 0 : i32
    return %arg0, %c0_i32, %c0_i32_0 : i32, i32, i32
  }
  func.func @transform_2(%arg0: i32) -> (i32, i32) {
    %c0_i32 = arith.constant 0 : i32
    %c0_i32_0 = arith.constant 0 : i32
    %c0_i32_1 = arith.constant 0 : i32
    return %c0_i32, %c0_i32_0 : i32, i32
  }
  func.func @transform_3(%arg0: i32) -> (i32, i32) {
    %c0_i32 = arith.constant 0 : i32
    %c0_i32_0 = arith.constant 0 : i32
    %c0_i32_1 = arith.constant 0 : i32
    return %c0_i32, %c0_i32_0 : i32, i32
  }
  func.func @transform_4(%arg0: i32) -> (i32, i32, i32) {
    %c0_i32 = arith.constant 0 : i32
    %c0_i32_0 = arith.constant 0 : i32
    %c0_i32_1 = arith.constant 0 : i32
    return %arg0, %c0_i32, %c0_i32_0 : i32, i32, i32
  }
}

</mosaic_0001>

<llo_original>
// kernel: basic_block_forward.5
$region0: #{basic_block_forward.5}
  #allocation0 [shape = 'u32[]', space=smem, size = 0x4, offset = 0x4, fixed_abs, tag = 'smem constant byte address 0x4 - core index']
  #allocation1 [shape = 'u32[144,128]{1,0:T(1,128)}', space=vmem, size = 0x12000, scoped, tag = 'internal scratch']
  %s0 = inlined_call_operand.vmem [shape: f32[2,16,256], index: 0, kind: input, shape index: {}]
  %s1 = inlined_call_operand.vmem [shape: f32[2,16,256], index: 1, kind: input, shape index: {}]
  %s2 = inlined_call_operand.vmem [shape: f32[1,256], index: 2, kind: input, shape index: {}]
  %s3 = inlined_call_operand.vmem [shape: f32[1,256], index: 3, kind: input, shape index: {}]
  %s4 = inlined_call_operand.vmem [shape: f32[2,16,256], index: 4, kind: output, shape index: {}]
  %s5 = sld [smem:[#allocation0]]
  $region49: #{basic_block_forward.5} parent=0
    _
  %s7 = ssub.s32 1, %s5
  %s8 = scalar_select 0, %s7, %s5
  loop: start=0, step=1, limit=4
  $region2: #{basic_block_forward.5} parent=0 // loop_pre_header
    _
  $region3: #{basic_block_forward.5} parent=0 // loop_header
    %s10 = sphi 0, %s14
    %p11 = scmp.ge.s32.totalorder %s10, 4
    %s20 = sphi 0, %s22
    %s23 = sphi 0, %s20
    %s24 = sphi 0, %s23
    %s40 = sphi 0, %s24
    %s46 = sphi 0, %s48
    %s49 = sphi 0, %s46
    %s50 = sphi 0, %s49
    %s66 = sphi 0, %s50
    %s70 = sphi 0, %s70
    %s72 = sphi 0, %s70
    %s73 = sphi 0, %s72
    %s87 = sphi 0, %s73
    %s91 = sphi 0, %s91
    %s93 = sphi 0, %s91
    %s94 = sphi 0, %s93
    %s108 = sphi 0, %s94
    %s114 = sphi 0, %s116
    %s117 = sphi 0, %s114
    %s118 = sphi 0, %s117
    %s134 = sphi 0, %s118
  $region4: #{basic_block_forward.5} parent=0 // loop_header_branch
    %13 = sbr.rel (%p11) target = $region8
  $region5: #{basic_block_forward.5} parent=0 // loop_body
    %s15 = ssub.s32 %s10, 1
    %s16 = ssub.s32 %s10, 2
    %s17 = sadd.s32 %s10, 1
    %s18 = ssub.s32 %s10, %s17
    %p19 = scmp.eq.s32.totalorder %s18, 0
    %s21 = sadd.s32 %s20, 1
    %s22 = scalar_select %p19, %s20, %s21
    %p25 = pneg %p19
    %p26 = scmp.eq.s32.totalorder %s10, 1
    %p27 = por %p25, %p26
    %p28 = scmp.ne.s32.totalorder %s20, %s23
    %p29 = scmp.eq.s32.totalorder %s10, 0
    %p30 = por %p28, %p29
    %p31 = scmp.ne.s32.totalorder %s20, %s23
    %p32 = scmp.eq.s32.totalorder %s15, 1
    %p33 = por %p31, %p32
    %p34 = scmp.ne.s32.totalorder %s23, %s24
    %p35 = scmp.eq.s32.totalorder %s15, 0
    %p36 = por %p34, %p35
    %p37 = scmp.ne.s32.totalorder %s23, %s24
    %p38 = scmp.eq.s32.totalorder %s16, 1
    %p39 = por %p37, %p38
    %p41 = scmp.ne.s32.totalorder %s24, %s40
    %p42 = scmp.eq.s32.totalorder %s16, 0
    %p43 = por %p41, %p42
    %s44 = ssub.s32 %s10, %s17
    %p45 = scmp.eq.s32.totalorder %s44, 0
    %s47 = sadd.s32 %s46, 1
    %s48 = scalar_select %p45, %s46, %s47
    %p51 = pneg %p45
    %p52 = scmp.eq.s32.totalorder %s10, 1
    %p53 = por %p51, %p52
    %p54 = scmp.ne.s32.totalorder %s46, %s49
    %p55 = scmp.eq.s32.totalorder %s10, 0
    %p56 = por %p54, %p55
    %p57 = scmp.ne.s32.totalorder %s46, %s49
    %p58 = scmp.eq.s32.totalorder %s15, 1
    %p59 = por %p57, %p58
    %p60 = scmp.ne.s32.totalorder %s49, %s50
    %p61 = scmp.eq.s32.totalorder %s15, 0
    %p62 = por %p60, %p61
    %p63 = scmp.ne.s32.totalorder %s49, %s50
    %p64 = scmp.eq.s32.totalorder %s16, 1
    %p65 = por %p63, %p64
    %p67 = scmp.ne.s32.totalorder %s50, %s66
    %p68 = scmp.eq.s32.totalorder %s16, 0
    %p69 = por %p67, %p68
    %s71 = sadd.s32 %s70, 1
    %p74 = scmp.eq.s32.totalorder %s10, 1
    %p75 = scmp.ne.s32.totalorder %s70, %s72
    %p76 = scmp.eq.s32.totalorder %s10, 0
    %p77 = por %p75, %p76
    %p78 = scmp.ne.s32.totalorder %s70, %s72
    %p79 = scmp.eq.s32.totalorder %s15, 1
    %p80 = por %p78, %p79
    %p81 = scmp.ne.s32.totalorder %s72, %s73
    %p82 = scmp.eq.s32.totalorder %s15, 0
    %p83 = por %p81, %p82
    %p84 = scmp.ne.s32.totalorder %s72, %s73
    %p85 = scmp.eq.s32.totalorder %s16, 1
    %p86 = por %p84, %p85
    %p88 = scmp.ne.s32.totalorder %s73, %s87
    %p89 = scmp.eq.s32.totalorder %s16, 0
    %p90 = por %p88, %p89
    %s92 = sadd.s32 %s91, 1
    %p95 = scmp.eq.s32.totalorder %s10, 1
    %p96 = scmp.ne.s32.totalorder %s91, %s93
    %p97 = scmp.eq.s32.totalorder %s10, 0
    %p98 = por %p96, %p97
    %p99 = scmp.ne.s32.totalorder %s91, %s93
    %p100 = scmp.eq.s32.totalorder %s15, 1
    %p101 = por %p99, %p100
    %p102 = scmp.ne.s32.totalorder %s93, %s94
    %p103 = scmp.eq.s32.totalorder %s15, 0
    %p104 = por %p102, %p103
    %p105 = scmp.ne.s32.totalorder %s93, %s94
    %p106 = scmp.eq.s32.totalorder %s16, 1
    %p107 = por %p105, %p106
    %p109 = scmp.ne.s32.totalorder %s94, %s108
    %p110 = scmp.eq.s32.totalorder %s16, 0
    %p111 = por %p109, %p110
    %s112 = ssub.s32 %s10, %s17
    %p113 = scmp.eq.s32.totalorder %s112, 0
    %s115 = sadd.s32 %s114, 1
    %s116 = scalar_select %p113, %s114, %s115
    %p119 = pneg %p113
    %p120 = scmp.eq.s32.totalorder %s10, 1
    %p121 = por %p119, %p120
    %p122 = scmp.ne.s32.totalorder %s114, %s117
    %p123 = scmp.eq.s32.totalorder %s10, 0
    %p124 = por %p122, %p123
    %p125 = scmp.ne.s32.totalorder %s114, %s117
    %p126 = scmp.eq.s32.totalorder %s15, 1
    %p127 = por %p125, %p126
    %p128 = scmp.ne.s32.totalorder %s117, %s118
    %p129 = scmp.eq.s32.totalorder %s15, 0
    %p130 = por %p128, %p129
    %p131 = scmp.ne.s32.totalorder %s117, %s118
    %p132 = scmp.eq.s32.totalorder %s16, 1
    %p133 = por %p131, %p132
    %p135 = scmp.ne.s32.totalorder %s118, %s134
    %p136 = scmp.eq.s32.totalorder %s16, 0
    %p137 = por %p135, %p136
    %p138 = scmp.le.s32.totalorder 1, %s10
    %p139 = scmp.lt.s32.totalorder %s10, 3
    %p140 = pnand %p138, %p139
    %p141 = pneg %p140
    // Predicated region
    $region9: #{basic_block_forward.5} parent=5 // pred_check
      _
    $region10: #{basic_block_forward.5} parent=5 // pred_check_branch
      %143 = sbr.rel (%p140) target = $region12
    $region11: #{basic_block_forward.5} parent=5 // pred_region
      %s144 = ssub.s32 %s10, 1
      // Predicated region
      $region13: #{basic_block_forward.5} parent=11 // pred_check
        %p145 = pneg %p83
      $region14: #{basic_block_forward.5} parent=11 // pred_check_branch
        %147 = sbr.rel (%p145) target = $region16
      $region15: #{basic_block_forward.5} parent=11 // pred_region
        _
      $region16: #{basic_block_forward.5} parent=11 // pred_fallthru
        _
      // Predicated region
      $region17: #{basic_block_forward.5} parent=11 // pred_check
        %p148 = pneg %p104
      $region18: #{basic_block_forward.5} parent=11 // pred_check_branch
        %150 = sbr.rel (%p148) target = $region20
      $region19: #{basic_block_forward.5} parent=11 // pred_region
        _
      $region20: #{basic_block_forward.5} parent=11 // pred_fallthru
        _
    $region12: #{basic_block_forward.5} parent=5 // pred_fallthru
      _
    %p151 = scmp.lt.s32.totalorder %s10, 2
    // Predicated region
    $region21: #{basic_block_forward.5} parent=5 // pred_check
      %p152 = pneg %p151
    $region22: #{basic_block_forward.5} parent=5 // pred_check_branch
      %154 = sbr.rel (%p152) target = $region24
    $region23: #{basic_block_forward.5} parent=5 // pred_region
      // Predicated region
      $region25: #{basic_block_forward.5} parent=23 // pred_check
        %p155 = pneg %p30
      $region26: #{basic_block_forward.5} parent=23 // pred_check_branch
        %157 = sbr.rel (%p155) target = $region28
      $region27: #{basic_block_forward.5} parent=23 // pred_region
        %p158 = scmp.lt.s32.totalorder %s10, 1
        %s159 = scalar_select %p158, %s10, 1
        %s160 = smul.addr %s159, 4
        %s161 = smul.addr %s160, 8
        %s162 = scalar_lea.vmem %s0, %s161
      $region28: #{basic_block_forward.5} parent=23 // pred_fallthru
        _
      // Predicated region
      $region29: #{basic_block_forward.5} parent=23 // pred_check
        %p163 = pneg %p56
      $region30: #{basic_block_forward.5} parent=23 // pred_check_branch
        %165 = sbr.rel (%p163) target = $region32
      $region31: #{basic_block_forward.5} parent=23 // pred_region
        %p166 = scmp.lt.s32.totalorder %s10, 1
        %s167 = scalar_select %p166, %s10, 1
        %s168 = smul.addr %s167, 4
        %s169 = smul.addr %s168, 8
        %s170 = scalar_lea.vmem %s1, %s169
      $region32: #{basic_block_forward.5} parent=23 // pred_fallthru
        _
    $region24: #{basic_block_forward.5} parent=5 // pred_fallthru
      _
    %p171 = scmp.le.s32.totalorder 1, %s10
    %p172 = scmp.lt.s32.totalorder %s10, 3
    %p173 = pnand %p171, %p172
    %p174 = pneg %p173
    // Predicated region
    $region33: #{basic_block_forward.5} parent=5 // pred_check
      _
    $region34: #{basic_block_forward.5} parent=5 // pred_check_branch
      %176 = sbr.rel (%p173) target = $region36
    $region35: #{basic_block_forward.5} parent=5 // pred_region
      %s177 = ssub.s32 %s10, 1
      %p178 = scmp.lt.s32.totalorder %s15, 1
      %s179 = scalar_select %p178, %s15, 1
      %s180 = smul.addr %s179, 4
      %s181 = smul.addr %s180, 8
      %s182 = scalar_lea.vmem %s0, %s181
      %p183 = pneg %p36
      %p184 = pneg %p33
      %p185 = scmp.lt.s32.totalorder %s15, 1
      %s186 = scalar_select %p185, %s15, 1
      %s187 = smul.addr %s186, 4
      %s188 = smul.addr %s187, 8
      %s189 = scalar_lea.vmem %s1, %s188
      %p190 = pneg %p62
      %p191 = pneg %p59
      %p192 = pneg %p83
      %p193 = pneg %p80
      %p194 = pneg %p104
      %p195 = pneg %p101
      %p196 = pneg %p130
      %p197 = pneg %p127
      %p198 = scmp.lt.s32.totalorder %s15, 1
      %s199 = scalar_select %p198, %s15, 1
      %s200 = smul.addr %s199, 4
      %s201 = smul.addr %s200, 8
      %s202 = scalar_lea.vmem %s4, %s201
      %p203 = scmp.lt.s32.totalorder %s15, 1
      %s204 = scalar_select %p203, %s15, 1
      %s205 = smul.addr %s204, 4
      %s206 = smul.addr %s205, 8
      %s207 = scalar_lea.vmem %s0, %s206
      %p208 = scmp.lt.s32.totalorder %s15, 1
      %s209 = scalar_select %p208, %s15, 1
      %s210 = smul.addr %s209, 4
      %s211 = smul.addr %s210, 8
      %s212 = scalar_lea.vmem %s1, %s211
      %p213 = scmp.lt.s32.totalorder %s15, 1
      %s214 = scalar_select %p213, %s15, 1
      %s215 = smul.addr %s214, 4
      %s216 = smul.addr %s215, 8
      %s217 = scalar_lea.vmem %s4, %s216
      %v218 = vld [vmem:[%s212] sm:$0xff]
      %v219 = vld [vmem:[%s212 + $0x8] sm:$0xff]
      %v220 = vld [vmem:[%s212 + $0x10] sm:$0xff]
      %v221 = vld [vmem:[%s212 + $0x18] sm:$0xff]
      %v222 = vld [vmem:[%s207] sm:$0xff]
      %v223 = vld [vmem:[%s207 + $0x8] sm:$0xff]
      %v224 = vld [vmem:[%s207 + $0x10] sm:$0xff]
      %v225 = vld [vmem:[%s207 + $0x18] sm:$0xff]
      %v226 = vld [vmem:[%s2] sm:$0x3]
      %v228 = vlaneseq
      %v229 = vshrl.u32 %v228, 7
      %v230 = vsub.s32 0, %v229
      %v231 = vrot.slane %v226, %v230
      %v232 = vlaneseq
      %v233 = vshrl.u32 %v232, 7
      %v234 = vsub.s32 1, %v233
      %v235 = vrot.slane %v226, %v234
      %v238 = vmul.f32 %v222, %v231
      %v239 = vmul.f32 %v223, %v235
      %v240 = vmul.f32 %v224, %v231
      %v241 = vmul.f32 %v225, %v235
      %v242 = vld [vmem:[%s3] sm:$0x3]
      %v244 = vlaneseq
      %v245 = vshrl.u32 %v244, 7
      %v246 = vsub.s32 0, %v245
      %v247 = vrot.slane %v242, %v246
      %v248 = vlaneseq
      %v249 = vshrl.u32 %v248, 7
      %v250 = vsub.s32 1, %v249
      %v251 = vrot.slane %v242, %v250
      %v254 = vadd.f32 %v238, %v247
      %v255 = vadd.f32 %v239, %v251
      %v256 = vadd.f32 %v240, %v247
      %v257 = vadd.f32 %v241, %v251
      %v258 = vadd.f32 %v254, %v218
      %v259 = vadd.f32 %v255, %v219
      %v260 = vadd.f32 %v256, %v220
      %v261 = vadd.f32 %v257, %v221
      %v262 = vmax.f32 %v258, 0.0
      %v263 = vmax.f32 %v259, 0.0
      %v264 = vmax.f32 %v260, 0.0
      %v265 = vmax.f32 %v261, 0.0
      %266 = vst [vmem:[%s217] sm:$0xff] %v262
      %267 = vst [vmem:[%s217 + $0x8] sm:$0xff] %v263
      %268 = vst [vmem:[%s217 + $0x10] sm:$0xff] %v264
      %269 = vst [vmem:[%s217 + $0x18] sm:$0xff] %v265
      %p270 = scmp.lt.s32.totalorder %s15, 1
      %s271 = scalar_select %p270, %s15, 1
      %s272 = smul.addr %s271, 4
      %s273 = smul.addr %s272, 8
      %s274 = scalar_lea.vmem %s4, %s273
      // Predicated region
      $region37: #{basic_block_forward.5} parent=35 // pred_check
        %p275 = pneg %p127
      $region38: #{basic_block_forward.5} parent=35 // pred_check_branch
        %277 = sbr.rel (%p275) target = $region40
      $region39: #{basic_block_forward.5} parent=35 // pred_region
        _
      $region40: #{basic_block_forward.5} parent=35 // pred_fallthru
        _
    $region36: #{basic_block_forward.5} parent=5 // pred_fallthru
      _
    %p278 = scmp.le.s32.totalorder 2, %s10
    // Predicated region
    $region41: #{basic_block_forward.5} parent=5 // pred_check
      %p279 = pneg %p278
    $region42: #{basic_block_forward.5} parent=5 // pred_check_branch
      %281 = sbr.rel (%p279) target = $region44
    $region43: #{basic_block_forward.5} parent=5 // pred_region
      %s282 = ssub.s32 %s10, 2
      // Predicated region
      $region45: #{basic_block_forward.5} parent=43 // pred_check
        %p283 = pneg %p133
      $region46: #{basic_block_forward.5} parent=43 // pred_check_branch
        %285 = sbr.rel (%p283) target = $region48
      $region47: #{basic_block_forward.5} parent=43 // pred_region
        %p286 = scmp.lt.s32.totalorder %s16, 1
        %s287 = scalar_select %p286, %s16, 1
        %s288 = smul.addr %s287, 4
        %s289 = smul.addr %s288, 8
        %s290 = scalar_lea.vmem %s4, %s289
      $region48: #{basic_block_forward.5} parent=43 // pred_fallthru
        _
    $region44: #{basic_block_forward.5} parent=5 // pred_fallthru
      _
  $region6: #{basic_block_forward.5} parent=0 // loop_footer
    %s14 = sadd.s32 1, %s10
  $region7: #{basic_block_forward.5} parent=0 // loop_footer_branch
    %9 = sbr.rel target = $region3
  $region8: #{basic_block_forward.5} parent=0 // loop_exit
    _

// kernel: basic_block_forward.3
$region0: #{basic_block_forward.3}
  #allocation0 [shape = 'u32[]', space=smem, size = 0x4, offset = 0x4, fixed_abs, tag = 'smem constant byte address 0x4 - core index']
  #allocation1 [shape = 'u32[144,128]{1,0:T(1,128)}', space=vmem, size = 0x12000, scoped, tag = 'internal scratch']
  #allocation2 [shape = 'f32[16,16,144]{2,1,0:T(8,128)}', space=vmem, size = 0x40000, scoped, tag = 'scratch operand']
  %s0 = inlined_call_operand.vmem [shape: f32[2,16,16,16], index: 0, kind: input, shape index: {}]
  %s1 = inlined_call_operand.vmem [shape: bf16[144,16], index: 1, kind: input, shape index: {}]
  %s2 = inlined_call_operand.vmem [shape: f32[2,16,16,16], index: 2, kind: output, shape index: {0}]
  %s3 = inlined_call_operand.vmem [shape: f32[2,2,16], index: 3, kind: output, shape index: {1}]
  %4 = xla_tuple %s2, %s3
  %s5 = sld [smem:[#allocation0]]
  $region49: #{basic_block_forward.3} parent=0
    _
  %s7 = ssub.s32 1, %s5
  %s8 = scalar_select 0, %s7, %s5
  loop: start=0, step=1, limit=4
  $region2: #{basic_block_forward.3} parent=0 // loop_pre_header
    _
  $region3: #{basic_block_forward.3} parent=0 // loop_header
    %s10 = sphi 0, %s14
    %p11 = scmp.ge.s32.totalorder %s10, 4
    %s20 = sphi 0, %s22
    %s23 = sphi 0, %s20
    %s24 = sphi 0, %s23
    %s40 = sphi 0, %s24
    %s44 = sphi 0, %s44
    %s46 = sphi 0, %s44
    %s47 = sphi 0, %s46
    %s61 = sphi 0, %s47
    %s67 = sphi 0, %s69
    %s70 = sphi 0, %s67
    %s71 = sphi 0, %s70
    %s87 = sphi 0, %s71
    %s93 = sphi 0, %s95
    %s96 = sphi 0, %s93
    %s97 = sphi 0, %s96
    %s113 = sphi 0, %s97
  $region4: #{basic_block_forward.3} parent=0 // loop_header_branch
    %13 = sbr.rel (%p11) target = $region8
  $region5: #{basic_block_forward.3} parent=0 // loop_body
    %s15 = ssub.s32 %s10, 1
    %s16 = ssub.s32 %s10, 2
    %s17 = sadd.s32 %s10, 1
    %s18 = ssub.s32 %s10, %s17
    %p19 = scmp.eq.s32.totalorder %s18, 0
    %s21 = sadd.s32 %s20, 1
    %s22 = scalar_select %p19, %s20, %s21
    %p25 = pneg %p19
    %p26 = scmp.eq.s32.totalorder %s10, 1
    %p27 = por %p25, %p26
    %p28 = scmp.ne.s32.totalorder %s20, %s23
    %p29 = scmp.eq.s32.totalorder %s10, 0
    %p30 = por %p28, %p29
    %p31 = scmp.ne.s32.totalorder %s20, %s23
    %p32 = scmp.eq.s32.totalorder %s15, 1
    %p33 = por %p31, %p32
    %p34 = scmp.ne.s32.totalorder %s23, %s24
    %p35 = scmp.eq.s32.totalorder %s15, 0
    %p36 = por %p34, %p35
    %p37 = scmp.ne.s32.totalorder %s23, %s24
    %p38 = scmp.eq.s32.totalorder %s16, 1
    %p39 = por %p37, %p38
    %p41 = scmp.ne.s32.totalorder %s24, %s40
    %p42 = scmp.eq.s32.totalorder %s16, 0
    %p43 = por %p41, %p42
    %s45 = sadd.s32 %s44, 1
    %p48 = scmp.eq.s32.totalorder %s10, 1
    %p49 = scmp.ne.s32.totalorder %s44, %s46
    %p50 = scmp.eq.s32.totalorder %s10, 0
    %p51 = por %p49, %p50
    %p52 = scmp.ne.s32.totalorder %s44, %s46
    %p53 = scmp.eq.s32.totalorder %s15, 1
    %p54 = por %p52, %p53
    %p55 = scmp.ne.s32.totalorder %s46, %s47
    %p56 = scmp.eq.s32.totalorder %s15, 0
    %p57 = por %p55, %p56
    %p58 = scmp.ne.s32.totalorder %s46, %s47
    %p59 = scmp.eq.s32.totalorder %s16, 1
    %p60 = por %p58, %p59
    %p62 = scmp.ne.s32.totalorder %s47, %s61
    %p63 = scmp.eq.s32.totalorder %s16, 0
    %p64 = por %p62, %p63
    %s65 = ssub.s32 %s10, %s17
    %p66 = scmp.eq.s32.totalorder %s65, 0
    %s68 = sadd.s32 %s67, 1
    %s69 = scalar_select %p66, %s67, %s68
    %p72 = pneg %p66
    %p73 = scmp.eq.s32.totalorder %s10, 1
    %p74 = por %p72, %p73
    %p75 = scmp.ne.s32.totalorder %s67, %s70
    %p76 = scmp.eq.s32.totalorder %s10, 0
    %p77 = por %p75, %p76
    %p78 = scmp.ne.s32.totalorder %s67, %s70
    %p79 = scmp.eq.s32.totalorder %s15, 1
    %p80 = por %p78, %p79
    %p81 = scmp.ne.s32.totalorder %s70, %s71
    %p82 = scmp.eq.s32.totalorder %s15, 0
    %p83 = por %p81, %p82
    %p84 = scmp.ne.s32.totalorder %s70, %s71
    %p85 = scmp.eq.s32.totalorder %s16, 1
    %p86 = por %p84, %p85
    %p88 = scmp.ne.s32.totalorder %s71, %s87
    %p89 = scmp.eq.s32.totalorder %s16, 0
    %p90 = por %p88, %p89
    %s91 = ssub.s32 %s10, %s17
    %p92 = scmp.eq.s32.totalorder %s91, 0
    %s94 = sadd.s32 %s93, 1
    %s95 = scalar_select %p92, %s93, %s94
    %p98 = pneg %p92
    %p99 = scmp.eq.s32.totalorder %s10, 1
    %p100 = por %p98, %p99
    %p101 = scmp.ne.s32.totalorder %s93, %s96
    %p102 = scmp.eq.s32.totalorder %s10, 0
    %p103 = por %p101, %p102
    %p104 = scmp.ne.s32.totalorder %s93, %s96
    %p105 = scmp.eq.s32.totalorder %s15, 1
    %p106 = por %p104, %p105
    %p107 = scmp.ne.s32.totalorder %s96, %s97
    %p108 = scmp.eq.s32.totalorder %s15, 0
    %p109 = por %p107, %p108
    %p110 = scmp.ne.s32.totalorder %s96, %s97
    %p111 = scmp.eq.s32.totalorder %s16, 1
    %p112 = por %p110, %p111
    %p114 = scmp.ne.s32.totalorder %s97, %s113
    %p115 = scmp.eq.s32.totalorder %s16, 0
    %p116 = por %p114, %p115
    %p117 = scmp.le.s32.totalorder 1, %s10
    %p118 = scmp.lt.s32.totalorder %s10, 3
    %p119 = pnand %p117, %p118
    %p120 = pneg %p119
    // Predicated region
    $region9: #{basic_block_forward.3} parent=5 // pred_check
      _
    $region10: #{basic_block_forward.3} parent=5 // pred_check_branch
      %122 = sbr.rel (%p119) target = $region12
    $region11: #{basic_block_forward.3} parent=5 // pred_region
      %s123 = ssub.s32 %s10, 1
      // Predicated region
      $region13: #{basic_block_forward.3} parent=11 // pred_check
        %p124 = pneg %p57
      $region14: #{basic_block_forward.3} parent=11 // pred_check_branch
        %126 = sbr.rel (%p124) target = $region16
      $region15: #{basic_block_forward.3} parent=11 // pred_region
        _
      $region16: #{basic_block_forward.3} parent=11 // pred_fallthru
        _
    $region12: #{basic_block_forward.3} parent=5 // pred_fallthru
      _
    %p127 = scmp.lt.s32.totalorder %s10, 2
    // Predicated region
    $region17: #{basic_block_forward.3} parent=5 // pred_check
      %p128 = pneg %p127
    $region18: #{basic_block_forward.3} parent=5 // pred_check_branch
      %130 = sbr.rel (%p128) target = $region20
    $region19: #{basic_block_forward.3} parent=5 // pred_region
      // Predicated region
      $region21: #{basic_block_forward.3} parent=19 // pred_check
        %p131 = pneg %p30
      $region22: #{basic_block_forward.3} parent=19 // pred_check_branch
        %133 = sbr.rel (%p131) target = $region24
      $region23: #{basic_block_forward.3} parent=19 // pred_region
        %p134 = scmp.lt.s32.totalorder %s10, 1
        %s135 = scalar_select %p134, %s10, 1
        %s136 = smul.addr %s135, 32
        %s137 = smul.addr %s136, 8
        %s138 = scalar_lea.vmem %s0, %s137
      $region24: #{basic_block_forward.3} parent=19 // pred_fallthru
        _
    $region20: #{basic_block_forward.3} parent=5 // pred_fallthru
      _
    %p139 = scmp.le.s32.totalorder 1, %s10
    %p140 = scmp.lt.s32.totalorder %s10, 3
    %p141 = pnand %p139, %p140
    %p142 = pneg %p141
    // Predicated region
    $region25: #{basic_block_forward.3} parent=5 // pred_check
      _
    $region26: #{basic_block_forward.3} parent=5 // pred_check_branch
      %144 = sbr.rel (%p141) target = $region28
    $region27: #{basic_block_forward.3} parent=5 // pred_region
      %s145 = ssub.s32 %s10, 1
      %p146 = scmp.lt.s32.totalorder %s15, 1
      %s147 = scalar_select %p146, %s15, 1
      %s148 = smul.addr %s147, 32
      %s149 = smul.addr %s148, 8
      %s150 = scalar_lea.vmem %s0, %s149
      %p151 = pneg %p36
      %p152 = pneg %p33
      %p153 = pneg %p57
      %p154 = pneg %p54
      %p155 = pneg %p83
      %p156 = pneg %p80
      %p157 = scmp.lt.s32.totalorder %s15, 1
      %s158 = scalar_select %p157, %s15, 1
      %s159 = smul.addr %s158, 32
      %s160 = smul.addr %s159, 8
      %s161 = scalar_lea.vmem %s2, %s160
      %p162 = pneg %p109
      %p163 = pneg %p106
      %p164 = scmp.lt.s32.totalorder %s15, 1
      %s165 = scalar_select %p164, %s15, 1
      %s166 = smul.addr %s165, 2
      %s167 = scalar_lea.vmem %s3, %s166
      %p168 = scmp.lt.s32.totalorder %s15, 1
      %s169 = scalar_select %p168, %s15, 1
      %s170 = smul.addr %s169, 32
      %s171 = smul.addr %s170, 8
      %s172 = scalar_lea.vmem %s0, %s171
      %p173 = scmp.lt.s32.totalorder %s15, 1
      %s174 = scalar_select %p173, %s15, 1
      %s175 = smul.addr %s174, 32
      %s176 = smul.addr %s175, 8
      %s177 = scalar_lea.vmem %s2, %s176
      %p178 = scmp.lt.s32.totalorder %s15, 1
      %s179 = scalar_select %p178, %s15, 1
      %s180 = smul.addr %s179, 2
      %s181 = scalar_lea.vmem %s3, %s180
      %v183 = vld [vmem:[%s172] sm:$0xff]
      %v184 = vld [vmem:[%s172 + $0x8] sm:$0xff]
      %v185 = vld [vmem:[%s172 + $0x10] sm:$0xff]
      %v186 = vld [vmem:[%s172 + $0x18] sm:$0xff]
      %v187 = vld [vmem:[%s172 + $0x20] sm:$0xff]
      %v188 = vld [vmem:[%s172 + $0x28] sm:$0xff]
      %v189 = vld [vmem:[%s172 + $0x30] sm:$0xff]
      %v190 = vld [vmem:[%s172 + $0x38] sm:$0xff]
      %v191 = vld [vmem:[%s172 + $0x40] sm:$0xff]
      %v192 = vld [vmem:[%s172 + $0x48] sm:$0xff]
      %v193 = vld [vmem:[%s172 + $0x50] sm:$0xff]
      %v194 = vld [vmem:[%s172 + $0x58] sm:$0xff]
      %v195 = vld [vmem:[%s172 + $0x60] sm:$0xff]
      %v196 = vld [vmem:[%s172 + $0x68] sm:$0xff]
      %v197 = vld [vmem:[%s172 + $0x70] sm:$0xff]
      %v198 = vld [vmem:[%s172 + $0x78] sm:$0xff]
      %v199 = vld [vmem:[%s172 + $0x80] sm:$0xff]
      %v200 = vld [vmem:[%s172 + $0x88] sm:$0xff]
      %v201 = vld [vmem:[%s172 + $0x90] sm:$0xff]
      %v202 = vld [vmem:[%s172 + $0x98] sm:$0xff]
      %v203 = vld [vmem:[%s172 + $0xa0] sm:$0xff]
      %v204 = vld [vmem:[%s172 + $0xa8] sm:$0xff]
      %v205 = vld [vmem:[%s172 + $0xb0] sm:$0xff]
      %v206 = vld [vmem:[%s172 + $0xb8] sm:$0xff]
      %v207 = vld [vmem:[%s172 + $0xc0] sm:$0xff]
      %v208 = vld [vmem:[%s172 + $0xc8] sm:$0xff]
      %v209 = vld [vmem:[%s172 + $0xd0] sm:$0xff]
      %v210 = vld [vmem:[%s172 + $0xd8] sm:$0xff]
      %v211 = vld [vmem:[%s172 + $0xe0] sm:$0xff]
      %v212 = vld [vmem:[%s172 + $0xe8] sm:$0xff]
      %v213 = vld [vmem:[%s172 + $0xf0] sm:$0xff]
      %v214 = vld [vmem:[%s172 + $0xf8] sm:$0xff]
      %215 = vst [vmem:[#allocation2] sm:$0xff] 0.0
      %vm216 = vcmask 130048
      %217 = vst.msk [vmem:[#allocation2 + $0x8] sm:$0xff] %vm216, 0.0
      %218 = vst [vmem:[#allocation2 + $0x10] sm:$0xff] 0.0
      %219 = vst.msk [vmem:[#allocation2 + $0x18] sm:$0xff] %vm216, 0.0
      %220 = vst [vmem:[#allocation2 + $0x20] sm:$0xff] 0.0
      %221 = vst.msk [vmem:[#allocation2 + $0x28] sm:$0xff] %vm216, 0.0
      %222 = vst [vmem:[#allocation2 + $0x30] sm:$0xff] 0.0
      %223 = vst.msk [vmem:[#allocation2 + $0x38] sm:$0xff] %vm216, 0.0
      %224 = vst [vmem:[#allocation2 + $0x40] sm:$0xff] 0.0
      %225 = vst.msk [vmem:[#allocation2 + $0x48] sm:$0xff] %vm216, 0.0
      %226 = vst [vmem:[#allocation2 + $0x50] sm:$0xff] 0.0
      %227 = vst.msk [vmem:[#allocation2 + $0x58] sm:$0xff] %vm216, 0.0
      %228 = vst [vmem:[#allocation2 + $0x60] sm:$0xff] 0.0
      %229 = vst.msk [vmem:[#allocation2 + $0x68] sm:$0xff] %vm216, 0.0
      %230 = vst [vmem:[#allocation2 + $0x70] sm:$0xff] 0.0
      %231 = vst.msk [vmem:[#allocation2 + $0x78] sm:$0xff] %vm216, 0.0
      %232 = vst [vmem:[#allocation2 + $0x80] sm:$0xff] 0.0
      %233 = vst.msk [vmem:[#allocation2 + $0x88] sm:$0xff] %vm216, 0.0
      %234 = vst [vmem:[#allocation2 + $0x90] sm:$0xff] 0.0
      %235 = vst.msk [vmem:[#allocation2 + $0x98] sm:$0xff] %vm216, 0.0
      %236 = vst [vmem:[#allocation2 + $0xa0] sm:$0xff] 0.0
      %237 = vst.msk [vmem:[#allocation2 + $0xa8] sm:$0xff] %vm216, 0.0
      %238 = vst [vmem:[#allocation2 + $0xb0] sm:$0xff] 0.0
      %239 = vst.msk [vmem:[#allocation2 + $0xb8] sm:$0xff] %vm216, 0.0
      %240 = vst [vmem:[#allocation2 + $0xc0] sm:$0xff] 0.0
      %241 = vst.msk [vmem:[#allocation2 + $0xc8] sm:$0xff] %vm216, 0.0
      %242 = vst [vmem:[#allocation2 + $0xd0] sm:$0xff] 0.0
      %243 = vst.msk [vmem:[#allocation2 + $0xd8] sm:$0xff] %vm216, 0.0
      %244 = vst [vmem:[#allocation2 + $0xe0] sm:$0xff] 0.0
      %245 = vst.msk [vmem:[#allocation2 + $0xe8] sm:$0xff] %vm216, 0.0
      %246 = vst [vmem:[#allocation2 + $0xf0] sm:$0xff] 0.0
      %247 = vst.msk [vmem:[#allocation2 + $0xf8] sm:$0xff] %vm216, 0.0
      %248 = vst [vmem:[#allocation2 + $0x100] sm:$0xff] 0.0
      %249 = vst.msk [vmem:[#allocation2 + $0x108] sm:$0xff] %vm216, 0.0
      %250 = vst [vmem:[#allocation2 + $0x110] sm:$0xff] 0.0
      %251 = vst.msk [vmem:[#allocation2 + $0x118] sm:$0xff] %vm216, 0.0
      %252 = vst [vmem:[#allocation2 + $0x120] sm:$0xff] 0.0
      %253 = vst.msk [vmem:[#allocation2 + $0x128] sm:$0xff] %vm216, 0.0
      %254 = vst [vmem:[#allocation2 + $0x130] sm:$0xff] 0.0
      %255 = vst.msk [vmem:[#allocation2 + $0x138] sm:$0xff] %vm216, 0.0
      %256 = vst [vmem:[#allocation2 + $0x140] sm:$0xff] 0.0
      %257 = vst.msk [vmem:[#allocation2 + $0x148] sm:$0xff] %vm216, 0.0
      %258 = vst [vmem:[#allocation2 + $0x150] sm:$0xff] 0.0
      %259 = vst.msk [vmem:[#allocation2 + $0x158] sm:$0xff] %vm216, 0.0
      %260 = vst [vmem:[#allocation2 + $0x160] sm:$0xff] 0.0
      %261 = vst.msk [vmem:[#allocation2 + $0x168] sm:$0xff] %vm216, 0.0
      %262 = vst [vmem:[#allocation2 + $0x170] sm:$0xff] 0.0
      %263 = vst.msk [vmem:[#allocation2 + $0x178] sm:$0xff] %vm216, 0.0
      %264 = vst [vmem:[#allocation2 + $0x180] sm:$0xff] 0.0
      %265 = vst.msk [vmem:[#allocation2 + $0x188] sm:$0xff] %vm216, 0.0
      %266 = vst [vmem:[#allocation2 + $0x190] sm:$0xff] 0.0
      %267 = vst.msk [vmem:[#allocation2 + $0x198] sm:$0xff] %vm216, 0.0
      %268 = vst [vmem:[#allocation2 + $0x1a0] sm:$0xff] 0.0
      %269 = vst.msk [vmem:[#allocation2 + $0x1a8] sm:$0xff] %vm216, 0.0
      %270 = vst [vmem:[#allocation2 + $0x1b0] sm:$0xff] 0.0
      %271 = vst.msk [vmem:[#allocation2 + $0x1b8] sm:$0xff] %vm216, 0.0
      %272 = vst [vmem:[#allocation2 + $0x1c0] sm:$0xff] 0.0
      %273 = vst.msk [vmem:[#allocation2 + $0x1c8] sm:$0xff] %vm216, 0.0
      %274 = vst [vmem:[#allocation2 + $0x1d0] sm:$0xff] 0.0
      %275 = vst.msk [vmem:[#allocation2 + $0x1d8] sm:$0xff] %vm216, 0.0
      %276 = vst [vmem:[#allocation2 + $0x1e0] sm:$0xff] 0.0
      %277 = vst.msk [vmem:[#allocation2 + $0x1e8] sm:$0xff] %vm216, 0.0
      %278 = vst [vmem:[#allocation2 + $0x1f0] sm:$0xff] 0.0
      %279 = vst.msk [vmem:[#allocation2 + $0x1f8] sm:$0xff] %vm216, 0.0
      %vm310 = vcmask 1040384
      %v311 = vrot.slane %v183, 7
      %v312 = vrot.slane %v184, 7
      %v313 = vsel %vm310, %v311, %v312
      %v314 = vrot.slane %v185, 7
      %v315 = vrot.slane %v186, 7
      %v316 = vsel %vm310, %v314, %v315
      %v317 = vrot.slane %v187, 7
      %v318 = vrot.slane %v188, 7
      %v319 = vsel %vm310, %v317, %v318
      %v320 = vrot.slane %v189, 7
      %v321 = vrot.slane %v190, 7
      %v322 = vsel %vm310, %v320, %v321
      %v323 = vrot.slane %v191, 7
      %v324 = vrot.slane %v192, 7
      %v325 = vsel %vm310, %v323, %v324
      %v326 = vrot.slane %v193, 7
      %v327 = vrot.slane %v194, 7
      %v328 = vsel %vm310, %v326, %v327
      %v329 = vrot.slane %v195, 7
      %v330 = vrot.slane %v196, 7
      %v331 = vsel %vm310, %v329, %v330
      %v332 = vrot.slane %v197, 7
      %v333 = vrot.slane %v198, 7
      %v334 = vsel %vm310, %v332, %v333
      %v335 = vrot.slane %v199, 7
      %v336 = vrot.slane %v200, 7
      %v337 = vsel %vm310, %v335, %v336
      %v338 = vrot.slane %v201, 7
      %v339 = vrot.slane %v202, 7
      %v340 = vsel %vm310, %v338, %v339
      %v341 = vrot.slane %v203, 7
      %v342 = vrot.slane %v204, 7
      %v343 = vsel %vm310, %v341, %v342
      %v344 = vrot.slane %v205, 7
      %v345 = vrot.slane %v206, 7
      %v346 = vsel %vm310, %v344, %v345
      %v347 = vrot.slane %v207, 7
      %v348 = vrot.slane %v208, 7
      %v349 = vsel %vm310, %v347, %v348
      %v350 = vrot.slane %v209, 7
      %v351 = vrot.slane %v210, 7
      %v352 = vsel %vm310, %v350, %v351
      %v353 = vrot.slane %v211, 7
      %v354 = vrot.slane %v212, 7
      %v355 = vsel %vm310, %v353, %v354
      %s386 = scalar_lea.vmem [#allocation2], 32
      %vm387 = vcmask 130049
      %388 = vst.msk [vmem:[%s386] sm:$0xfe] %vm387, %v311
      %389 = vst.msk [vmem:[%s386 + $0x10] sm:$0xff] %vm216, %v313
      %390 = vst.msk [vmem:[%s386 + $0x20] sm:$0xfe] %vm387, %v314
      %391 = vst.msk [vmem:[%s386 + $0x30] sm:$0xff] %vm216, %v316
      %392 = vst.msk [vmem:[%s386 + $0x40] sm:$0xfe] %vm387, %v317
      %393 = vst.msk [vmem:[%s386 + $0x50] sm:$0xff] %vm216, %v319
      %394 = vst.msk [vmem:[%s386 + $0x60] sm:$0xfe] %vm387, %v320
      %395 = vst.msk [vmem:[%s386 + $0x70] sm:$0xff] %vm216, %v322
      %396 = vst.msk [vmem:[%s386 + $0x80] sm:$0xfe] %vm387, %v323
      %397 = vst.msk [vmem:[%s386 + $0x90] sm:$0xff] %vm216, %v325
      %398 = vst.msk [vmem:[%s386 + $0xa0] sm:$0xfe] %vm387, %v326
      %399 = vst.msk [vmem:[%s386 + $0xb0] sm:$0xff] %vm216, %v328
      %400 = vst.msk [vmem:[%s386 + $0xc0] sm:$0xfe] %vm387, %v329
      %401 = vst.msk [vmem:[%s386 + $0xd0] sm:$0xff] %vm216, %v331
      %402 = vst.msk [vmem:[%s386 + $0xe0] sm:$0xfe] %vm387, %v332
      %403 = vst.msk [vmem:[%s386 + $0xf0] sm:$0xff] %vm216, %v334
      %404 = vst.msk [vmem:[%s386 + $0x100] sm:$0xfe] %vm387, %v335
      %405 = vst.msk [vmem:[%s386 + $0x110] sm:$0xff] %vm216, %v337
      %406 = vst.msk [vmem:[%s386 + $0x120] sm:$0xfe] %vm387, %v338
      %407 = vst.msk [vmem:[%s386 + $0x130] sm:$0xff] %vm216, %v340
      %408 = vst.msk [vmem:[%s386 + $0x140] sm:$0xfe] %vm387, %v341
      %409 = vst.msk [vmem:[%s386 + $0x150] sm:$0xff] %vm216, %v343
      %410 = vst.msk [vmem:[%s386 + $0x160] sm:$0xfe] %vm387, %v344
      %411 = vst.msk [vmem:[%s386 + $0x170] sm:$0xff] %vm216, %v346
      %412 = vst.msk [vmem:[%s386 + $0x180] sm:$0xfe] %vm387, %v347
      %413 = vst.msk [vmem:[%s386 + $0x190] sm:$0xff] %vm216, %v349
      %414 = vst.msk [vmem:[%s386 + $0x1a0] sm:$0xfe] %vm387, %v350
      %415 = vst.msk [vmem:[%s386 + $0x1b0] sm:$0xff] %vm216, %v352
      %416 = vst.msk [vmem:[%s386 + $0x1c0] sm:$0xfe] %vm387, %v353
      %417 = vst.msk [vmem:[%s386 + $0x1d0] sm:$0xff] %vm216, %v355
      %418 = vrot.lane.b32.xlu0 %v183, 16
      %v419 = vpop.permute.xlu0 %418
      %420 = vrot.lane.b32.xlu0 %v184, 16
      %v421 = vpop.permute.xlu0 %420
      %422 = vrot.lane.b32.xlu0 %v185, 16
      %v423 = vpop.permute.xlu0 %422
      %424 = vrot.lane.b32.xlu0 %v186, 16
      %v425 = vpop.permute.xlu0 %424
      %426 = vrot.lane.b32.xlu0 %v187, 16
      %v427 = vpop.permute.xlu0 %426
      %428 = vrot.lane.b32.xlu0 %v188, 16
      %v429 = vpop.permute.xlu0 %428
      %430 = vrot.lane.b32.xlu0 %v189, 16
      %v431 = vpop.permute.xlu0 %430
      %432 = vrot.lane.b32.xlu0 %v190, 16
      %v433 = vpop.permute.xlu0 %432
      %434 = vrot.lane.b32.xlu0 %v191, 16
      %v435 = vpop.permute.xlu0 %434
      %436 = vrot.lane.b32.xlu0 %v192, 16
      %v437 = vpop.permute.xlu0 %436
      %438 = vrot.lane.b32.xlu0 %v193, 16
      %v439 = vpop.permute.xlu0 %438
      %440 = vrot.lane.b32.xlu0 %v194, 16
      %v441 = vpop.permute.xlu0 %440
      %442 = vrot.lane.b32.xlu0 %v195, 16
      %v443 = vpop.permute.xlu0 %442
      %444 = vrot.lane.b32.xlu0 %v196, 16
      %v445 = vpop.permute.xlu0 %444
      %446 = vrot.lane.b32.xlu0 %v197, 16
      %v447 = vpop.permute.xlu0 %446
      %448 = vrot.lane.b32.xlu0 %v198, 16
      %v449 = vpop.permute.xlu0 %448
      %450 = vrot.lane.b32.xlu0 %v199, 16
      %v451 = vpop.permute.xlu0 %450
      %452 = vrot.lane.b32.xlu0 %v200, 16
      %v453 = vpop.permute.xlu0 %452
      %454 = vrot.lane.b32.xlu0 %v201, 16
      %v455 = vpop.permute.xlu0 %454
      %456 = vrot.lane.b32.xlu0 %v202, 16
      %v457 = vpop.permute.xlu0 %456
      %458 = vrot.lane.b32.xlu0 %v203, 16
      %v459 = vpop.permute.xlu0 %458
      %460 = vrot.lane.b32.xlu0 %v204, 16
      %v461 = vpop.permute.xlu0 %460
      %462 = vrot.lane.b32.xlu0 %v205, 16
      %v463 = vpop.permute.xlu0 %462
      %464 = vrot.lane.b32.xlu0 %v206, 16
      %v465 = vpop.permute.xlu0 %464
      %466 = vrot.lane.b32.xlu0 %v207, 16
      %v467 = vpop.permute.xlu0 %466
      %468 = vrot.lane.b32.xlu0 %v208, 16
      %v469 = vpop.permute.xlu0 %468
      %470 = vrot.lane.b32.xlu0 %v209, 16
      %v471 = vpop.permute.xlu0 %470
      %472 = vrot.lane.b32.xlu0 %v210, 16
      %v473 = vpop.permute.xlu0 %472
      %474 = vrot.lane.b32.xlu0 %v211, 16
      %v475 = vpop.permute.xlu0 %474
      %476 = vrot.lane.b32.xlu0 %v212, 16
      %v477 = vpop.permute.xlu0 %476
      %vm508 = vcmask 261248
      %509 = vst.msk [vmem:[%s386] sm:$0xff] %vm508, %v419
      %510 = vst.msk [vmem:[%s386 + $0x10] sm:$0xff] %vm508, %v421
      %511 = vst.msk [vmem:[%s386 + $0x20] sm:$0xff] %vm508, %v423
      %512 = vst.msk [vmem:[%s386 + $0x30] sm:$0xff] %vm508, %v425
      %513 = vst.msk [vmem:[%s386 + $0x40] sm:$0xff] %vm508, %v427
      %514 = vst.msk [vmem:[%s386 + $0x50] sm:$0xff] %vm508, %v429
      %515 = vst.msk [vmem:[%s386 + $0x60] sm:$0xff] %vm508, %v431
      %516 = vst.msk [vmem:[%s386 + $0x70] sm:$0xff] %vm508, %v433
      %517 = vst.msk [vmem:[%s386 + $0x80] sm:$0xff] %vm508, %v435
      %518 = vst.msk [vmem:[%s386 + $0x90] sm:$0xff] %vm508, %v437
      %519 = vst.msk [vmem:[%s386 + $0xa0] sm:$0xff] %vm508, %v439
      %520 = vst.msk [vmem:[%s386 + $0xb0] sm:$0xff] %vm508, %v441
      %521 = vst.msk [vmem:[%s386 + $0xc0] sm:$0xff] %vm508, %v443
      %522 = vst.msk [vmem:[%s386 + $0xd0] sm:$0xff] %vm508, %v445
      %523 = vst.msk [vmem:[%s386 + $0xe0] sm:$0xff] %vm508, %v447
      %524 = vst.msk [vmem:[%s386 + $0xf0] sm:$0xff] %vm508, %v449
      %525 = vst.msk [vmem:[%s386 + $0x100] sm:$0xff] %vm508, %v451
      %526 = vst.msk [vmem:[%s386 + $0x110] sm:$0xff] %vm508, %v453
      %527 = vst.msk [vmem:[%s386 + $0x120] sm:$0xff] %vm508, %v455
      %528 = vst.msk [vmem:[%s386 + $0x130] sm:$0xff] %vm508, %v457
      %529 = vst.msk [vmem:[%s386 + $0x140] sm:$0xff] %vm508, %v459
      %530 = vst.msk [vmem:[%s386 + $0x150] sm:$0xff] %vm508, %v461
      %531 = vst.msk [vmem:[%s386 + $0x160] sm:$0xff] %vm508, %v463
      %532 = vst.msk [vmem:[%s386 + $0x170] sm:$0xff] %vm508, %v465
      %533 = vst.msk [vmem:[%s386 + $0x180] sm:$0xff] %vm508, %v467
      %534 = vst.msk [vmem:[%s386 + $0x190] sm:$0xff] %vm508, %v469
      %535 = vst.msk [vmem:[%s386 + $0x1a0] sm:$0xff] %vm508, %v471
      %536 = vst.msk [vmem:[%s386 + $0x1b0] sm:$0xff] %vm508, %v473
      %537 = vst.msk [vmem:[%s386 + $0x1c0] sm:$0xff] %vm508, %v475
      %538 = vst.msk [vmem:[%s386 + $0x1d0] sm:$0xff] %vm508, %v477
      %vm539 = vcmask 1046528
      %v540 = vrot.slane %v183, 1
      %v541 = vrot.slane %v184, 1
      %v542 = vsel %vm539, %v540, %v541
      %v543 = vrot.slane %v185, 1
      %v544 = vrot.slane %v186, 1
      %v545 = vsel %vm539, %v543, %v544
      %v546 = vrot.slane %v187, 1
      %v547 = vrot.slane %v188, 1
      %v548 = vsel %vm539, %v546, %v547
      %v549 = vrot.slane %v189, 1
      %v550 = vrot.slane %v190, 1
      %v551 = vsel %vm539, %v549, %v550
      %v552 = vrot.slane %v191, 1
      %v553 = vrot.slane %v192, 1
      %v554 = vsel %vm539, %v552, %v553
      %v555 = vrot.slane %v193, 1
      %v556 = vrot.slane %v194, 1
      %v557 = vsel %vm539, %v555, %v556
      %v558 = vrot.slane %v195, 1
      %v559 = vrot.slane %v196, 1
      %v560 = vsel %vm539, %v558, %v559
      %v561 = vrot.slane %v197, 1
      %v562 = vrot.slane %v198, 1
      %v563 = vsel %vm539, %v561, %v562
      %v564 = vrot.slane %v199, 1
      %v565 = vrot.slane %v200, 1
      %v566 = vsel %vm539, %v564, %v565
      %v567 = vrot.slane %v201, 1
      %v568 = vrot.slane %v202, 1
      %v569 = vsel %vm539, %v567, %v568
      %v570 = vrot.slane %v203, 1
      %v571 = vrot.slane %v204, 1
      %v572 = vsel %vm539, %v570, %v571
      %v573 = vrot.slane %v205, 1
      %v574 = vrot.slane %v206, 1
      %v575 = vsel %vm539, %v573, %v574
      %v576 = vrot.slane %v207, 1
      %v577 = vrot.slane %v208, 1
      %v578 = vsel %vm539, %v576, %v577
      %v579 = vrot.slane %v209, 1
      %v580 = vrot.slane %v210, 1
      %v581 = vsel %vm539, %v579, %v580
      %v582 = vrot.slane %v211, 1
      %v583 = vrot.slane %v212, 1
      %v584 = vsel %vm539, %v582, %v583
      %585 = vrot.lane.b32.xlu0 %v542, 32
      %v586 = vpop.permute.xlu0 %585
      %587 = vrot.lane.b32.xlu0 %v541, 32
      %v588 = vpop.permute.xlu0 %587
      %589 = vrot.lane.b32.xlu0 %v545, 32
      %v590 = vpop.permute.xlu0 %589
      %591 = vrot.lane.b32.xlu0 %v544, 32
      %v592 = vpop.permute.xlu0 %591
      %593 = vrot.lane.b32.xlu0 %v548, 32
      %v594 = vpop.permute.xlu0 %593
      %595 = vrot.lane.b32.xlu0 %v547, 32
      %v596 = vpop.permute.xlu0 %595
      %597 = vrot.lane.b32.xlu0 %v551, 32
      %v598 = vpop.permute.xlu0 %597
      %599 = vrot.lane.b32.xlu0 %v550, 32
      %v600 = vpop.permute.xlu0 %599
      %601 = vrot.lane.b32.xlu0 %v554, 32
      %v602 = vpop.permute.xlu0 %601
      %603 = vrot.lane.b32.xlu0 %v553, 32
      %v604 = vpop.permute.xlu0 %603
      %605 = vrot.lane.b32.xlu0 %v557, 32
      %v606 = vpop.permute.xlu0 %605
      %607 = vrot.lane.b32.xlu0 %v556, 32
      %v608 = vpop.permute.xlu0 %607
      %609 = vrot.lane.b32.xlu0 %v560, 32
      %v610 = vpop.permute.xlu0 %609
      %611 = vrot.lane.b32.xlu0 %v559, 32
      %v612 = vpop.permute.xlu0 %611
      %613 = vrot.lane.b32.xlu0 %v563, 32
      %v614 = vpop.permute.xlu0 %613
      %615 = vrot.lane.b32.xlu0 %v562, 32
      %v616 = vpop.permute.xlu0 %615
      %617 = vrot.lane.b32.xlu0 %v566, 32
      %v618 = vpop.permute.xlu0 %617
      %619 = vrot.lane.b32.xlu0 %v565, 32
      %v620 = vpop.permute.xlu0 %619
      %621 = vrot.lane.b32.xlu0 %v569, 32
      %v622 = vpop.permute.xlu0 %621
      %623 = vrot.lane.b32.xlu0 %v568, 32
      %v624 = vpop.permute.xlu0 %623
      %625 = vrot.lane.b32.xlu0 %v572, 32
      %v626 = vpop.permute.xlu0 %625
      %627 = vrot.lane.b32.xlu0 %v571, 32
      %v628 = vpop.permute.xlu0 %627
      %629 = vrot.lane.b32.xlu0 %v575, 32
      %v630 = vpop.permute.xlu0 %629
      %631 = vrot.lane.b32.xlu0 %v574, 32
      %v632 = vpop.permute.xlu0 %631
      %633 = vrot.lane.b32.xlu0 %v578, 32
      %v634 = vpop.permute.xlu0 %633
      %635 = vrot.lane.b32.xlu0 %v577, 32
      %v636 = vpop.permute.xlu0 %635
      %637 = vrot.lane.b32.xlu0 %v581, 32
      %v638 = vpop.permute.xlu0 %637
      %639 = vrot.lane.b32.xlu0 %v580, 32
      %v640 = vpop.permute.xlu0 %639
      %641 = vrot.lane.b32.xlu0 %v584, 32
      %v642 = vpop.permute.xlu0 %641
      %643 = vrot.lane.b32.xlu0 %v583, 32
      %v644 = vpop.permute.xlu0 %643
      %vm675 = vcmask 392448
      %676 = vst.msk [vmem:[%s386] sm:$0xff] %vm675, %v586
      %vm677 = vcmask 391424
      %678 = vst.msk [vmem:[%s386 + $0x10] sm:$0x7f] %vm677, %v588
      %679 = vst.msk [vmem:[%s386 + $0x20] sm:$0xff] %vm675, %v590
      %680 = vst.msk [vmem:[%s386 + $0x30] sm:$0x7f] %vm677, %v592
      %681 = vst.msk [vmem:[%s386 + $0x40] sm:$0xff] %vm675, %v594
      %682 = vst.msk [vmem:[%s386 + $0x50] sm:$0x7f] %vm677, %v596
      %683 = vst.msk [vmem:[%s386 + $0x60] sm:$0xff] %vm675, %v598
      %684 = vst.msk [vmem:[%s386 + $0x70] sm:$0x7f] %vm677, %v600
      %685 = vst.msk [vmem:[%s386 + $0x80] sm:$0xff] %vm675, %v602
      %686 = vst.msk [vmem:[%s386 + $0x90] sm:$0x7f] %vm677, %v604
      %687 = vst.msk [vmem:[%s386 + $0xa0] sm:$0xff] %vm675, %v606
      %688 = vst.msk [vmem:[%s386 + $0xb0] sm:$0x7f] %vm677, %v608
      %689 = vst.msk [vmem:[%s386 + $0xc0] sm:$0xff] %vm675, %v610
      %690 = vst.msk [vmem:[%s386 + $0xd0] sm:$0x7f] %vm677, %v612
      %691 = vst.msk [vmem:[%s386 + $0xe0] sm:$0xff] %vm675, %v614
      %692 = vst.msk [vmem:[%s386 + $0xf0] sm:$0x7f] %vm677, %v616
      %693 = vst.msk [vmem:[%s386 + $0x100] sm:$0xff] %vm675, %v618
      %694 = vst.msk [vmem:[%s386 + $0x110] sm:$0x7f] %vm677, %v620
      %695 = vst.msk [vmem:[%s386 + $0x120] sm:$0xff] %vm675, %v622
      %696 = vst.msk [vmem:[%s386 + $0x130] sm:$0x7f] %vm677, %v624
      %697 = vst.msk [vmem:[%s386 + $0x140] sm:$0xff] %vm675, %v626
      %698 = vst.msk [vmem:[%s386 + $0x150] sm:$0x7f] %vm677, %v628
      %699 = vst.msk [vmem:[%s386 + $0x160] sm:$0xff] %vm675, %v630
      %700 = vst.msk [vmem:[%s386 + $0x170] sm:$0x7f] %vm677, %v632
      %701 = vst.msk [vmem:[%s386 + $0x180] sm:$0xff] %vm675, %v634
      %702 = vst.msk [vmem:[%s386 + $0x190] sm:$0x7f] %vm677, %v636
      %703 = vst.msk [vmem:[%s386 + $0x1a0] sm:$0xff] %vm675, %v638
      %704 = vst.msk [vmem:[%s386 + $0x1b0] sm:$0x7f] %vm677, %v640
      %705 = vst.msk [vmem:[%s386 + $0x1c0] sm:$0xff] %vm675, %v642
      %706 = vst.msk [vmem:[%s386 + $0x1d0] sm:$0x7f] %vm677, %v644
      %v709 = vrot.slane %v213, 7
      %v710 = vrot.slane %v214, 7
      %v711 = vsel %vm310, %v709, %v710
      %712 = vrot.lane.b32.xlu0 %v311, 48
      %v713 = vpop.permute.xlu0 %712
      %714 = vrot.lane.b32.xlu0 %v313, 48
      %v715 = vpop.permute.xlu0 %714
      %716 = vrot.lane.b32.xlu0 %v314, 48
      %v717 = vpop.permute.xlu0 %716
      %718 = vrot.lane.b32.xlu0 %v316, 48
      %v719 = vpop.permute.xlu0 %718
      %720 = vrot.lane.b32.xlu0 %v317, 48
      %v721 = vpop.permute.xlu0 %720
      %722 = vrot.lane.b32.xlu0 %v319, 48
      %v723 = vpop.permute.xlu0 %722
      %724 = vrot.lane.b32.xlu0 %v320, 48
      %v725 = vpop.permute.xlu0 %724
      %726 = vrot.lane.b32.xlu0 %v322, 48
      %v727 = vpop.permute.xlu0 %726
      %728 = vrot.lane.b32.xlu0 %v323, 48
      %v729 = vpop.permute.xlu0 %728
      %730 = vrot.lane.b32.xlu0 %v325, 48
      %v731 = vpop.permute.xlu0 %730
      %732 = vrot.lane.b32.xlu0 %v326, 48
      %v733 = vpop.permute.xlu0 %732
      %734 = vrot.lane.b32.xlu0 %v328, 48
      %v735 = vpop.permute.xlu0 %734
      %736 = vrot.lane.b32.xlu0 %v329, 48
      %v737 = vpop.permute.xlu0 %736
      %738 = vrot.lane.b32.xlu0 %v331, 48
      %v739 = vpop.permute.xlu0 %738
      %740 = vrot.lane.b32.xlu0 %v332, 48
      %v741 = vpop.permute.xlu0 %740
      %742 = vrot.lane.b32.xlu0 %v334, 48
      %v743 = vpop.permute.xlu0 %742
      %744 = vrot.lane.b32.xlu0 %v335, 48
      %v745 = vpop.permute.xlu0 %744
      %746 = vrot.lane.b32.xlu0 %v337, 48
      %v747 = vpop.permute.xlu0 %746
      %748 = vrot.lane.b32.xlu0 %v338, 48
      %v749 = vpop.permute.xlu0 %748
      %750 = vrot.lane.b32.xlu0 %v340, 48
      %v751 = vpop.permute.xlu0 %750
      %752 = vrot.lane.b32.xlu0 %v341, 48
      %v753 = vpop.permute.xlu0 %752
      %754 = vrot.lane.b32.xlu0 %v343, 48
      %v755 = vpop.permute.xlu0 %754
      %756 = vrot.lane.b32.xlu0 %v344, 48
      %v757 = vpop.permute.xlu0 %756
      %758 = vrot.lane.b32.xlu0 %v346, 48
      %v759 = vpop.permute.xlu0 %758
      %760 = vrot.lane.b32.xlu0 %v347, 48
      %v761 = vpop.permute.xlu0 %760
      %762 = vrot.lane.b32.xlu0 %v349, 48
      %v763 = vpop.permute.xlu0 %762
      %764 = vrot.lane.b32.xlu0 %v350, 48
      %v765 = vpop.permute.xlu0 %764
      %766 = vrot.lane.b32.xlu0 %v352, 48
      %v767 = vpop.permute.xlu0 %766
      %768 = vrot.lane.b32.xlu0 %v353, 48
      %v769 = vpop.permute.xlu0 %768
      %770 = vrot.lane.b32.xlu0 %v355, 48
      %v771 = vpop.permute.xlu0 %770
      %772 = vrot.lane.b32.xlu0 %v709, 48
      %v773 = vpop.permute.xlu0 %772
      %774 = vrot.lane.b32.xlu0 %v711, 48
      %v775 = vpop.permute.xlu0 %774
      %vm808 = vcmask 523649
      %809 = vst.msk [vmem:[#allocation2] sm:$0xfe] %vm808, %v713
      %vm810 = vcmask 523648
      %811 = vst.msk [vmem:[#allocation2 + $0x10] sm:$0xff] %vm810, %v715
      %812 = vst.msk [vmem:[#allocation2 + $0x20] sm:$0xfe] %vm808, %v717
      %813 = vst.msk [vmem:[#allocation2 + $0x30] sm:$0xff] %vm810, %v719
      %814 = vst.msk [vmem:[#allocation2 + $0x40] sm:$0xfe] %vm808, %v721
      %815 = vst.msk [vmem:[#allocation2 + $0x50] sm:$0xff] %vm810, %v723
      %816 = vst.msk [vmem:[#allocation2 + $0x60] sm:$0xfe] %vm808, %v725
      %817 = vst.msk [vmem:[#allocation2 + $0x70] sm:$0xff] %vm810, %v727
      %818 = vst.msk [vmem:[#allocation2 + $0x80] sm:$0xfe] %vm808, %v729
      %819 = vst.msk [vmem:[#allocation2 + $0x90] sm:$0xff] %vm810, %v731
      %820 = vst.msk [vmem:[#allocation2 + $0xa0] sm:$0xfe] %vm808, %v733
      %821 = vst.msk [vmem:[#allocation2 + $0xb0] sm:$0xff] %vm810, %v735
      %822 = vst.msk [vmem:[#allocation2 + $0xc0] sm:$0xfe] %vm808, %v737
      %823 = vst.msk [vmem:[#allocation2 + $0xd0] sm:$0xff] %vm810, %v739
      %824 = vst.msk [vmem:[#allocation2 + $0xe0] sm:$0xfe] %vm808, %v741
      %825 = vst.msk [vmem:[#allocation2 + $0xf0] sm:$0xff] %vm810, %v743
      %826 = vst.msk [vmem:[#allocation2 + $0x100] sm:$0xfe] %vm808, %v745
      %827 = vst.msk [vmem:[#allocation2 + $0x110] sm:$0xff] %vm810, %v747
      %828 = vst.msk [vmem:[#allocation2 + $0x120] sm:$0xfe] %vm808, %v749
      %829 = vst.msk [vmem:[#allocation2 + $0x130] sm:$0xff] %vm810, %v751
      %830 = vst.msk [vmem:[#allocation2 + $0x140] sm:$0xfe] %vm808, %v753
      %831 = vst.msk [vmem:[#allocation2 + $0x150] sm:$0xff] %vm810, %v755
      %832 = vst.msk [vmem:[#allocation2 + $0x160] sm:$0xfe] %vm808, %v757
      %833 = vst.msk [vmem:[#allocation2 + $0x170] sm:$0xff] %vm810, %v759
      %834 = vst.msk [vmem:[#allocation2 + $0x180] sm:$0xfe] %vm808, %v761
      %835 = vst.msk [vmem:[#allocation2 + $0x190] sm:$0xff] %vm810, %v763
      %836 = vst.msk [vmem:[#allocation2 + $0x1a0] sm:$0xfe] %vm808, %v765
      %837 = vst.msk [vmem:[#allocation2 + $0x1b0] sm:$0xff] %vm810, %v767
      %838 = vst.msk [vmem:[#allocation2 + $0x1c0] sm:$0xfe] %vm808, %v769
      %839 = vst.msk [vmem:[#allocation2 + $0x1d0] sm:$0xff] %vm810, %v771
      %840 = vst.msk [vmem:[#allocation2 + $0x1e0] sm:$0xfe] %vm808, %v773
      %841 = vst.msk [vmem:[#allocation2 + $0x1f0] sm:$0xff] %vm810, %v775
      %842 = vrot.lane.b32.xlu0 %v183, 64
      %v843 = vpop.permute.xlu0 %842
      %844 = vrot.lane.b32.xlu0 %v184, 64
      %v845 = vpop.permute.xlu0 %844
      %846 = vrot.lane.b32.xlu0 %v185, 64
      %v847 = vpop.permute.xlu0 %846
      %848 = vrot.lane.b32.xlu0 %v186, 64
      %v849 = vpop.permute.xlu0 %848
      %850 = vrot.lane.b32.xlu0 %v187, 64
      %v851 = vpop.permute.xlu0 %850
      %852 = vrot.lane.b32.xlu0 %v188, 64
      %v853 = vpop.permute.xlu0 %852
      %854 = vrot.lane.b32.xlu0 %v189, 64
      %v855 = vpop.permute.xlu0 %854
      %856 = vrot.lane.b32.xlu0 %v190, 64
      %v857 = vpop.permute.xlu0 %856
      %858 = vrot.lane.b32.xlu0 %v191, 64
      %v859 = vpop.permute.xlu0 %858
      %860 = vrot.lane.b32.xlu0 %v192, 64
      %v861 = vpop.permute.xlu0 %860
      %862 = vrot.lane.b32.xlu0 %v193, 64
      %v863 = vpop.permute.xlu0 %862
      %864 = vrot.lane.b32.xlu0 %v194, 64
      %v865 = vpop.permute.xlu0 %864
      %866 = vrot.lane.b32.xlu0 %v195, 64
      %v867 = vpop.permute.xlu0 %866
      %868 = vrot.lane.b32.xlu0 %v196, 64
      %v869 = vpop.permute.xlu0 %868
      %870 = vrot.lane.b32.xlu0 %v197, 64
      %v871 = vpop.permute.xlu0 %870
      %872 = vrot.lane.b32.xlu0 %v198, 64
      %v873 = vpop.permute.xlu0 %872
      %874 = vrot.lane.b32.xlu0 %v199, 64
      %v875 = vpop.permute.xlu0 %874
      %876 = vrot.lane.b32.xlu0 %v200, 64
      %v877 = vpop.permute.xlu0 %876
      %878 = vrot.lane.b32.xlu0 %v201, 64
      %v879 = vpop.permute.xlu0 %878
      %880 = vrot.lane.b32.xlu0 %v202, 64
      %v881 = vpop.permute.xlu0 %880
      %882 = vrot.lane.b32.xlu0 %v203, 64
      %v883 = vpop.permute.xlu0 %882
      %884 = vrot.lane.b32.xlu0 %v204, 64
      %v885 = vpop.permute.xlu0 %884
      %886 = vrot.lane.b32.xlu0 %v205, 64
      %v887 = vpop.permute.xlu0 %886
      %888 = vrot.lane.b32.xlu0 %v206, 64
      %v889 = vpop.permute.xlu0 %888
      %890 = vrot.lane.b32.xlu0 %v207, 64
      %v891 = vpop.permute.xlu0 %890
      %892 = vrot.lane.b32.xlu0 %v208, 64
      %v893 = vpop.permute.xlu0 %892
      %894 = vrot.lane.b32.xlu0 %v209, 64
      %v895 = vpop.permute.xlu0 %894
      %896 = vrot.lane.b32.xlu0 %v210, 64
      %v897 = vpop.permute.xlu0 %896
      %898 = vrot.lane.b32.xlu0 %v211, 64
      %v899 = vpop.permute.xlu0 %898
      %900 = vrot.lane.b32.xlu0 %v212, 64
      %v901 = vpop.permute.xlu0 %900
      %902 = vrot.lane.b32.xlu0 %v213, 64
      %v903 = vpop.permute.xlu0 %902
      %904 = vrot.lane.b32.xlu0 %v214, 64
      %v905 = vpop.permute.xlu0 %904
      %vm938 = vcmask 654848
      %939 = vst.msk [vmem:[#allocation2] sm:$0xff] %vm938, %v843
      %940 = vst.msk [vmem:[#allocation2 + $0x10] sm:$0xff] %vm938, %v845
      %941 = vst.msk [vmem:[#allocation2 + $0x20] sm:$0xff] %vm938, %v847
      %942 = vst.msk [vmem:[#allocation2 + $0x30] sm:$0xff] %vm938, %v849
      %943 = vst.msk [vmem:[#allocation2 + $0x40] sm:$0xff] %vm938, %v851
      %944 = vst.msk [vmem:[#allocation2 + $0x50] sm:$0xff] %vm938, %v853
      %945 = vst.msk [vmem:[#allocation2 + $0x60] sm:$0xff] %vm938, %v855
      %946 = vst.msk [vmem:[#allocation2 + $0x70] sm:$0xff] %vm938, %v857
      %947 = vst.msk [vmem:[#allocation2 + $0x80] sm:$0xff] %vm938, %v859
      %948 = vst.msk [vmem:[#allocation2 + $0x90] sm:$0xff] %vm938, %v861
      %949 = vst.msk [vmem:[#allocation2 + $0xa0] sm:$0xff] %vm938, %v863
      %950 = vst.msk [vmem:[#allocation2 + $0xb0] sm:$0xff] %vm938, %v865
      %951 = vst.msk [vmem:[#allocation2 + $0xc0] sm:$0xff] %vm938, %v867
      %952 = vst.msk [vmem:[#allocation2 + $0xd0] sm:$0xff] %vm938, %v869
      %953 = vst.msk [vmem:[#allocation2 + $0xe0] sm:$0xff] %vm938, %v871
      %954 = vst.msk [vmem:[#allocation2 + $0xf0] sm:$0xff] %vm938, %v873
      %955 = vst.msk [vmem:[#allocation2 + $0x100] sm:$0xff] %vm938, %v875
      %956 = vst.msk [vmem:[#allocation2 + $0x110] sm:$0xff] %vm938, %v877
      %957 = vst.msk [vmem:[#allocation2 + $0x120] sm:$0xff] %vm938, %v879
      %958 = vst.msk [vmem:[#allocation2 + $0x130] sm:$0xff] %vm938, %v881
      %959 = vst.msk [vmem:[#allocation2 + $0x140] sm:$0xff] %vm938, %v883
      %960 = vst.msk [vmem:[#allocation2 + $0x150] sm:$0xff] %vm938, %v885
      %961 = vst.msk [vmem:[#allocation2 + $0x160] sm:$0xff] %vm938, %v887
      %962 = vst.msk [vmem:[#allocation2 + $0x170] sm:$0xff] %vm938, %v889
      %963 = vst.msk [vmem:[#allocation2 + $0x180] sm:$0xff] %vm938, %v891
      %964 = vst.msk [vmem:[#allocation2 + $0x190] sm:$0xff] %vm938, %v893
      %965 = vst.msk [vmem:[#allocation2 + $0x1a0] sm:$0xff] %vm938, %v895
      %966 = vst.msk [vmem:[#allocation2 + $0x1b0] sm:$0xff] %vm938, %v897
      %967 = vst.msk [vmem:[#allocation2 + $0x1c0] sm:$0xff] %vm938, %v899
      %968 = vst.msk [vmem:[#allocation2 + $0x1d0] sm:$0xff] %vm938, %v901
      %969 = vst.msk [vmem:[#allocation2 + $0x1e0] sm:$0xff] %vm938, %v903
      %970 = vst.msk [vmem:[#allocation2 + $0x1f0] sm:$0xff] %vm938, %v905
      %v971 = vrot.slane %v213, 1
      %v972 = vrot.slane %v214, 1
      %v973 = vsel %vm539, %v971, %v972
      %974 = vrot.lane.b32.xlu0 %v542, 80
      %v975 = vpop.permute.xlu0 %974
      %976 = vrot.lane.b32.xlu0 %v541, 80
      %v977 = vpop.permute.xlu0 %976
      %978 = vrot.lane.b32.xlu0 %v545, 80
      %v979 = vpop.permute.xlu0 %978
      %980 = vrot.lane.b32.xlu0 %v544, 80
      %v981 = vpop.permute.xlu0 %980
      %982 = vrot.lane.b32.xlu0 %v548, 80
      %v983 = vpop.permute.xlu0 %982
      %984 = vrot.lane.b32.xlu0 %v547, 80
      %v985 = vpop.permute.xlu0 %984
      %986 = vrot.lane.b32.xlu0 %v551, 80
      %v987 = vpop.permute.xlu0 %986
      %988 = vrot.lane.b32.xlu0 %v550, 80
      %v989 = vpop.permute.xlu0 %988
      %990 = vrot.lane.b32.xlu0 %v554, 80
      %v991 = vpop.permute.xlu0 %990
      %992 = vrot.lane.b32.xlu0 %v553, 80
      %v993 = vpop.permute.xlu0 %992
      %994 = vrot.lane.b32.xlu0 %v557, 80
      %v995 = vpop.permute.xlu0 %994
      %996 = vrot.lane.b32.xlu0 %v556, 80
      %v997 = vpop.permute.xlu0 %996
      %998 = vrot.lane.b32.xlu0 %v560, 80
      %v999 = vpop.permute.xlu0 %998
      %1000 = vrot.lane.b32.xlu0 %v559, 80
      %v1001 = vpop.permute.xlu0 %1000
      %1002 = vrot.lane.b32.xlu0 %v563, 80
      %v1003 = vpop.permute.xlu0 %1002
      %1004 = vrot.lane.b32.xlu0 %v562, 80
      %v1005 = vpop.permute.xlu0 %1004
      %1006 = vrot.lane.b32.xlu0 %v566, 80
      %v1007 = vpop.permute.xlu0 %1006
      %1008 = vrot.lane.b32.xlu0 %v565, 80
      %v1009 = vpop.permute.xlu0 %1008
      %1010 = vrot.lane.b32.xlu0 %v569, 80
      %v1011 = vpop.permute.xlu0 %1010
      %1012 = vrot.lane.b32.xlu0 %v568, 80
      %v1013 = vpop.permute.xlu0 %1012
      %1014 = vrot.lane.b32.xlu0 %v572, 80
      %v1015 = vpop.permute.xlu0 %1014
      %1016 = vrot.lane.b32.xlu0 %v571, 80
      %v1017 = vpop.permute.xlu0 %1016
      %1018 = vrot.lane.b32.xlu0 %v575, 80
      %v1019 = vpop.permute.xlu0 %1018
      %1020 = vrot.lane.b32.xlu0 %v574, 80
      %v1021 = vpop.permute.xlu0 %1020
      %1022 = vrot.lane.b32.xlu0 %v578, 80
      %v1023 = vpop.permute.xlu0 %1022
      %1024 = vrot.lane.b32.xlu0 %v577, 80
      %v1025 = vpop.permute.xlu0 %1024
      %1026 = vrot.lane.b32.xlu0 %v581, 80
      %v1027 = vpop.permute.xlu0 %1026
      %1028 = vrot.lane.b32.xlu0 %v580, 80
      %v1029 = vpop.permute.xlu0 %1028
      %1030 = vrot.lane.b32.xlu0 %v584, 80
      %v1031 = vpop.permute.xlu0 %1030
      %1032 = vrot.lane.b32.xlu0 %v583, 80
      %v1033 = vpop.permute.xlu0 %1032
      %1034 = vrot.lane.b32.xlu0 %v973, 80
      %v1035 = vpop.permute.xlu0 %1034
      %1036 = vrot.lane.b32.xlu0 %v972, 80
      %v1037 = vpop.permute.xlu0 %1036
      %vm1070 = vcmask 786048
      %1071 = vst.msk [vmem:[#allocation2] sm:$0xff] %vm1070, %v975
      %vm1072 = vcmask 785024
      %1073 = vst.msk [vmem:[#allocation2 + $0x10] sm:$0x7f] %vm1072, %v977
      %1074 = vst.msk [vmem:[#allocation2 + $0x20] sm:$0xff] %vm1070, %v979
      %1075 = vst.msk [vmem:[#allocation2 + $0x30] sm:$0x7f] %vm1072, %v981
      %1076 = vst.msk [vmem:[#allocation2 + $0x40] sm:$0xff] %vm1070, %v983
      %1077 = vst.msk [vmem:[#allocation2 + $0x50] sm:$0x7f] %vm1072, %v985
      %1078 = vst.msk [vmem:[#allocation2 + $0x60] sm:$0xff] %vm1070, %v987
      %1079 = vst.msk [vmem:[#allocation2 + $0x70] sm:$0x7f] %vm1072, %v989
      %1080 = vst.msk [vmem:[#allocation2 + $0x80] sm:$0xff] %vm1070, %v991
      %1081 = vst.msk [vmem:[#allocation2 + $0x90] sm:$0x7f] %vm1072, %v993
      %1082 = vst.msk [vmem:[#allocation2 + $0xa0] sm:$0xff] %vm1070, %v995
      %1083 = vst.msk [vmem:[#allocation2 + $0xb0] sm:$0x7f] %vm1072, %v997
      %1084 = vst.msk [vmem:[#allocation2 + $0xc0] sm:$0xff] %vm1070, %v999
      %1085 = vst.msk [vmem:[#allocation2 + $0xd0] sm:$0x7f] %vm1072, %v1001
      %1086 = vst.msk [vmem:[#allocation2 + $0xe0] sm:$0xff] %vm1070, %v1003
      %1087 = vst.msk [vmem:[#allocation2 + $0xf0] sm:$0x7f] %vm1072, %v1005
      %1088 = vst.msk [vmem:[#allocation2 + $0x100] sm:$0xff] %vm1070, %v1007
      %1089 = vst.msk [vmem:[#allocation2 + $0x110] sm:$0x7f] %vm1072, %v1009
      %1090 = vst.msk [vmem:[#allocation2 + $0x120] sm:$0xff] %vm1070, %v1011
      %1091 = vst.msk [vmem:[#allocation2 + $0x130] sm:$0x7f] %vm1072, %v1013
      %1092 = vst.msk [vmem:[#allocation2 + $0x140] sm:$0xff] %vm1070, %v1015
      %1093 = vst.msk [vmem:[#allocation2 + $0x150] sm:$0x7f] %vm1072, %v1017
      %1094 = vst.msk [vmem:[#allocation2 + $0x160] sm:$0xff] %vm1070, %v1019
      %1095 = vst.msk [vmem:[#allocation2 + $0x170] sm:$0x7f] %vm1072, %v1021
      %1096 = vst.msk [vmem:[#allocation2 + $0x180] sm:$0xff] %vm1070, %v1023
      %1097 = vst.msk [vmem:[#allocation2 + $0x190] sm:$0x7f] %vm1072, %v1025
      %1098 = vst.msk [vmem:[#allocation2 + $0x1a0] sm:$0xff] %vm1070, %v1027
      %1099 = vst.msk [vmem:[#allocation2 + $0x1b0] sm:$0x7f] %vm1072, %v1029
      %1100 = vst.msk [vmem:[#allocation2 + $0x1c0] sm:$0xff] %vm1070, %v1031
      %1101 = vst.msk [vmem:[#allocation2 + $0x1d0] sm:$0x7f] %vm1072, %v1033
      %1102 = vst.msk [vmem:[#allocation2 + $0x1e0] sm:$0xff] %vm1070, %v1035
      %1103 = vst.msk [vmem:[#allocation2 + $0x1f0] sm:$0x7f] %vm1072, %v1037
      %1104 = vrot.lane.b32.xlu0 %v314, 96
      %v1105 = vpop.permute.xlu0 %1104
      %1106 = vrot.lane.b32.xlu0 %v316, 96
      %v1107 = vpop.permute.xlu0 %1106
      %1108 = vrot.lane.b32.xlu0 %v317, 96
      %v1109 = vpop.permute.xlu0 %1108
      %1110 = vrot.lane.b32.xlu0 %v319, 96
      %v1111 = vpop.permute.xlu0 %1110
      %1112 = vrot.lane.b32.xlu0 %v320, 96
      %v1113 = vpop.permute.xlu0 %1112
      %1114 = vrot.lane.b32.xlu0 %v322, 96
      %v1115 = vpop.permute.xlu0 %1114
      %1116 = vrot.lane.b32.xlu0 %v323, 96
      %v1117 = vpop.permute.xlu0 %1116
      %1118 = vrot.lane.b32.xlu0 %v325, 96
      %v1119 = vpop.permute.xlu0 %1118
      %1120 = vrot.lane.b32.xlu0 %v326, 96
      %v1121 = vpop.permute.xlu0 %1120
      %1122 = vrot.lane.b32.xlu0 %v328, 96
      %v1123 = vpop.permute.xlu0 %1122
      %1124 = vrot.lane.b32.xlu0 %v329, 96
      %v1125 = vpop.permute.xlu0 %1124
      %1126 = vrot.lane.b32.xlu0 %v331, 96
      %v1127 = vpop.permute.xlu0 %1126
      %1128 = vrot.lane.b32.xlu0 %v332, 96
      %v1129 = vpop.permute.xlu0 %1128
      %1130 = vrot.lane.b32.xlu0 %v334, 96
      %v1131 = vpop.permute.xlu0 %1130
      %1132 = vrot.lane.b32.xlu0 %v335, 96
      %v1133 = vpop.permute.xlu0 %1132
      %1134 = vrot.lane.b32.xlu0 %v337, 96
      %v1135 = vpop.permute.xlu0 %1134
      %1136 = vrot.lane.b32.xlu0 %v338, 96
      %v1137 = vpop.permute.xlu0 %1136
      %1138 = vrot.lane.b32.xlu0 %v340, 96
      %v1139 = vpop.permute.xlu0 %1138
      %1140 = vrot.lane.b32.xlu0 %v341, 96
      %v1141 = vpop.permute.xlu0 %1140
      %1142 = vrot.lane.b32.xlu0 %v343, 96
      %v1143 = vpop.permute.xlu0 %1142
      %1144 = vrot.lane.b32.xlu0 %v344, 96
      %v1145 = vpop.permute.xlu0 %1144
      %1146 = vrot.lane.b32.xlu0 %v346, 96
      %v1147 = vpop.permute.xlu0 %1146
      %1148 = vrot.lane.b32.xlu0 %v347, 96
      %v1149 = vpop.permute.xlu0 %1148
      %1150 = vrot.lane.b32.xlu0 %v349, 96
      %v1151 = vpop.permute.xlu0 %1150
      %1152 = vrot.lane.b32.xlu0 %v350, 96
      %v1153 = vpop.permute.xlu0 %1152
      %1154 = vrot.lane.b32.xlu0 %v352, 96
      %v1155 = vpop.permute.xlu0 %1154
      %1156 = vrot.lane.b32.xlu0 %v353, 96
      %v1157 = vpop.permute.xlu0 %1156
      %1158 = vrot.lane.b32.xlu0 %v355, 96
      %v1159 = vpop.permute.xlu0 %1158
      %1160 = vrot.lane.b32.xlu0 %v709, 96
      %v1161 = vpop.permute.xlu0 %1160
      %1162 = vrot.lane.b32.xlu0 %v711, 96
      %v1163 = vpop.permute.xlu0 %1162
      %vm1194 = vcmask 917249
      %1195 = vst.msk [vmem:[#allocation2] sm:$0xfe] %vm1194, %v1105
      %vm1196 = vcmask 917248
      %1197 = vst.msk [vmem:[#allocation2 + $0x10] sm:$0xff] %vm1196, %v1107
      %1198 = vst.msk [vmem:[#allocation2 + $0x20] sm:$0xfe] %vm1194, %v1109
      %1199 = vst.msk [vmem:[#allocation2 + $0x30] sm:$0xff] %vm1196, %v1111
      %1200 = vst.msk [vmem:[#allocation2 + $0x40] sm:$0xfe] %vm1194, %v1113
      %1201 = vst.msk [vmem:[#allocation2 + $0x50] sm:$0xff] %vm1196, %v1115
      %1202 = vst.msk [vmem:[#allocation2 + $0x60] sm:$0xfe] %vm1194, %v1117
      %1203 = vst.msk [vmem:[#allocation2 + $0x70] sm:$0xff] %vm1196, %v1119
      %1204 = vst.msk [vmem:[#allocation2 + $0x80] sm:$0xfe] %vm1194, %v1121
      %1205 = vst.msk [vmem:[#allocation2 + $0x90] sm:$0xff] %vm1196, %v1123
      %1206 = vst.msk [vmem:[#allocation2 + $0xa0] sm:$0xfe] %vm1194, %v1125
      %1207 = vst.msk [vmem:[#allocation2 + $0xb0] sm:$0xff] %vm1196, %v1127
      %1208 = vst.msk [vmem:[#allocation2 + $0xc0] sm:$0xfe] %vm1194, %v1129
      %1209 = vst.msk [vmem:[#allocation2 + $0xd0] sm:$0xff] %vm1196, %v1131
      %1210 = vst.msk [vmem:[#allocation2 + $0xe0] sm:$0xfe] %vm1194, %v1133
      %1211 = vst.msk [vmem:[#allocation2 + $0xf0] sm:$0xff] %vm1196, %v1135
      %1212 = vst.msk [vmem:[#allocation2 + $0x100] sm:$0xfe] %vm1194, %v1137
      %1213 = vst.msk [vmem:[#allocation2 + $0x110] sm:$0xff] %vm1196, %v1139
      %1214 = vst.msk [vmem:[#allocation2 + $0x120] sm:$0xfe] %vm1194, %v1141
      %1215 = vst.msk [vmem:[#allocation2 + $0x130] sm:$0xff] %vm1196, %v1143
      %1216 = vst.msk [vmem:[#allocation2 + $0x140] sm:$0xfe] %vm1194, %v1145
      %1217 = vst.msk [vmem:[#allocation2 + $0x150] sm:$0xff] %vm1196, %v1147
      %1218 = vst.msk [vmem:[#allocation2 + $0x160] sm:$0xfe] %vm1194, %v1149
      %1219 = vst.msk [vmem:[#allocation2 + $0x170] sm:$0xff] %vm1196, %v1151
      %1220 = vst.msk [vmem:[#allocation2 + $0x180] sm:$0xfe] %vm1194, %v1153
      %1221 = vst.msk [vmem:[#allocation2 + $0x190] sm:$0xff] %vm1196, %v1155
      %1222 = vst.msk [vmem:[#allocation2 + $0x1a0] sm:$0xfe] %vm1194, %v1157
      %1223 = vst.msk [vmem:[#allocation2 + $0x1b0] sm:$0xff] %vm1196, %v1159
      %1224 = vst.msk [vmem:[#allocation2 + $0x1c0] sm:$0xfe] %vm1194, %v1161
      %1225 = vst.msk [vmem:[#allocation2 + $0x1d0] sm:$0xff] %vm1196, %v1163
      %1226 = vrot.lane.b32.xlu0 %v185, 112
      %v1227 = vpop.permute.xlu0 %1226
      %1228 = vrot.lane.b32.xlu0 %v186, 112
      %v1229 = vpop.permute.xlu0 %1228
      %1230 = vrot.lane.b32.xlu0 %v187, 112
      %v1231 = vpop.permute.xlu0 %1230
      %1232 = vrot.lane.b32.xlu0 %v188, 112
      %v1233 = vpop.permute.xlu0 %1232
      %1234 = vrot.lane.b32.xlu0 %v189, 112
      %v1235 = vpop.permute.xlu0 %1234
      %1236 = vrot.lane.b32.xlu0 %v190, 112
      %v1237 = vpop.permute.xlu0 %1236
      %1238 = vrot.lane.b32.xlu0 %v191, 112
      %v1239 = vpop.permute.xlu0 %1238
      %1240 = vrot.lane.b32.xlu0 %v192, 112
      %v1241 = vpop.permute.xlu0 %1240
      %1242 = vrot.lane.b32.xlu0 %v193, 112
      %v1243 = vpop.permute.xlu0 %1242
      %1244 = vrot.lane.b32.xlu0 %v194, 112
      %v1245 = vpop.permute.xlu0 %1244
      %1246 = vrot.lane.b32.xlu0 %v195, 112
      %v1247 = vpop.permute.xlu0 %1246
      %1248 = vrot.lane.b32.xlu0 %v196, 112
      %v1249 = vpop.permute.xlu0 %1248
      %1250 = vrot.lane.b32.xlu0 %v197, 112
      %v1251 = vpop.permute.xlu0 %1250
      %1252 = vrot.lane.b32.xlu0 %v198, 112
      %v1253 = vpop.permute.xlu0 %1252
      %1254 = vrot.lane.b32.xlu0 %v199, 112
      %v1255 = vpop.permute.xlu0 %1254
      %1256 = vrot.lane.b32.xlu0 %v200, 112
      %v1257 = vpop.permute.xlu0 %1256
      %1258 = vrot.lane.b32.xlu0 %v201, 112
      %v1259 = vpop.permute.xlu0 %1258
      %1260 = vrot.lane.b32.xlu0 %v202, 112
      %v1261 = vpop.permute.xlu0 %1260
      %1262 = vrot.lane.b32.xlu0 %v203, 112
      %v1263 = vpop.permute.xlu0 %1262
      %1264 = vrot.lane.b32.xlu0 %v204, 112
      %v1265 = vpop.permute.xlu0 %1264
      %1266 = vrot.lane.b32.xlu0 %v205, 112
      %v1267 = vpop.permute.xlu0 %1266
      %1268 = vrot.lane.b32.xlu0 %v206, 112
      %v1269 = vpop.permute.xlu0 %1268
      %1270 = vrot.lane.b32.xlu0 %v207, 112
      %v1271 = vpop.permute.xlu0 %1270
      %1272 = vrot.lane.b32.xlu0 %v208, 112
      %v1273 = vpop.permute.xlu0 %1272
      %1274 = vrot.lane.b32.xlu0 %v209, 112
      %v1275 = vpop.permute.xlu0 %1274
      %1276 = vrot.lane.b32.xlu0 %v210, 112
      %v1277 = vpop.permute.xlu0 %1276
      %1278 = vrot.lane.b32.xlu0 %v211, 112
      %v1279 = vpop.permute.xlu0 %1278
      %1280 = vrot.lane.b32.xlu0 %v212, 112
      %v1281 = vpop.permute.xlu0 %1280
      %1282 = vrot.lane.b32.xlu0 %v213, 112
      %v1283 = vpop.permute.xlu0 %1282
      %1284 = vrot.lane.b32.xlu0 %v214, 112
      %v1285 = vpop.permute.xlu0 %1284
      %vm1316 = vcmask 1048448
      %1317 = vst.msk [vmem:[#allocation2] sm:$0xff] %vm1316, %v1227
      %1318 = vst.msk [vmem:[#allocation2 + $0x10] sm:$0xff] %vm1316, %v1229
      %1319 = vst.msk [vmem:[#allocation2 + $0x20] sm:$0xff] %vm1316, %v1231
      %1320 = vst.msk [vmem:[#allocation2 + $0x30] sm:$0xff] %vm1316, %v1233
      %1321 = vst.msk [vmem:[#allocation2 + $0x40] sm:$0xff] %vm1316, %v1235
      %1322 = vst.msk [vmem:[#allocation2 + $0x50] sm:$0xff] %vm1316, %v1237
      %1323 = vst.msk [vmem:[#allocation2 + $0x60] sm:$0xff] %vm1316, %v1239
      %1324 = vst.msk [vmem:[#allocation2 + $0x70] sm:$0xff] %vm1316, %v1241
      %1325 = vst.msk [vmem:[#allocation2 + $0x80] sm:$0xff] %vm1316, %v1243
      %1326 = vst.msk [vmem:[#allocation2 + $0x90] sm:$0xff] %vm1316, %v1245
      %1327 = vst.msk [vmem:[#allocation2 + $0xa0] sm:$0xff] %vm1316, %v1247
      %1328 = vst.msk [vmem:[#allocation2 + $0xb0] sm:$0xff] %vm1316, %v1249
      %1329 = vst.msk [vmem:[#allocation2 + $0xc0] sm:$0xff] %vm1316, %v1251
      %1330 = vst.msk [vmem:[#allocation2 + $0xd0] sm:$0xff] %vm1316, %v1253
      %1331 = vst.msk [vmem:[#allocation2 + $0xe0] sm:$0xff] %vm1316, %v1255
      %1332 = vst.msk [vmem:[#allocation2 + $0xf0] sm:$0xff] %vm1316, %v1257
      %1333 = vst.msk [vmem:[#allocation2 + $0x100] sm:$0xff] %vm1316, %v1259
      %1334 = vst.msk [vmem:[#allocation2 + $0x110] sm:$0xff] %vm1316, %v1261
      %1335 = vst.msk [vmem:[#allocation2 + $0x120] sm:$0xff] %vm1316, %v1263
      %1336 = vst.msk [vmem:[#allocation2 + $0x130] sm:$0xff] %vm1316, %v1265
      %1337 = vst.msk [vmem:[#allocation2 + $0x140] sm:$0xff] %vm1316, %v1267
      %1338 = vst.msk [vmem:[#allocation2 + $0x150] sm:$0xff] %vm1316, %v1269
      %1339 = vst.msk [vmem:[#allocation2 + $0x160] sm:$0xff] %vm1316, %v1271
      %1340 = vst.msk [vmem:[#allocation2 + $0x170] sm:$0xff] %vm1316, %v1273
      %1341 = vst.msk [vmem:[#allocation2 + $0x180] sm:$0xff] %vm1316, %v1275
      %1342 = vst.msk [vmem:[#allocation2 + $0x190] sm:$0xff] %vm1316, %v1277
      %1343 = vst.msk [vmem:[#allocation2 + $0x1a0] sm:$0xff] %vm1316, %v1279
      %1344 = vst.msk [vmem:[#allocation2 + $0x1b0] sm:$0xff] %vm1316, %v1281
      %1345 = vst.msk [vmem:[#allocation2 + $0x1c0] sm:$0xff] %vm1316, %v1283
      %1346 = vst.msk [vmem:[#allocation2 + $0x1d0] sm:$0xff] %vm1316, %v1285
      %1377 = vst.msk [vmem:[#allocation2 + $0x8] sm:$0xff] %vm216, %v545
      %vm1378 = vcmask 129024
      %1379 = vst.msk [vmem:[#allocation2 + $0x18] sm:$0x7f] %vm1378, %v544
      %1380 = vst.msk [vmem:[#allocation2 + $0x28] sm:$0xff] %vm216, %v548
      %1381 = vst.msk [vmem:[#allocation2 + $0x38] sm:$0x7f] %vm1378, %v547
      %1382 = vst.msk [vmem:[#allocation2 + $0x48] sm:$0xff] %vm216, %v551
      %1383 = vst.msk [vmem:[#allocation2 + $0x58] sm:$0x7f] %vm1378, %v550
      %1384 = vst.msk [vmem:[#allocation2 + $0x68] sm:$0xff] %vm216, %v554
      %1385 = vst.msk [vmem:[#allocation2 + $0x78] sm:$0x7f] %vm1378, %v553
      %1386 = vst.msk [vmem:[#allocation2 + $0x88] sm:$0xff] %vm216, %v557
      %1387 = vst.msk [vmem:[#allocation2 + $0x98] sm:$0x7f] %vm1378, %v556
      %1388 = vst.msk [vmem:[#allocation2 + $0xa8] sm:$0xff] %vm216, %v560
      %1389 = vst.msk [vmem:[#allocation2 + $0xb8] sm:$0x7f] %vm1378, %v559
      %1390 = vst.msk [vmem:[#allocation2 + $0xc8] sm:$0xff] %vm216, %v563
      %1391 = vst.msk [vmem:[#allocation2 + $0xd8] sm:$0x7f] %vm1378, %v562
      %1392 = vst.msk [vmem:[#allocation2 + $0xe8] sm:$0xff] %vm216, %v566
      %1393 = vst.msk [vmem:[#allocation2 + $0xf8] sm:$0x7f] %vm1378, %v565
      %1394 = vst.msk [vmem:[#allocation2 + $0x108] sm:$0xff] %vm216, %v569
      %1395 = vst.msk [vmem:[#allocation2 + $0x118] sm:$0x7f] %vm1378, %v568
      %1396 = vst.msk [vmem:[#allocation2 + $0x128] sm:$0xff] %vm216, %v572
      %1397 = vst.msk [vmem:[#allocation2 + $0x138] sm:$0x7f] %vm1378, %v571
      %1398 = vst.msk [vmem:[#allocation2 + $0x148] sm:$0xff] %vm216, %v575
      %1399 = vst.msk [vmem:[#allocation2 + $0x158] sm:$0x7f] %vm1378, %v574
      %1400 = vst.msk [vmem:[#allocation2 + $0x168] sm:$0xff] %vm216, %v578
      %1401 = vst.msk [vmem:[#allocation2 + $0x178] sm:$0x7f] %vm1378, %v577
      %1402 = vst.msk [vmem:[#allocation2 + $0x188] sm:$0xff] %vm216, %v581
      %1403 = vst.msk [vmem:[#allocation2 + $0x198] sm:$0x7f] %vm1378, %v580
      %1404 = vst.msk [vmem:[#allocation2 + $0x1a8] sm:$0xff] %vm216, %v584
      %1405 = vst.msk [vmem:[#allocation2 + $0x1b8] sm:$0x7f] %vm1378, %v583
      %1406 = vst.msk [vmem:[#allocation2 + $0x1c8] sm:$0xff] %vm216, %v973
      %1407 = vst.msk [vmem:[#allocation2 + $0x1d8] sm:$0x7f] %vm1378, %v972
      %v1408 = vld [vmem:[#allocation2] sm:$0xff]
      %v1409 = vld [vmem:[#allocation2 + $0x8] sm:$0xff]
      %v1410 = vld [vmem:[#allocation2 + $0x10] sm:$0xff]
      %v1411 = vld [vmem:[#allocation2 + $0x18] sm:$0xff]
      %v1412 = vld [vmem:[#allocation2 + $0x20] sm:$0xff]
      %v1413 = vld [vmem:[#allocation2 + $0x28] sm:$0xff]
      %v1414 = vld [vmem:[#allocation2 + $0x30] sm:$0xff]
      %v1415 = vld [vmem:[#allocation2 + $0x38] sm:$0xff]
      %v1416 = vld [vmem:[#allocation2 + $0x40] sm:$0xff]
      %v1417 = vld [vmem:[#allocation2 + $0x48] sm:$0xff]
      %v1418 = vld [vmem:[#allocation2 + $0x50] sm:$0xff]
      %v1419 = vld [vmem:[#allocation2 + $0x58] sm:$0xff]
      %v1420 = vld [vmem:[#allocation2 + $0x60] sm:$0xff]
      %v1421 = vld [vmem:[#allocation2 + $0x68] sm:$0xff]
      %v1422 = vld [vmem:[#allocation2 + $0x70] sm:$0xff]
      %v1423 = vld [vmem:[#allocation2 + $0x78] sm:$0xff]
      %v1424 = vld [vmem:[#allocation2 + $0x80] sm:$0xff]
      %v1425 = vld [vmem:[#allocation2 + $0x88] sm:$0xff]
      %v1426 = vld [vmem:[#allocation2 + $0x90] sm:$0xff]
      %v1427 = vld [vmem:[#allocation2 + $0x98] sm:$0xff]
      %v1428 = vld [vmem:[#allocation2 + $0xa0] sm:$0xff]
      %v1429 = vld [vmem:[#allocation2 + $0xa8] sm:$0xff]
      %v1430 = vld [vmem:[#allocation2 + $0xb0] sm:$0xff]
      %v1431 = vld [vmem:[#allocation2 + $0xb8] sm:$0xff]
      %v1432 = vld [vmem:[#allocation2 + $0xc0] sm:$0xff]
      %v1433 = vld [vmem:[#allocation2 + $0xc8] sm:$0xff]
      %v1434 = vld [vmem:[#allocation2 + $0xd0] sm:$0xff]
      %v1435 = vld [vmem:[#allocation2 + $0xd8] sm:$0xff]
      %v1436 = vld [vmem:[#allocation2 + $0xe0] sm:$0xff]
      %v1437 = vld [vmem:[#allocation2 + $0xe8] sm:$0xff]
      %v1438 = vld [vmem:[#allocation2 + $0xf0] sm:$0xff]
      %v1439 = vld [vmem:[#allocation2 + $0xf8] sm:$0xff]
      %v1440 = vld [vmem:[#allocation2 + $0x100] sm:$0xff]
      %v1441 = vld [vmem:[#allocation2 + $0x108] sm:$0xff]
      %v1442 = vld [vmem:[#allocation2 + $0x110] sm:$0xff]
      %v1443 = vld [vmem:[#allocation2 + $0x118] sm:$0xff]
      %v1444 = vld [vmem:[#allocation2 + $0x120] sm:$0xff]
      %v1445 = vld [vmem:[#allocation2 + $0x128] sm:$0xff]
      %v1446 = vld [vmem:[#allocation2 + $0x130] sm:$0xff]
      %v1447 = vld [vmem:[#allocation2 + $0x138] sm:$0xff]
      %v1448 = vld [vmem:[#allocation2 + $0x140] sm:$0xff]
      %v1449 = vld [vmem:[#allocation2 + $0x148] sm:$0xff]
      %v1450 = vld [vmem:[#allocation2 + $0x150] sm:$0xff]
      %v1451 = vld [vmem:[#allocation2 + $0x158] sm:$0xff]
      %v1452 = vld [vmem:[#allocation2 + $0x160] sm:$0xff]
      %v1453 = vld [vmem:[#allocation2 + $0x168] sm:$0xff]
      %v1454 = vld [vmem:[#allocation2 + $0x170] sm:$0xff]
      %v1455 = vld [vmem:[#allocation2 + $0x178] sm:$0xff]
      %v1456 = vld [vmem:[#allocation2 + $0x180] sm:$0xff]
      %v1457 = vld [vmem:[#allocation2 + $0x188] sm:$0xff]
      %v1458 = vld [vmem:[#allocation2 + $0x190] sm:$0xff]
      %v1459 = vld [vmem:[#allocation2 + $0x198] sm:$0xff]
      %v1460 = vld [vmem:[#allocation2 + $0x1a0] sm:$0xff]
      %v1461 = vld [vmem:[#allocation2 + $0x1a8] sm:$0xff]
      %v1462 = vld [vmem:[#allocation2 + $0x1b0] sm:$0xff]
      %v1463 = vld [vmem:[#allocation2 + $0x1b8] sm:$0xff]
      %v1464 = vld [vmem:[#allocation2 + $0x1c0] sm:$0xff]
      %v1465 = vld [vmem:[#allocation2 + $0x1c8] sm:$0xff]
      %v1466 = vld [vmem:[#allocation2 + $0x1d0] sm:$0xff]
      %v1467 = vld [vmem:[#allocation2 + $0x1d8] sm:$0xff]
      %v1468 = vld [vmem:[#allocation2 + $0x1e0] sm:$0xff]
      %v1469 = vld [vmem:[#allocation2 + $0x1e8] sm:$0xff]
      %v1470 = vld [vmem:[#allocation2 + $0x1f0] sm:$0xff]
      %v1471 = vld [vmem:[#allocation2 + $0x1f8] sm:$0xff]
      %v1472 = vpack.c.bf16 %v1410, %v1408
      %v1473 = vpack.c.bf16 %v1411, %v1409
      %v1474 = vpack.c.bf16 %v1414, %v1412
      %v1475 = vpack.c.bf16 %v1415, %v1413
      %v1476 = vpack.c.bf16 %v1418, %v1416
      %v1477 = vpack.c.bf16 %v1419, %v1417
      %v1478 = vpack.c.bf16 %v1422, %v1420
      %v1479 = vpack.c.bf16 %v1423, %v1421
      %v1480 = vpack.c.bf16 %v1426, %v1424
      %v1481 = vpack.c.bf16 %v1427, %v1425
      %v1482 = vpack.c.bf16 %v1430, %v1428
      %v1483 = vpack.c.bf16 %v1431, %v1429
      %v1484 = vpack.c.bf16 %v1434, %v1432
      %v1485 = vpack.c.bf16 %v1435, %v1433
      %v1486 = vpack.c.bf16 %v1438, %v1436
      %v1487 = vpack.c.bf16 %v1439, %v1437
      %v1488 = vpack.c.bf16 %v1442, %v1440
      %v1489 = vpack.c.bf16 %v1443, %v1441
      %v1490 = vpack.c.bf16 %v1446, %v1444
      %v1491 = vpack.c.bf16 %v1447, %v1445
      %v1492 = vpack.c.bf16 %v1450, %v1448
      %v1493 = vpack.c.bf16 %v1451, %v1449
      %v1494 = vpack.c.bf16 %v1454, %v1452
      %v1495 = vpack.c.bf16 %v1455, %v1453
      %v1496 = vpack.c.bf16 %v1458, %v1456
      %v1497 = vpack.c.bf16 %v1459, %v1457
      %v1498 = vpack.c.bf16 %v1462, %v1460
      %v1499 = vpack.c.bf16 %v1463, %v1461
      %v1500 = vpack.c.bf16 %v1466, %v1464
      %v1501 = vpack.c.bf16 %v1467, %v1465
      %v1502 = vpack.c.bf16 %v1470, %v1468
      %v1503 = vpack.c.bf16 %v1471, %v1469
      %v1504 = vld [vmem:[%s1] sm:$0xf]
      %v1505 = vld [vmem:[%s1 + $0x4] sm:$0xf]
      %v1506 = vld [vmem:[%s1 + $0x8] sm:$0xf]
      %v1507 = vld [vmem:[%s1 + $0xc] sm:$0xf]
      %v1508 = vld [vmem:[%s1 + $0x10] sm:$0xf]
      %v1509 = vld [vmem:[%s1 + $0x14] sm:$0xf]
      %v1510 = vld [vmem:[%s1 + $0x18] sm:$0xf]
      %v1511 = vld [vmem:[%s1 + $0x1c] sm:$0xf]
      %v1512 = vld [vmem:[%s1 + $0x20] sm:$0xf]
      %v1513 = vld [vmem:[%s1 + $0x24] sm:$0xf]
      %v1514 = vld [vmem:[%s1 + $0x28] sm:$0xf]
      %v1515 = vld [vmem:[%s1 + $0x2c] sm:$0xf]
      %v1516 = vld [vmem:[%s1 + $0x30] sm:$0xf]
      %v1517 = vld [vmem:[%s1 + $0x34] sm:$0xf]
      %v1518 = vld [vmem:[%s1 + $0x38] sm:$0xf]
      %v1519 = vld [vmem:[%s1 + $0x3c] sm:$0xf]
      %v1520 = vld [vmem:[%s1 + $0x40] sm:$0xf]
      %v1521 = vld [vmem:[%s1 + $0x44] sm:$0xf]
      %v1540 = vunpack.c.l.b16 %v1504
      %v1541 = vunpack.c.l.b16 %v1505
      %v1542 = vunpack.c.l.b16 %v1506
      %v1543 = vunpack.c.l.b16 %v1507
      %v1544 = vunpack.c.l.b16 %v1508
      %v1545 = vunpack.c.l.b16 %v1509
      %v1546 = vunpack.c.l.b16 %v1510
      %v1547 = vunpack.c.l.b16 %v1511
      %v1548 = vunpack.c.l.b16 %v1512
      %v1549 = vunpack.c.l.b16 %v1513
      %v1550 = vunpack.c.l.b16 %v1514
      %v1551 = vunpack.c.l.b16 %v1515
      %v1552 = vunpack.c.l.b16 %v1516
      %v1553 = vunpack.c.l.b16 %v1517
      %v1554 = vunpack.c.l.b16 %v1518
      %v1555 = vunpack.c.l.b16 %v1519
      %v1556 = vunpack.c.l.b16 %v1520
      %v1557 = vunpack.c.l.b16 %v1521
      %v1558 = vpack.c.b16 %v1541, %v1540
      %v1559 = vpack.c.b16 %v1543, %v1542
      %v1560 = vpack.c.b16 %v1545, %v1544
      %v1561 = vpack.c.b16 %v1547, %v1546
      %v1562 = vpack.c.b16 %v1549, %v1548
      %v1563 = vpack.c.b16 %v1551, %v1550
      %v1564 = vpack.c.b16 %v1553, %v1552
      %v1565 = vpack.c.b16 %v1555, %v1554
      %v1566 = vpack.c.b16 %v1557, %v1556
      %v1577 = vsel %vm216, %v1473, 0
      %v1580 = vsel %vm216, %v1475, 0
      %v1583 = vsel %vm216, %v1477, 0
      %v1586 = vsel %vm216, %v1479, 0
      %v1589 = vsel %vm216, %v1481, 0
      %v1592 = vsel %vm216, %v1483, 0
      %v1595 = vsel %vm216, %v1485, 0
      %v1598 = vsel %vm216, %v1487, 0
      %v1601 = vsel %vm216, %v1489, 0
      %v1604 = vsel %vm216, %v1491, 0
      %v1607 = vsel %vm216, %v1493, 0
      %v1610 = vsel %vm216, %v1495, 0
      %v1613 = vsel %vm216, %v1497, 0
      %v1616 = vsel %vm216, %v1499, 0
      %v1619 = vsel %vm216, %v1501, 0
      %v1622 = vsel %vm216, %v1503, 0
      %1624 = vmatprep.subr.bf16.mxu0 0
      %1625 = vmatpush1.bf16.msra.mxu0 %v1558
      %1626 = vmatprep.subr.bf16.mxu0 0
      %1627 = vmatpush1.bf16.msra.mxu0 %v1559
      %1628 = vmatprep.subr.bf16.mxu0 0
      %1629 = vmatpush1.bf16.msra.mxu0 %v1560
      %1630 = vmatprep.subr.bf16.mxu0 0
      %1631 = vmatpush1.bf16.msra.mxu0 %v1561
      %1632 = vmatprep.subr.bf16.mxu0 0
      %1633 = vmatpush1.bf16.msra.mxu0 %v1562
      %1634 = vmatprep.subr.bf16.mxu0 0
      %1635 = vmatpush1.bf16.msra.mxu0 %v1563
      %1636 = vmatprep.subr.bf16.mxu0 0
      %1637 = vmatpush1.bf16.msra.mxu0 %v1564
      %1638 = vmatprep.subr.bf16.mxu0 0
      %1639 = vmatpush1.bf16.msra.mxu0 %v1565
      %1640 = vmatprep.subr.bf16.mxu0 0
      %1641 = vmatpush1.bf16.msra.mxu0 %v1566
      %1642 = vmatprep.subr.bf16.mxu0 0
      %1643 = vmatpush1.bf16.msra.mxu0 0
      %1644 = vmatprep.subr.bf16.mxu0 0
      %1645 = vmatpush1.bf16.msra.mxu0 0
      %1646 = vmatprep.subr.bf16.mxu0 0
      %1647 = vmatpush1.bf16.msra.mxu0 0
      %1648 = vmatprep.subr.bf16.mxu0 0
      %1649 = vmatpush1.bf16.msra.mxu0 0
      %1650 = vmatprep.subr.bf16.mxu0 0
      %1651 = vmatpush1.bf16.msra.mxu0 0
      %1652 = vmatprep.subr.bf16.mxu0 0
      %1653 = vmatpush1.bf16.msra.mxu0 0
      %1654 = vmatprep.subr.bf16.mxu0 0
      %1655 = vmatpush1.bf16.msra.mxu0 0
      %1656 = vmatprep.mubr.bf16.mxu0 %v1577
      %1657 = vmatmul.mubr.bf16.gmra.mrb[0].mxu0 %v1472
      %v1658 = vpop.f32.mrb[0].mxu0
      %v1659 = vadd.f32 0.0, %v1658
      %v1660 = vpop.f32.mrb[0].mxu0
      %v1661 = vpop.f32.mrb[0].mxu0
      %v1662 = vadd.f32 0.0, %v1661
      %v1663 = vpop.f32.mrb[0].mxu0
      %1664 = vmatprep.mubr.bf16.mxu0 %v1580
      %1665 = vmatmul.mubr.bf16.gmra.mrb[0].mxu0 %v1474
      %v1666 = vpop.f32.mrb[0].mxu0
      %v1667 = vadd.f32 0.0, %v1666
      %v1668 = vpop.f32.mrb[0].mxu0
      %v1669 = vpop.f32.mrb[0].mxu0
      %v1670 = vadd.f32 0.0, %v1669
      %v1671 = vpop.f32.mrb[0].mxu0
      %1672 = vmatprep.mubr.bf16.mxu0 %v1583
      %1673 = vmatmul.mubr.bf16.gmra.mrb[0].mxu0 %v1476
      %v1674 = vpop.f32.mrb[0].mxu0
      %v1675 = vadd.f32 0.0, %v1674
      %v1676 = vpop.f32.mrb[0].mxu0
      %v1677 = vpop.f32.mrb[0].mxu0
      %v1678 = vadd.f32 0.0, %v1677
      %v1679 = vpop.f32.mrb[0].mxu0
      %1680 = vmatprep.mubr.bf16.mxu0 %v1586
      %1681 = vmatmul.mubr.bf16.gmra.mrb[0].mxu0 %v1478
      %v1682 = vpop.f32.mrb[0].mxu0
      %v1683 = vadd.f32 0.0, %v1682
      %v1684 = vpop.f32.mrb[0].mxu0
      %v1685 = vpop.f32.mrb[0].mxu0
      %v1686 = vadd.f32 0.0, %v1685
      %v1687 = vpop.f32.mrb[0].mxu0
      %1688 = vmatprep.mubr.bf16.mxu0 %v1589
      %1689 = vmatmul.mubr.bf16.gmra.mrb[0].mxu0 %v1480
      %v1690 = vpop.f32.mrb[0].mxu0
      %v1691 = vadd.f32 0.0, %v1690
      %v1692 = vpop.f32.mrb[0].mxu0
      %v1693 = vpop.f32.mrb[0].mxu0
      %v1694 = vadd.f32 0.0, %v1693
      %v1695 = vpop.f32.mrb[0].mxu0
      %1696 = vmatprep.mubr.bf16.mxu0 %v1592
      %1697 = vmatmul.mubr.bf16.gmra.mrb[0].mxu0 %v1482
      %v1698 = vpop.f32.mrb[0].mxu0
      %v1699 = vadd.f32 0.0, %v1698
      %v1700 = vpop.f32.mrb[0].mxu0
      %v1701 = vpop.f32.mrb[0].mxu0
      %v1702 = vadd.f32 0.0, %v1701
      %v1703 = vpop.f32.mrb[0].mxu0
      %1704 = vmatprep.mubr.bf16.mxu0 %v1595
      %1705 = vmatmul.mubr.bf16.gmra.mrb[0].mxu0 %v1484
      %v1706 = vpop.f32.mrb[0].mxu0
      %v1707 = vadd.f32 0.0, %v1706
      %v1708 = vpop.f32.mrb[0].mxu0
      %v1709 = vpop.f32.mrb[0].mxu0
      %v1710 = vadd.f32 0.0, %v1709
      %v1711 = vpop.f32.mrb[0].mxu0
      %1712 = vmatprep.mubr.bf16.mxu0 %v1598
      %1713 = vmatmul.mubr.bf16.gmra.mrb[0].mxu0 %v1486
      %v1714 = vpop.f32.mrb[0].mxu0
      %v1715 = vadd.f32 0.0, %v1714
      %v1716 = vpop.f32.mrb[0].mxu0
      %v1717 = vpop.f32.mrb[0].mxu0
      %v1718 = vadd.f32 0.0, %v1717
      %v1719 = vpop.f32.mrb[0].mxu0
      %1720 = vmatprep.mubr.bf16.mxu0 %v1601
      %1721 = vmatmul.mubr.bf16.gmra.mrb[0].mxu0 %v1488
      %v1722 = vpop.f32.mrb[0].mxu0
      %v1723 = vadd.f32 0.0, %v1722
      %v1724 = vpop.f32.mrb[0].mxu0
      %v1725 = vpop.f32.mrb[0].mxu0
      %v1726 = vadd.f32 0.0, %v1725
      %v1727 = vpop.f32.mrb[0].mxu0
      %1728 = vmatprep.mubr.bf16.mxu0 %v1604
      %1729 = vmatmul.mubr.bf16.gmra.mrb[0].mxu0 %v1490
      %v1730 = vpop.f32.mrb[0].mxu0
      %v1731 = vadd.f32 0.0, %v1730
      %v1732 = vpop.f32.mrb[0].mxu0
      %v1733 = vpop.f32.mrb[0].mxu0
      %v1734 = vadd.f32 0.0, %v1733
      %v1735 = vpop.f32.mrb[0].mxu0
      %1736 = vmatprep.mubr.bf16.mxu0 %v1607
      %1737 = vmatmul.mubr.bf16.gmra.mrb[0].mxu0 %v1492
      %v1738 = vpop.f32.mrb[0].mxu0
      %v1739 = vadd.f32 0.0, %v1738
      %v1740 = vpop.f32.mrb[0].mxu0
      %v1741 = vpop.f32.mrb[0].mxu0
      %v1742 = vadd.f32 0.0, %v1741
      %v1743 = vpop.f32.mrb[0].mxu0
      %1744 = vmatprep.mubr.bf16.mxu0 %v1610
      %1745 = vmatmul.mubr.bf16.gmra.mrb[0].mxu0 %v1494
      %v1746 = vpop.f32.mrb[0].mxu0
      %v1747 = vadd.f32 0.0, %v1746
      %v1748 = vpop.f32.mrb[0].mxu0
      %v1749 = vpop.f32.mrb[0].mxu0
      %v1750 = vadd.f32 0.0, %v1749
      %v1751 = vpop.f32.mrb[0].mxu0
      %1752 = vmatprep.mubr.bf16.mxu0 %v1613
      %1753 = vmatmul.mubr.bf16.gmra.mrb[0].mxu0 %v1496
      %v1754 = vpop.f32.mrb[0].mxu0
      %v1755 = vadd.f32 0.0, %v1754
      %v1756 = vpop.f32.mrb[0].mxu0
      %v1757 = vpop.f32.mrb[0].mxu0
      %v1758 = vadd.f32 0.0, %v1757
      %v1759 = vpop.f32.mrb[0].mxu0
      %1760 = vmatprep.mubr.bf16.mxu0 %v1616
      %1761 = vmatmul.mubr.bf16.gmra.mrb[0].mxu0 %v1498
      %v1762 = vpop.f32.mrb[0].mxu0
      %v1763 = vadd.f32 0.0, %v1762
      %v1764 = vpop.f32.mrb[0].mxu0
      %v1765 = vpop.f32.mrb[0].mxu0
      %v1766 = vadd.f32 0.0, %v1765
      %v1767 = vpop.f32.mrb[0].mxu0
      %1768 = vmatprep.mubr.bf16.mxu0 %v1619
      %1769 = vmatmul.mubr.bf16.gmra.mrb[0].mxu0 %v1500
      %v1770 = vpop.f32.mrb[0].mxu0
      %v1771 = vadd.f32 0.0, %v1770
      %v1772 = vpop.f32.mrb[0].mxu0
      %v1773 = vpop.f32.mrb[0].mxu0
      %v1774 = vadd.f32 0.0, %v1773
      %v1775 = vpop.f32.mrb[0].mxu0
      %1776 = vmatprep.mubr.bf16.mxu0 %v1622
      %1777 = vmatmul.mubr.bf16.gmra.mrb[0].mxu0 %v1502
      %v1778 = vpop.f32.mrb[0].mxu0
      %v1779 = vadd.f32 0.0, %v1778
      %v1780 = vpop.f32.mrb[0].mxu0
      %v1781 = vpop.f32.mrb[0].mxu0
      %v1782 = vadd.f32 0.0, %v1781
      %v1783 = vpop.f32.mrb[0].mxu0
      %1784 = vdwg.mxu0
      %v1785 = vsel %vm216, %v1659, 0.0
      %v1786 = vsel %vm216, %v1662, 0.0
      %v1787 = vadd.f32 %v1785, %v1786
      %v1788 = vsel %vm216, %v1667, 0.0
      %v1789 = vadd.f32 %v1787, %v1788
      %v1790 = vsel %vm216, %v1670, 0.0
      %v1791 = vadd.f32 %v1789, %v1790
      %v1792 = vsel %vm216, %v1675, 0.0
      %v1793 = vadd.f32 %v1791, %v1792
      %v1794 = vsel %vm216, %v1678, 0.0
      %v1795 = vadd.f32 %v1793, %v1794
      %v1796 = vsel %vm216, %v1683, 0.0
      %v1797 = vadd.f32 %v1795, %v1796
      %v1798 = vsel %vm216, %v1686, 0.0
      %v1799 = vadd.f32 %v1797, %v1798
      %v1800 = vsel %vm216, %v1691, 0.0
      %v1801 = vadd.f32 %v1799, %v1800
      %v1802 = vsel %vm216, %v1694, 0.0
      %v1803 = vadd.f32 %v1801, %v1802
      %v1804 = vsel %vm216, %v1699, 0.0
      %v1805 = vadd.f32 %v1803, %v1804
      %v1806 = vsel %vm216, %v1702, 0.0
      %v1807 = vadd.f32 %v1805, %v1806
      %v1808 = vsel %vm216, %v1707, 0.0
      %v1809 = vadd.f32 %v1807, %v1808
      %v1810 = vsel %vm216, %v1710, 0.0
      %v1811 = vadd.f32 %v1809, %v1810
      %v1812 = vsel %vm216, %v1715, 0.0
      %v1813 = vadd.f32 %v1811, %v1812
      %v1814 = vsel %vm216, %v1718, 0.0
      %v1815 = vadd.f32 %v1813, %v1814
      %v1816 = vsel %vm216, %v1723, 0.0
      %v1817 = vadd.f32 %v1815, %v1816
      %v1818 = vsel %vm216, %v1726, 0.0
      %v1819 = vadd.f32 %v1817, %v1818
      %v1820 = vsel %vm216, %v1731, 0.0
      %v1821 = vadd.f32 %v1819, %v1820
      %v1822 = vsel %vm216, %v1734, 0.0
      %v1823 = vadd.f32 %v1821, %v1822
      %v1824 = vsel %vm216, %v1739, 0.0
      %v1825 = vadd.f32 %v1823, %v1824
      %v1826 = vsel %vm216, %v1742, 0.0
      %v1827 = vadd.f32 %v1825, %v1826
      %v1828 = vsel %vm216, %v1747, 0.0
      %v1829 = vadd.f32 %v1827, %v1828
      %v1830 = vsel %vm216, %v1750, 0.0
      %v1831 = vadd.f32 %v1829, %v1830
      %v1832 = vsel %vm216, %v1755, 0.0
      %v1833 = vadd.f32 %v1831, %v1832
      %v1834 = vsel %vm216, %v1758, 0.0
      %v1835 = vadd.f32 %v1833, %v1834
      %v1836 = vsel %vm216, %v1763, 0.0
      %v1837 = vadd.f32 %v1835, %v1836
      %v1838 = vsel %vm216, %v1766, 0.0
      %v1839 = vadd.f32 %v1837, %v1838
      %v1840 = vsel %vm216, %v1771, 0.0
      %v1841 = vadd.f32 %v1839, %v1840
      %v1842 = vsel %vm216, %v1774, 0.0
      %v1843 = vadd.f32 %v1841, %v1842
      %v1844 = vsel %vm216, %v1779, 0.0
      %v1845 = vadd.f32 %v1843, %v1844
      %v1846 = vsel %vm216, %v1782, 0.0
      %v1847 = vadd.f32 %v1845, %v1846
      %v1848 = vrot.slane %v1847, 4
      %v1849 = vadd.f32 %v1847, %v1848
      %v1850 = vrot.slane %v1849, 2
      %v1851 = vadd.f32 %v1849, %v1850
      %v1852 = vrot.slane %v1851, 1
      %v1853 = vadd.f32 %v1851, %v1852
      %v1854 = vmul.f32 %v1659, %v1659
      %v1855 = vmul.f32 %v1662, %v1662
      %v1856 = vmul.f32 %v1667, %v1667
      %v1857 = vmul.f32 %v1670, %v1670
      %v1858 = vmul.f32 %v1675, %v1675
      %v1859 = vmul.f32 %v1678, %v1678
      %v1860 = vmul.f32 %v1683, %v1683
      %v1861 = vmul.f32 %v1686, %v1686
      %v1862 = vmul.f32 %v1691, %v1691
      %v1863 = vmul.f32 %v1694, %v1694
      %v1864 = vmul.f32 %v1699, %v1699
      %v1865 = vmul.f32 %v1702, %v1702
      %v1866 = vmul.f32 %v1707, %v1707
      %v1867 = vmul.f32 %v1710, %v1710
      %v1868 = vmul.f32 %v1715, %v1715
      %v1869 = vmul.f32 %v1718, %v1718
      %v1870 = vmul.f32 %v1723, %v1723
      %v1871 = vmul.f32 %v1726, %v1726
      %v1872 = vmul.f32 %v1731, %v1731
      %v1873 = vmul.f32 %v1734, %v1734
      %v1874 = vmul.f32 %v1739, %v1739
      %v1875 = vmul.f32 %v1742, %v1742
      %v1876 = vmul.f32 %v1747, %v1747
      %v1877 = vmul.f32 %v1750, %v1750
      %v1878 = vmul.f32 %v1755, %v1755
      %v1879 = vmul.f32 %v1758, %v1758
      %v1880 = vmul.f32 %v1763, %v1763
      %v1881 = vmul.f32 %v1766, %v1766
      %v1882 = vmul.f32 %v1771, %v1771
      %v1883 = vmul.f32 %v1774, %v1774
      %v1884 = vmul.f32 %v1779, %v1779
      %v1885 = vmul.f32 %v1782, %v1782
      %v1886 = vsel %vm216, %v1854, 0.0
      %v1887 = vsel %vm216, %v1855, 0.0
      %v1888 = vadd.f32 %v1886, %v1887
      %v1889 = vsel %vm216, %v1856, 0.0
      %v1890 = vadd.f32 %v1888, %v1889
      %v1891 = vsel %vm216, %v1857, 0.0
      %v1892 = vadd.f32 %v1890, %v1891
      %v1893 = vsel %vm216, %v1858, 0.0
      %v1894 = vadd.f32 %v1892, %v1893
      %v1895 = vsel %vm216, %v1859, 0.0
      %v1896 = vadd.f32 %v1894, %v1895
      %v1897 = vsel %vm216, %v1860, 0.0
      %v1898 = vadd.f32 %v1896, %v1897
      %v1899 = vsel %vm216, %v1861, 0.0
      %v1900 = vadd.f32 %v1898, %v1899
      %v1901 = vsel %vm216, %v1862, 0.0
      %v1902 = vadd.f32 %v1900, %v1901
      %v1903 = vsel %vm216, %v1863, 0.0
      %v1904 = vadd.f32 %v1902, %v1903
      %v1905 = vsel %vm216, %v1864, 0.0
      %v1906 = vadd.f32 %v1904, %v1905
      %v1907 = vsel %vm216, %v1865, 0.0
      %v1908 = vadd.f32 %v1906, %v1907
      %v1909 = vsel %vm216, %v1866, 0.0
      %v1910 = vadd.f32 %v1908, %v1909
      %v1911 = vsel %vm216, %v1867, 0.0
      %v1912 = vadd.f32 %v1910, %v1911
      %v1913 = vsel %vm216, %v1868, 0.0
      %v1914 = vadd.f32 %v1912, %v1913
      %v1915 = vsel %vm216, %v1869, 0.0
      %v1916 = vadd.f32 %v1914, %v1915
      %v1917 = vsel %vm216, %v1870, 0.0
      %v1918 = vadd.f32 %v1916, %v1917
      %v1919 = vsel %vm216, %v1871, 0.0
      %v1920 = vadd.f32 %v1918, %v1919
      %v1921 = vsel %vm216, %v1872, 0.0
      %v1922 = vadd.f32 %v1920, %v1921
      %v1923 = vsel %vm216, %v1873, 0.0
      %v1924 = vadd.f32 %v1922, %v1923
      %v1925 = vsel %vm216, %v1874, 0.0
      %v1926 = vadd.f32 %v1924, %v1925
      %v1927 = vsel %vm216, %v1875, 0.0
      %v1928 = vadd.f32 %v1926, %v1927
      %v1929 = vsel %vm216, %v1876, 0.0
      %v1930 = vadd.f32 %v1928, %v1929
      %v1931 = vsel %vm216, %v1877, 0.0
      %v1932 = vadd.f32 %v1930, %v1931
      %v1933 = vsel %vm216, %v1878, 0.0
      %v1934 = vadd.f32 %v1932, %v1933
      %v1935 = vsel %vm216, %v1879, 0.0
      %v1936 = vadd.f32 %v1934, %v1935
      %v1937 = vsel %vm216, %v1880, 0.0
      %v1938 = vadd.f32 %v1936, %v1937
      %v1939 = vsel %vm216, %v1881, 0.0
      %v1940 = vadd.f32 %v1938, %v1939
      %v1941 = vsel %vm216, %v1882, 0.0
      %v1942 = vadd.f32 %v1940, %v1941
      %v1943 = vsel %vm216, %v1883, 0.0
      %v1944 = vadd.f32 %v1942, %v1943
      %v1945 = vsel %vm216, %v1884, 0.0
      %v1946 = vadd.f32 %v1944, %v1945
      %v1947 = vsel %vm216, %v1885, 0.0
      %v1948 = vadd.f32 %v1946, %v1947
      %v1949 = vrot.slane %v1948, 4
      %v1950 = vadd.f32 %v1948, %v1949
      %v1951 = vrot.slane %v1950, 2
      %v1952 = vadd.f32 %v1950, %v1951
      %v1953 = vrot.slane %v1952, 1
      %v1954 = vadd.f32 %v1952, %v1953
      %v1955 = vsel %vm310, %v1853, %v1954
      %vm1956 = vcmask 123904
      %1957 = vst.msk [vmem:[%s181] sm:$0x3] %vm1956, %v1955
      %1958 = vst.msk [vmem:[%s177] sm:$0xff] %vm216, %v1659
      %1959 = vst.msk [vmem:[%s177 + $0x8] sm:$0xff] %vm216, %v1662
      %1960 = vst.msk [vmem:[%s177 + $0x10] sm:$0xff] %vm216, %v1667
      %1961 = vst.msk [vmem:[%s177 + $0x18] sm:$0xff] %vm216, %v1670
      %1962 = vst.msk [vmem:[%s177 + $0x20] sm:$0xff] %vm216, %v1675
      %1963 = vst.msk [vmem:[%s177 + $0x28] sm:$0xff] %vm216, %v1678
      %1964 = vst.msk [vmem:[%s177 + $0x30] sm:$0xff] %vm216, %v1683
      %1965 = vst.msk [vmem:[%s177 + $0x38] sm:$0xff] %vm216, %v1686
      %1966 = vst.msk [vmem:[%s177 + $0x40] sm:$0xff] %vm216, %v1691
      %1967 = vst.msk [vmem:[%s177 + $0x48] sm:$0xff] %vm216, %v1694
      %1968 = vst.msk [vmem:[%s177 + $0x50] sm:$0xff] %vm216, %v1699
      %1969 = vst.msk [vmem:[%s177 + $0x58] sm:$0xff] %vm216, %v1702
      %1970 = vst.msk [vmem:[%s177 + $0x60] sm:$0xff] %vm216, %v1707
      %1971 = vst.msk [vmem:[%s177 + $0x68] sm:$0xff] %vm216, %v1710
      %1972 = vst.msk [vmem:[%s177 + $0x70] sm:$0xff] %vm216, %v1715
      %1973 = vst.msk [vmem:[%s177 + $0x78] sm:$0xff] %vm216, %v1718
      %1974 = vst.msk [vmem:[%s177 + $0x80] sm:$0xff] %vm216, %v1723
      %1975 = vst.msk [vmem:[%s177 + $0x88] sm:$0xff] %vm216, %v1726
      %1976 = vst.msk [vmem:[%s177 + $0x90] sm:$0xff] %vm216, %v1731
      %1977 = vst.msk [vmem:[%s177 + $0x98] sm:$0xff] %vm216, %v1734
      %1978 = vst.msk [vmem:[%s177 + $0xa0] sm:$0xff] %vm216, %v1739
      %1979 = vst.msk [vmem:[%s177 + $0xa8] sm:$0xff] %vm216, %v1742
      %1980 = vst.msk [vmem:[%s177 + $0xb0] sm:$0xff] %vm216, %v1747
      %1981 = vst.msk [vmem:[%s177 + $0xb8] sm:$0xff] %vm216, %v1750
      %1982 = vst.msk [vmem:[%s177 + $0xc0] sm:$0xff] %vm216, %v1755
      %1983 = vst.msk [vmem:[%s177 + $0xc8] sm:$0xff] %vm216, %v1758
      %1984 = vst.msk [vmem:[%s177 + $0xd0] sm:$0xff] %vm216, %v1763
      %1985 = vst.msk [vmem:[%s177 + $0xd8] sm:$0xff] %vm216, %v1766
      %1986 = vst.msk [vmem:[%s177 + $0xe0] sm:$0xff] %vm216, %v1771
      %1987 = vst.msk [vmem:[%s177 + $0xe8] sm:$0xff] %vm216, %v1774
      %1988 = vst.msk [vmem:[%s177 + $0xf0] sm:$0xff] %vm216, %v1779
      %1989 = vst.msk [vmem:[%s177 + $0xf8] sm:$0xff] %vm216, %v1782
      %p1990 = scmp.lt.s32.totalorder %s15, 1
      %s1991 = scalar_select %p1990, %s15, 1
      %s1992 = smul.addr %s1991, 32
      %s1993 = smul.addr %s1992, 8
      %s1994 = scalar_lea.vmem %s2, %s1993
      %p1995 = scmp.lt.s32.totalorder %s15, 1
      %s1996 = scalar_select %p1995, %s15, 1
      %s1997 = smul.addr %s1996, 2
      %s1998 = scalar_lea.vmem %s3, %s1997
      // Predicated region
      $region29: #{basic_block_forward.3} parent=27 // pred_check
        %p1999 = pneg %p80
      $region30: #{basic_block_forward.3} parent=27 // pred_check_branch
        %2001 = sbr.rel (%p1999) target = $region32
      $region31: #{basic_block_forward.3} parent=27 // pred_region
        _
      $region32: #{basic_block_forward.3} parent=27 // pred_fallthru
        _
      // Predicated region
      $region33: #{basic_block_forward.3} parent=27 // pred_check
        %p2002 = pneg %p106
      $region34: #{basic_block_forward.3} parent=27 // pred_check_branch
        %2004 = sbr.rel (%p2002) target = $region36
      $region35: #{basic_block_forward.3} parent=27 // pred_region
        _
      $region36: #{basic_block_forward.3} parent=27 // pred_fallthru
        _
    $region28: #{basic_block_forward.3} parent=5 // pred_fallthru
      _
    %p2005 = scmp.le.s32.totalorder 2, %s10
    // Predicated region
    $region37: #{basic_block_forward.3} parent=5 // pred_check
      %p2006 = pneg %p2005
    $region38: #{basic_block_forward.3} parent=5 // pred_check_branch
      %2008 = sbr.rel (%p2006) target = $region40
    $region39: #{basic_block_forward.3} parent=5 // pred_region
      %s2009 = ssub.s32 %s10, 2
      // Predicated region
      $region41: #{basic_block_forward.3} parent=39 // pred_check
        %p2010 = pneg %p86
      $region42: #{basic_block_forward.3} parent=39 // pred_check_branch
        %2012 = sbr.rel (%p2010) target = $region44
      $region43: #{basic_block_forward.3} parent=39 // pred_region
        %p2013 = scmp.lt.s32.totalorder %s16, 1
        %s2014 = scalar_select %p2013, %s16, 1
        %s2015 = smul.addr %s2014, 32
        %s2016 = smul.addr %s2015, 8
        %s2017 = scalar_lea.vmem %s2, %s2016
      $region44: #{basic_block_forward.3} parent=39 // pred_fallthru
        _
      // Predicated region
      $region45: #{basic_block_forward.3} parent=39 // pred_check
        %p2018 = pneg %p112
      $region46: #{basic_block_forward.3} parent=39 // pred_check_branch
        %2020 = sbr.rel (%p2018) target = $region48
      $region47: #{basic_block_forward.3} parent=39 // pred_region
        %p2021 = scmp.lt.s32.totalorder %s16, 1
        %s2022 = scalar_select %p2021, %s16, 1
        %s2023 = smul.addr %s2022, 2
        %s2024 = scalar_lea.vmem %s3, %s2023
      $region48: #{basic_block_forward.3} parent=39 // pred_fallthru
        _
    $region40: #{basic_block_forward.3} parent=5 // pred_fallthru
      _
  $region6: #{basic_block_forward.3} parent=0 // loop_footer
    %s14 = sadd.s32 1, %s10
  $region7: #{basic_block_forward.3} parent=0 // loop_footer_branch
    %9 = sbr.rel target = $region3
  $region8: #{basic_block_forward.3} parent=0 // loop_exit
    _

// kernel: basic_block_forward.4
$region0: #{basic_block_forward.4}
  #allocation0 [shape = 'u32[]', space=smem, size = 0x4, offset = 0x4, fixed_abs, tag = 'smem constant byte address 0x4 - core index']
  #allocation1 [shape = 'u32[144,128]{1,0:T(1,128)}', space=vmem, size = 0x12000, scoped, tag = 'internal scratch']
  #allocation2 [shape = 'f32[16,16,144]{2,1,0:T(8,128)}', space=vmem, size = 0x40000, scoped, tag = 'scratch operand']
  %s0 = inlined_call_operand.vmem [shape: f32[2,16,16,16], index: 0, kind: input, shape index: {}]
  %s1 = inlined_call_operand.vmem [shape: bf16[144,16], index: 1, kind: input, shape index: {}]
  %s2 = inlined_call_operand.vmem [shape: f32[1,16], index: 2, kind: input, shape index: {}]
  %s3 = inlined_call_operand.vmem [shape: f32[1,16], index: 3, kind: input, shape index: {}]
  %s4 = inlined_call_operand.vmem [shape: f32[2,16,16,16], index: 4, kind: output, shape index: {0}]
  %s5 = inlined_call_operand.vmem [shape: f32[2,2,16], index: 5, kind: output, shape index: {1}]
  %6 = xla_tuple %s4, %s5
  %s7 = sld [smem:[#allocation0]]
  $region57: #{basic_block_forward.4} parent=0
    _
  %s9 = ssub.s32 1, %s7
  %s10 = scalar_select 0, %s9, %s7
  loop: start=0, step=1, limit=4
  $region2: #{basic_block_forward.4} parent=0 // loop_pre_header
    _
  $region3: #{basic_block_forward.4} parent=0 // loop_header
    %s12 = sphi 0, %s16
    %p13 = scmp.ge.s32.totalorder %s12, 4
    %s22 = sphi 0, %s24
    %s25 = sphi 0, %s22
    %s26 = sphi 0, %s25
    %s42 = sphi 0, %s26
    %s46 = sphi 0, %s46
    %s48 = sphi 0, %s46
    %s49 = sphi 0, %s48
    %s63 = sphi 0, %s49
    %s67 = sphi 0, %s67
    %s69 = sphi 0, %s67
    %s70 = sphi 0, %s69
    %s84 = sphi 0, %s70
    %s88 = sphi 0, %s88
    %s90 = sphi 0, %s88
    %s91 = sphi 0, %s90
    %s105 = sphi 0, %s91
    %s111 = sphi 0, %s113
    %s114 = sphi 0, %s111
    %s115 = sphi 0, %s114
    %s131 = sphi 0, %s115
    %s137 = sphi 0, %s139
    %s140 = sphi 0, %s137
    %s141 = sphi 0, %s140
    %s157 = sphi 0, %s141
  $region4: #{basic_block_forward.4} parent=0 // loop_header_branch
    %15 = sbr.rel (%p13) target = $region8
  $region5: #{basic_block_forward.4} parent=0 // loop_body
    %s17 = ssub.s32 %s12, 1
    %s18 = ssub.s32 %s12, 2
    %s19 = sadd.s32 %s12, 1
    %s20 = ssub.s32 %s12, %s19
    %p21 = scmp.eq.s32.totalorder %s20, 0
    %s23 = sadd.s32 %s22, 1
    %s24 = scalar_select %p21, %s22, %s23
    %p27 = pneg %p21
    %p28 = scmp.eq.s32.totalorder %s12, 1
    %p29 = por %p27, %p28
    %p30 = scmp.ne.s32.totalorder %s22, %s25
    %p31 = scmp.eq.s32.totalorder %s12, 0
    %p32 = por %p30, %p31
    %p33 = scmp.ne.s32.totalorder %s22, %s25
    %p34 = scmp.eq.s32.totalorder %s17, 1
    %p35 = por %p33, %p34
    %p36 = scmp.ne.s32.totalorder %s25, %s26
    %p37 = scmp.eq.s32.totalorder %s17, 0
    %p38 = por %p36, %p37
    %p39 = scmp.ne.s32.totalorder %s25, %s26
    %p40 = scmp.eq.s32.totalorder %s18, 1
    %p41 = por %p39, %p40
    %p43 = scmp.ne.s32.totalorder %s26, %s42
    %p44 = scmp.eq.s32.totalorder %s18, 0
    %p45 = por %p43, %p44
    %s47 = sadd.s32 %s46, 1
    %p50 = scmp.eq.s32.totalorder %s12, 1
    %p51 = scmp.ne.s32.totalorder %s46, %s48
    %p52 = scmp.eq.s32.totalorder %s12, 0
    %p53 = por %p51, %p52
    %p54 = scmp.ne.s32.totalorder %s46, %s48
    %p55 = scmp.eq.s32.totalorder %s17, 1
    %p56 = por %p54, %p55
    %p57 = scmp.ne.s32.totalorder %s48, %s49
    %p58 = scmp.eq.s32.totalorder %s17, 0
    %p59 = por %p57, %p58
    %p60 = scmp.ne.s32.totalorder %s48, %s49
    %p61 = scmp.eq.s32.totalorder %s18, 1
    %p62 = por %p60, %p61
    %p64 = scmp.ne.s32.totalorder %s49, %s63
    %p65 = scmp.eq.s32.totalorder %s18, 0
    %p66 = por %p64, %p65
    %s68 = sadd.s32 %s67, 1
    %p71 = scmp.eq.s32.totalorder %s12, 1
    %p72 = scmp.ne.s32.totalorder %s67, %s69
    %p73 = scmp.eq.s32.totalorder %s12, 0
    %p74 = por %p72, %p73
    %p75 = scmp.ne.s32.totalorder %s67, %s69
    %p76 = scmp.eq.s32.totalorder %s17, 1
    %p77 = por %p75, %p76
    %p78 = scmp.ne.s32.totalorder %s69, %s70
    %p79 = scmp.eq.s32.totalorder %s17, 0
    %p80 = por %p78, %p79
    %p81 = scmp.ne.s32.totalorder %s69, %s70
    %p82 = scmp.eq.s32.totalorder %s18, 1
    %p83 = por %p81, %p82
    %p85 = scmp.ne.s32.totalorder %s70, %s84
    %p86 = scmp.eq.s32.totalorder %s18, 0
    %p87 = por %p85, %p86
    %s89 = sadd.s32 %s88, 1
    %p92 = scmp.eq.s32.totalorder %s12, 1
    %p93 = scmp.ne.s32.totalorder %s88, %s90
    %p94 = scmp.eq.s32.totalorder %s12, 0
    %p95 = por %p93, %p94
    %p96 = scmp.ne.s32.totalorder %s88, %s90
    %p97 = scmp.eq.s32.totalorder %s17, 1
    %p98 = por %p96, %p97
    %p99 = scmp.ne.s32.totalorder %s90, %s91
    %p100 = scmp.eq.s32.totalorder %s17, 0
    %p101 = por %p99, %p100
    %p102 = scmp.ne.s32.totalorder %s90, %s91
    %p103 = scmp.eq.s32.totalorder %s18, 1
    %p104 = por %p102, %p103
    %p106 = scmp.ne.s32.totalorder %s91, %s105
    %p107 = scmp.eq.s32.totalorder %s18, 0
    %p108 = por %p106, %p107
    %s109 = ssub.s32 %s12, %s19
    %p110 = scmp.eq.s32.totalorder %s109, 0
    %s112 = sadd.s32 %s111, 1
    %s113 = scalar_select %p110, %s111, %s112
    %p116 = pneg %p110
    %p117 = scmp.eq.s32.totalorder %s12, 1
    %p118 = por %p116, %p117
    %p119 = scmp.ne.s32.totalorder %s111, %s114
    %p120 = scmp.eq.s32.totalorder %s12, 0
    %p121 = por %p119, %p120
    %p122 = scmp.ne.s32.totalorder %s111, %s114
    %p123 = scmp.eq.s32.totalorder %s17, 1
    %p124 = por %p122, %p123
    %p125 = scmp.ne.s32.totalorder %s114, %s115
    %p126 = scmp.eq.s32.totalorder %s17, 0
    %p127 = por %p125, %p126
    %p128 = scmp.ne.s32.totalorder %s114, %s115
    %p129 = scmp.eq.s32.totalorder %s18, 1
    %p130 = por %p128, %p129
    %p132 = scmp.ne.s32.totalorder %s115, %s131
    %p133 = scmp.eq.s32.totalorder %s18, 0
    %p134 = por %p132, %p133
    %s135 = ssub.s32 %s12, %s19
    %p136 = scmp.eq.s32.totalorder %s135, 0
    %s138 = sadd.s32 %s137, 1
    %s139 = scalar_select %p136, %s137, %s138
    %p142 = pneg %p136
    %p143 = scmp.eq.s32.totalorder %s12, 1
    %p144 = por %p142, %p143
    %p145 = scmp.ne.s32.totalorder %s137, %s140
    %p146 = scmp.eq.s32.totalorder %s12, 0
    %p147 = por %p145, %p146
    %p148 = scmp.ne.s32.totalorder %s137, %s140
    %p149 = scmp.eq.s32.totalorder %s17, 1
    %p150 = por %p148, %p149
    %p151 = scmp.ne.s32.totalorder %s140, %s141
    %p152 = scmp.eq.s32.totalorder %s17, 0
    %p153 = por %p151, %p152
    %p154 = scmp.ne.s32.totalorder %s140, %s141
    %p155 = scmp.eq.s32.totalorder %s18, 1
    %p156 = por %p154, %p155
    %p158 = scmp.ne.s32.totalorder %s141, %s157
    %p159 = scmp.eq.s32.totalorder %s18, 0
    %p160 = por %p158, %p159
    %p161 = scmp.le.s32.totalorder 1, %s12
    %p162 = scmp.lt.s32.totalorder %s12, 3
    %p163 = pnand %p161, %p162
    %p164 = pneg %p163
    // Predicated region
    $region9: #{basic_block_forward.4} parent=5 // pred_check
      _
    $region10: #{basic_block_forward.4} parent=5 // pred_check_branch
      %166 = sbr.rel (%p163) target = $region12
    $region11: #{basic_block_forward.4} parent=5 // pred_region
      %s167 = ssub.s32 %s12, 1
      // Predicated region
      $region13: #{basic_block_forward.4} parent=11 // pred_check
        %p168 = pneg %p59
      $region14: #{basic_block_forward.4} parent=11 // pred_check_branch
        %170 = sbr.rel (%p168) target = $region16
      $region15: #{basic_block_forward.4} parent=11 // pred_region
        _
      $region16: #{basic_block_forward.4} parent=11 // pred_fallthru
        _
      // Predicated region
      $region17: #{basic_block_forward.4} parent=11 // pred_check
        %p171 = pneg %p80
      $region18: #{basic_block_forward.4} parent=11 // pred_check_branch
        %173 = sbr.rel (%p171) target = $region20
      $region19: #{basic_block_forward.4} parent=11 // pred_region
        _
      $region20: #{basic_block_forward.4} parent=11 // pred_fallthru
        _
      // Predicated region
      $region21: #{basic_block_forward.4} parent=11 // pred_check
        %p174 = pneg %p101
      $region22: #{basic_block_forward.4} parent=11 // pred_check_branch
        %176 = sbr.rel (%p174) target = $region24
      $region23: #{basic_block_forward.4} parent=11 // pred_region
        _
      $region24: #{basic_block_forward.4} parent=11 // pred_fallthru
        _
    $region12: #{basic_block_forward.4} parent=5 // pred_fallthru
      _
    %p177 = scmp.lt.s32.totalorder %s12, 2
    // Predicated region
    $region25: #{basic_block_forward.4} parent=5 // pred_check
      %p178 = pneg %p177
    $region26: #{basic_block_forward.4} parent=5 // pred_check_branch
      %180 = sbr.rel (%p178) target = $region28
    $region27: #{basic_block_forward.4} parent=5 // pred_region
      // Predicated region
      $region29: #{basic_block_forward.4} parent=27 // pred_check
        %p181 = pneg %p32
      $region30: #{basic_block_forward.4} parent=27 // pred_check_branch
        %183 = sbr.rel (%p181) target = $region32
      $region31: #{basic_block_forward.4} parent=27 // pred_region
        %p184 = scmp.lt.s32.totalorder %s12, 1
        %s185 = scalar_select %p184, %s12, 1
        %s186 = smul.addr %s185, 32
        %s187 = smul.addr %s186, 8
        %s188 = scalar_lea.vmem %s0, %s187
      $region32: #{basic_block_forward.4} parent=27 // pred_fallthru
        _
    $region28: #{basic_block_forward.4} parent=5 // pred_fallthru
      _
    %p189 = scmp.le.s32.totalorder 1, %s12
    %p190 = scmp.lt.s32.totalorder %s12, 3
    %p191 = pnand %p189, %p190
    %p192 = pneg %p191
    // Predicated region
    $region33: #{basic_block_forward.4} parent=5 // pred_check
      _
    $region34: #{basic_block_forward.4} parent=5 // pred_check_branch
      %194 = sbr.rel (%p191) target = $region36
    $region35: #{basic_block_forward.4} parent=5 // pred_region
      %s195 = ssub.s32 %s12, 1
      %p196 = scmp.lt.s32.totalorder %s17, 1
      %s197 = scalar_select %p196, %s17, 1
      %s198 = smul.addr %s197, 32
      %s199 = smul.addr %s198, 8
      %s200 = scalar_lea.vmem %s0, %s199
      %p201 = pneg %p38
      %p202 = pneg %p35
      %p203 = pneg %p59
      %p204 = pneg %p56
      %p205 = pneg %p80
      %p206 = pneg %p77
      %p207 = pneg %p101
      %p208 = pneg %p98
      %p209 = pneg %p127
      %p210 = pneg %p124
      %p211 = scmp.lt.s32.totalorder %s17, 1
      %s212 = scalar_select %p211, %s17, 1
      %s213 = smul.addr %s212, 32
      %s214 = smul.addr %s213, 8
      %s215 = scalar_lea.vmem %s4, %s214
      %p216 = pneg %p153
      %p217 = pneg %p150
      %p218 = scmp.lt.s32.totalorder %s17, 1
      %s219 = scalar_select %p218, %s17, 1
      %s220 = smul.addr %s219, 2
      %s221 = scalar_lea.vmem %s5, %s220
      %p222 = scmp.lt.s32.totalorder %s17, 1
      %s223 = scalar_select %p222, %s17, 1
      %s224 = smul.addr %s223, 32
      %s225 = smul.addr %s224, 8
      %s226 = scalar_lea.vmem %s0, %s225
      %p227 = scmp.lt.s32.totalorder %s17, 1
      %s228 = scalar_select %p227, %s17, 1
      %s229 = smul.addr %s228, 32
      %s230 = smul.addr %s229, 8
      %s231 = scalar_lea.vmem %s4, %s230
      %p232 = scmp.lt.s32.totalorder %s17, 1
      %s233 = scalar_select %p232, %s17, 1
      %s234 = smul.addr %s233, 2
      %s235 = scalar_lea.vmem %s5, %s234
      %v237 = vld [vmem:[%s226] sm:$0xff]
      %v238 = vld [vmem:[%s226 + $0x8] sm:$0xff]
      %v239 = vld [vmem:[%s226 + $0x10] sm:$0xff]
      %v240 = vld [vmem:[%s226 + $0x18] sm:$0xff]
      %v241 = vld [vmem:[%s226 + $0x20] sm:$0xff]
      %v242 = vld [vmem:[%s226 + $0x28] sm:$0xff]
      %v243 = vld [vmem:[%s226 + $0x30] sm:$0xff]
      %v244 = vld [vmem:[%s226 + $0x38] sm:$0xff]
      %v245 = vld [vmem:[%s226 + $0x40] sm:$0xff]
      %v246 = vld [vmem:[%s226 + $0x48] sm:$0xff]
      %v247 = vld [vmem:[%s226 + $0x50] sm:$0xff]
      %v248 = vld [vmem:[%s226 + $0x58] sm:$0xff]
      %v249 = vld [vmem:[%s226 + $0x60] sm:$0xff]
      %v250 = vld [vmem:[%s226 + $0x68] sm:$0xff]
      %v251 = vld [vmem:[%s226 + $0x70] sm:$0xff]
      %v252 = vld [vmem:[%s226 + $0x78] sm:$0xff]
      %v253 = vld [vmem:[%s226 + $0x80] sm:$0xff]
      %v254 = vld [vmem:[%s226 + $0x88] sm:$0xff]
      %v255 = vld [vmem:[%s226 + $0x90] sm:$0xff]
      %v256 = vld [vmem:[%s226 + $0x98] sm:$0xff]
      %v257 = vld [vmem:[%s226 + $0xa0] sm:$0xff]
      %v258 = vld [vmem:[%s226 + $0xa8] sm:$0xff]
      %v259 = vld [vmem:[%s226 + $0xb0] sm:$0xff]
      %v260 = vld [vmem:[%s226 + $0xb8] sm:$0xff]
      %v261 = vld [vmem:[%s226 + $0xc0] sm:$0xff]
      %v262 = vld [vmem:[%s226 + $0xc8] sm:$0xff]
      %v263 = vld [vmem:[%s226 + $0xd0] sm:$0xff]
      %v264 = vld [vmem:[%s226 + $0xd8] sm:$0xff]
      %v265 = vld [vmem:[%s226 + $0xe0] sm:$0xff]
      %v266 = vld [vmem:[%s226 + $0xe8] sm:$0xff]
      %v267 = vld [vmem:[%s226 + $0xf0] sm:$0xff]
      %v268 = vld [vmem:[%s226 + $0xf8] sm:$0xff]
      %v269 = vld [vmem:[%s2] sm:$0x1]
      %v270 = vld [vmem:[%s3] sm:$0x1]
      %v272 = vlaneseq
      %v273 = vshrl.u32 %v272, 7
      %v274 = vsub.s32 0, %v273
      %v275 = vrot.slane %v269, %v274
      %v277 = vmul.f32 %v237, %v275
      %v278 = vmul.f32 %v238, %v275
      %v279 = vmul.f32 %v239, %v275
      %v280 = vmul.f32 %v240, %v275
      %v281 = vmul.f32 %v241, %v275
      %v282 = vmul.f32 %v242, %v275
      %v283 = vmul.f32 %v243, %v275
      %v284 = vmul.f32 %v244, %v275
      %v285 = vmul.f32 %v245, %v275
      %v286 = vmul.f32 %v246, %v275
      %v287 = vmul.f32 %v247, %v275
      %v288 = vmul.f32 %v248, %v275
      %v289 = vmul.f32 %v249, %v275
      %v290 = vmul.f32 %v250, %v275
      %v291 = vmul.f32 %v251, %v275
      %v292 = vmul.f32 %v252, %v275
      %v293 = vmul.f32 %v253, %v275
      %v294 = vmul.f32 %v254, %v275
      %v295 = vmul.f32 %v255, %v275
      %v296 = vmul.f32 %v256, %v275
      %v297 = vmul.f32 %v257, %v275
      %v298 = vmul.f32 %v258, %v275
      %v299 = vmul.f32 %v259, %v275
      %v300 = vmul.f32 %v260, %v275
      %v301 = vmul.f32 %v261, %v275
      %v302 = vmul.f32 %v262, %v275
      %v303 = vmul.f32 %v263, %v275
      %v304 = vmul.f32 %v264, %v275
      %v305 = vmul.f32 %v265, %v275
      %v306 = vmul.f32 %v266, %v275
      %v307 = vmul.f32 %v267, %v275
      %v308 = vmul.f32 %v268, %v275
      %v310 = vlaneseq
      %v311 = vshrl.u32 %v310, 7
      %v312 = vsub.s32 0, %v311
      %v313 = vrot.slane %v270, %v312
      %v315 = vadd.f32 %v277, %v313
      %v316 = vadd.f32 %v278, %v313
      %v317 = vadd.f32 %v279, %v313
      %v318 = vadd.f32 %v280, %v313
      %v319 = vadd.f32 %v281, %v313
      %v320 = vadd.f32 %v282, %v313
      %v321 = vadd.f32 %v283, %v313
      %v322 = vadd.f32 %v284, %v313
      %v323 = vadd.f32 %v285, %v313
      %v324 = vadd.f32 %v286, %v313
      %v325 = vadd.f32 %v287, %v313
      %v326 = vadd.f32 %v288, %v313
      %v327 = vadd.f32 %v289, %v313
      %v328 = vadd.f32 %v290, %v313
      %v329 = vadd.f32 %v291, %v313
      %v330 = vadd.f32 %v292, %v313
      %v331 = vadd.f32 %v293, %v313
      %v332 = vadd.f32 %v294, %v313
      %v333 = vadd.f32 %v295, %v313
      %v334 = vadd.f32 %v296, %v313
      %v335 = vadd.f32 %v297, %v313
      %v336 = vadd.f32 %v298, %v313
      %v337 = vadd.f32 %v299, %v313
      %v338 = vadd.f32 %v300, %v313
      %v339 = vadd.f32 %v301, %v313
      %v340 = vadd.f32 %v302, %v313
      %v341 = vadd.f32 %v303, %v313
      %v342 = vadd.f32 %v304, %v313
      %v343 = vadd.f32 %v305, %v313
      %v344 = vadd.f32 %v306, %v313
      %v345 = vadd.f32 %v307, %v313
      %v346 = vadd.f32 %v308, %v313
      %v347 = vmax.f32 %v315, 0.0
      %v348 = vmax.f32 %v316, 0.0
      %v349 = vmax.f32 %v317, 0.0
      %v350 = vmax.f32 %v318, 0.0
      %v351 = vmax.f32 %v319, 0.0
      %v352 = vmax.f32 %v320, 0.0
      %v353 = vmax.f32 %v321, 0.0
      %v354 = vmax.f32 %v322, 0.0
      %v355 = vmax.f32 %v323, 0.0
      %v356 = vmax.f32 %v324, 0.0
      %v357 = vmax.f32 %v325, 0.0
      %v358 = vmax.f32 %v326, 0.0
      %v359 = vmax.f32 %v327, 0.0
      %v360 = vmax.f32 %v328, 0.0
      %v361 = vmax.f32 %v329, 0.0
      %v362 = vmax.f32 %v330, 0.0
      %v363 = vmax.f32 %v331, 0.0
      %v364 = vmax.f32 %v332, 0.0
      %v365 = vmax.f32 %v333, 0.0
      %v366 = vmax.f32 %v334, 0.0
      %v367 = vmax.f32 %v335, 0.0
      %v368 = vmax.f32 %v336, 0.0
      %v369 = vmax.f32 %v337, 0.0
      %v370 = vmax.f32 %v338, 0.0
      %v371 = vmax.f32 %v339, 0.0
      %v372 = vmax.f32 %v340, 0.0
      %v373 = vmax.f32 %v341, 0.0
      %v374 = vmax.f32 %v342, 0.0
      %v375 = vmax.f32 %v343, 0.0
      %v376 = vmax.f32 %v344, 0.0
      %v377 = vmax.f32 %v345, 0.0
      %v378 = vmax.f32 %v346, 0.0
      %379 = vst [vmem:[#allocation2] sm:$0xff] 0.0
      %vm380 = vcmask 130048
      %381 = vst.msk [vmem:[#allocation2 + $0x8] sm:$0xff] %vm380, 0.0
      %382 = vst [vmem:[#allocation2 + $0x10] sm:$0xff] 0.0
      %383 = vst.msk [vmem:[#allocation2 + $0x18] sm:$0xff] %vm380, 0.0
      %384 = vst [vmem:[#allocation2 + $0x20] sm:$0xff] 0.0
      %385 = vst.msk [vmem:[#allocation2 + $0x28] sm:$0xff] %vm380, 0.0
      %386 = vst [vmem:[#allocation2 + $0x30] sm:$0xff] 0.0
      %387 = vst.msk [vmem:[#allocation2 + $0x38] sm:$0xff] %vm380, 0.0
      %388 = vst [vmem:[#allocation2 + $0x40] sm:$0xff] 0.0
      %389 = vst.msk [vmem:[#allocation2 + $0x48] sm:$0xff] %vm380, 0.0
      %390 = vst [vmem:[#allocation2 + $0x50] sm:$0xff] 0.0
      %391 = vst.msk [vmem:[#allocation2 + $0x58] sm:$0xff] %vm380, 0.0
      %392 = vst [vmem:[#allocation2 + $0x60] sm:$0xff] 0.0
      %393 = vst.msk [vmem:[#allocation2 + $0x68] sm:$0xff] %vm380, 0.0
      %394 = vst [vmem:[#allocation2 + $0x70] sm:$0xff] 0.0
      %395 = vst.msk [vmem:[#allocation2 + $0x78] sm:$0xff] %vm380, 0.0
      %396 = vst [vmem:[#allocation2 + $0x80] sm:$0xff] 0.0
      %397 = vst.msk [vmem:[#allocation2 + $0x88] sm:$0xff] %vm380, 0.0
      %398 = vst [vmem:[#allocation2 + $0x90] sm:$0xff] 0.0
      %399 = vst.msk [vmem:[#allocation2 + $0x98] sm:$0xff] %vm380, 0.0
      %400 = vst [vmem:[#allocation2 + $0xa0] sm:$0xff] 0.0
      %401 = vst.msk [vmem:[#allocation2 + $0xa8] sm:$0xff] %vm380, 0.0
      %402 = vst [vmem:[#allocation2 + $0xb0] sm:$0xff] 0.0
      %403 = vst.msk [vmem:[#allocation2 + $0xb8] sm:$0xff] %vm380, 0.0
      %404 = vst [vmem:[#allocation2 + $0xc0] sm:$0xff] 0.0
      %405 = vst.msk [vmem:[#allocation2 + $0xc8] sm:$0xff] %vm380, 0.0
      %406 = vst [vmem:[#allocation2 + $0xd0] sm:$0xff] 0.0
      %407 = vst.msk [vmem:[#allocation2 + $0xd8] sm:$0xff] %vm380, 0.0
      %408 = vst [vmem:[#allocation2 + $0xe0] sm:$0xff] 0.0
      %409 = vst.msk [vmem:[#allocation2 + $0xe8] sm:$0xff] %vm380, 0.0
      %410 = vst [vmem:[#allocation2 + $0xf0] sm:$0xff] 0.0
      %411 = vst.msk [vmem:[#allocation2 + $0xf8] sm:$0xff] %vm380, 0.0
      %412 = vst [vmem:[#allocation2 + $0x100] sm:$0xff] 0.0
      %413 = vst.msk [vmem:[#allocation2 + $0x108] sm:$0xff] %vm380, 0.0
      %414 = vst [vmem:[#allocation2 + $0x110] sm:$0xff] 0.0
      %415 = vst.msk [vmem:[#allocation2 + $0x118] sm:$0xff] %vm380, 0.0
      %416 = vst [vmem:[#allocation2 + $0x120] sm:$0xff] 0.0
      %417 = vst.msk [vmem:[#allocation2 + $0x128] sm:$0xff] %vm380, 0.0
      %418 = vst [vmem:[#allocation2 + $0x130] sm:$0xff] 0.0
      %419 = vst.msk [vmem:[#allocation2 + $0x138] sm:$0xff] %vm380, 0.0
      %420 = vst [vmem:[#allocation2 + $0x140] sm:$0xff] 0.0
      %421 = vst.msk [vmem:[#allocation2 + $0x148] sm:$0xff] %vm380, 0.0
      %422 = vst [vmem:[#allocation2 + $0x150] sm:$0xff] 0.0
      %423 = vst.msk [vmem:[#allocation2 + $0x158] sm:$0xff] %vm380, 0.0
      %424 = vst [vmem:[#allocation2 + $0x160] sm:$0xff] 0.0
      %425 = vst.msk [vmem:[#allocation2 + $0x168] sm:$0xff] %vm380, 0.0
      %426 = vst [vmem:[#allocation2 + $0x170] sm:$0xff] 0.0
      %427 = vst.msk [vmem:[#allocation2 + $0x178] sm:$0xff] %vm380, 0.0
      %428 = vst [vmem:[#allocation2 + $0x180] sm:$0xff] 0.0
      %429 = vst.msk [vmem:[#allocation2 + $0x188] sm:$0xff] %vm380, 0.0
      %430 = vst [vmem:[#allocation2 + $0x190] sm:$0xff] 0.0
      %431 = vst.msk [vmem:[#allocation2 + $0x198] sm:$0xff] %vm380, 0.0
      %432 = vst [vmem:[#allocation2 + $0x1a0] sm:$0xff] 0.0
      %433 = vst.msk [vmem:[#allocation2 + $0x1a8] sm:$0xff] %vm380, 0.0
      %434 = vst [vmem:[#allocation2 + $0x1b0] sm:$0xff] 0.0
      %435 = vst.msk [vmem:[#allocation2 + $0x1b8] sm:$0xff] %vm380, 0.0
      %436 = vst [vmem:[#allocation2 + $0x1c0] sm:$0xff] 0.0
      %437 = vst.msk [vmem:[#allocation2 + $0x1c8] sm:$0xff] %vm380, 0.0
      %438 = vst [vmem:[#allocation2 + $0x1d0] sm:$0xff] 0.0
      %439 = vst.msk [vmem:[#allocation2 + $0x1d8] sm:$0xff] %vm380, 0.0
      %440 = vst [vmem:[#allocation2 + $0x1e0] sm:$0xff] 0.0
      %441 = vst.msk [vmem:[#allocation2 + $0x1e8] sm:$0xff] %vm380, 0.0
      %442 = vst [vmem:[#allocation2 + $0x1f0] sm:$0xff] 0.0
      %443 = vst.msk [vmem:[#allocation2 + $0x1f8] sm:$0xff] %vm380, 0.0
      %vm474 = vcmask 1040384
      %v475 = vrot.slane %v347, 7
      %v476 = vrot.slane %v348, 7
      %v477 = vsel %vm474, %v475, %v476
      %v478 = vrot.slane %v349, 7
      %v479 = vrot.slane %v350, 7
      %v480 = vsel %vm474, %v478, %v479
      %v481 = vrot.slane %v351, 7
      %v482 = vrot.slane %v352, 7
      %v483 = vsel %vm474, %v481, %v482
      %v484 = vrot.slane %v353, 7
      %v485 = vrot.slane %v354, 7
      %v486 = vsel %vm474, %v484, %v485
      %v487 = vrot.slane %v355, 7
      %v488 = vrot.slane %v356, 7
      %v489 = vsel %vm474, %v487, %v488
      %v490 = vrot.slane %v357, 7
      %v491 = vrot.slane %v358, 7
      %v492 = vsel %vm474, %v490, %v491
      %v493 = vrot.slane %v359, 7
      %v494 = vrot.slane %v360, 7
      %v495 = vsel %vm474, %v493, %v494
      %v496 = vrot.slane %v361, 7
      %v497 = vrot.slane %v362, 7
      %v498 = vsel %vm474, %v496, %v497
      %v499 = vrot.slane %v363, 7
      %v500 = vrot.slane %v364, 7
      %v501 = vsel %vm474, %v499, %v500
      %v502 = vrot.slane %v365, 7
      %v503 = vrot.slane %v366, 7
      %v504 = vsel %vm474, %v502, %v503
      %v505 = vrot.slane %v367, 7
      %v506 = vrot.slane %v368, 7
      %v507 = vsel %vm474, %v505, %v506
      %v508 = vrot.slane %v369, 7
      %v509 = vrot.slane %v370, 7
      %v510 = vsel %vm474, %v508, %v509
      %v511 = vrot.slane %v371, 7
      %v512 = vrot.slane %v372, 7
      %v513 = vsel %vm474, %v511, %v512
      %v514 = vrot.slane %v373, 7
      %v515 = vrot.slane %v374, 7
      %v516 = vsel %vm474, %v514, %v515
      %v517 = vrot.slane %v375, 7
      %v518 = vrot.slane %v376, 7
      %v519 = vsel %vm474, %v517, %v518
      %s550 = scalar_lea.vmem [#allocation2], 32
      %vm551 = vcmask 130049
      %552 = vst.msk [vmem:[%s550] sm:$0xfe] %vm551, %v475
      %553 = vst.msk [vmem:[%s550 + $0x10] sm:$0xff] %vm380, %v477
      %554 = vst.msk [vmem:[%s550 + $0x20] sm:$0xfe] %vm551, %v478
      %555 = vst.msk [vmem:[%s550 + $0x30] sm:$0xff] %vm380, %v480
      %556 = vst.msk [vmem:[%s550 + $0x40] sm:$0xfe] %vm551, %v481
      %557 = vst.msk [vmem:[%s550 + $0x50] sm:$0xff] %vm380, %v483
      %558 = vst.msk [vmem:[%s550 + $0x60] sm:$0xfe] %vm551, %v484
      %559 = vst.msk [vmem:[%s550 + $0x70] sm:$0xff] %vm380, %v486
      %560 = vst.msk [vmem:[%s550 + $0x80] sm:$0xfe] %vm551, %v487
      %561 = vst.msk [vmem:[%s550 + $0x90] sm:$0xff] %vm380, %v489
      %562 = vst.msk [vmem:[%s550 + $0xa0] sm:$0xfe] %vm551, %v490
      %563 = vst.msk [vmem:[%s550 + $0xb0] sm:$0xff] %vm380, %v492
      %564 = vst.msk [vmem:[%s550 + $0xc0] sm:$0xfe] %vm551, %v493
      %565 = vst.msk [vmem:[%s550 + $0xd0] sm:$0xff] %vm380, %v495
      %566 = vst.msk [vmem:[%s550 + $0xe0] sm:$0xfe] %vm551, %v496
      %567 = vst.msk [vmem:[%s550 + $0xf0] sm:$0xff] %vm380, %v498
      %568 = vst.msk [vmem:[%s550 + $0x100] sm:$0xfe] %vm551, %v499
      %569 = vst.msk [vmem:[%s550 + $0x110] sm:$0xff] %vm380, %v501
      %570 = vst.msk [vmem:[%s550 + $0x120] sm:$0xfe] %vm551, %v502
      %571 = vst.msk [vmem:[%s550 + $0x130] sm:$0xff] %vm380, %v504
      %572 = vst.msk [vmem:[%s550 + $0x140] sm:$0xfe] %vm551, %v505
      %573 = vst.msk [vmem:[%s550 + $0x150] sm:$0xff] %vm380, %v507
      %574 = vst.msk [vmem:[%s550 + $0x160] sm:$0xfe] %vm551, %v508
      %575 = vst.msk [vmem:[%s550 + $0x170] sm:$0xff] %vm380, %v510
      %576 = vst.msk [vmem:[%s550 + $0x180] sm:$0xfe] %vm551, %v511
      %577 = vst.msk [vmem:[%s550 + $0x190] sm:$0xff] %vm380, %v513
      %578 = vst.msk [vmem:[%s550 + $0x1a0] sm:$0xfe] %vm551, %v514
      %579 = vst.msk [vmem:[%s550 + $0x1b0] sm:$0xff] %vm380, %v516
      %580 = vst.msk [vmem:[%s550 + $0x1c0] sm:$0xfe] %vm551, %v517
      %581 = vst.msk [vmem:[%s550 + $0x1d0] sm:$0xff] %vm380, %v519
      %582 = vrot.lane.b32.xlu0 %v347, 16
      %v583 = vpop.permute.xlu0 %582
      %584 = vrot.lane.b32.xlu0 %v348, 16
      %v585 = vpop.permute.xlu0 %584
      %586 = vrot.lane.b32.xlu0 %v349, 16
      %v587 = vpop.permute.xlu0 %586
      %588 = vrot.lane.b32.xlu0 %v350, 16
      %v589 = vpop.permute.xlu0 %588
      %590 = vrot.lane.b32.xlu0 %v351, 16
      %v591 = vpop.permute.xlu0 %590
      %592 = vrot.lane.b32.xlu0 %v352, 16
      %v593 = vpop.permute.xlu0 %592
      %594 = vrot.lane.b32.xlu0 %v353, 16
      %v595 = vpop.permute.xlu0 %594
      %596 = vrot.lane.b32.xlu0 %v354, 16
      %v597 = vpop.permute.xlu0 %596
      %598 = vrot.lane.b32.xlu0 %v355, 16
      %v599 = vpop.permute.xlu0 %598
      %600 = vrot.lane.b32.xlu0 %v356, 16
      %v601 = vpop.permute.xlu0 %600
      %602 = vrot.lane.b32.xlu0 %v357, 16
      %v603 = vpop.permute.xlu0 %602
      %604 = vrot.lane.b32.xlu0 %v358, 16
      %v605 = vpop.permute.xlu0 %604
      %606 = vrot.lane.b32.xlu0 %v359, 16
      %v607 = vpop.permute.xlu0 %606
      %608 = vrot.lane.b32.xlu0 %v360, 16
      %v609 = vpop.permute.xlu0 %608
      %610 = vrot.lane.b32.xlu0 %v361, 16
      %v611 = vpop.permute.xlu0 %610
      %612 = vrot.lane.b32.xlu0 %v362, 16
      %v613 = vpop.permute.xlu0 %612
      %614 = vrot.lane.b32.xlu0 %v363, 16
      %v615 = vpop.permute.xlu0 %614
      %616 = vrot.lane.b32.xlu0 %v364, 16
      %v617 = vpop.permute.xlu0 %616
      %618 = vrot.lane.b32.xlu0 %v365, 16
      %v619 = vpop.permute.xlu0 %618
      %620 = vrot.lane.b32.xlu0 %v366, 16
      %v621 = vpop.permute.xlu0 %620
      %622 = vrot.lane.b32.xlu0 %v367, 16
      %v623 = vpop.permute.xlu0 %622
      %624 = vrot.lane.b32.xlu0 %v368, 16
      %v625 = vpop.permute.xlu0 %624
      %626 = vrot.lane.b32.xlu0 %v369, 16
      %v627 = vpop.permute.xlu0 %626
      %628 = vrot.lane.b32.xlu0 %v370, 16
      %v629 = vpop.permute.xlu0 %628
      %630 = vrot.lane.b32.xlu0 %v371, 16
      %v631 = vpop.permute.xlu0 %630
      %632 = vrot.lane.b32.xlu0 %v372, 16
      %v633 = vpop.permute.xlu0 %632
      %634 = vrot.lane.b32.xlu0 %v373, 16
      %v635 = vpop.permute.xlu0 %634
      %636 = vrot.lane.b32.xlu0 %v374, 16
      %v637 = vpop.permute.xlu0 %636
      %638 = vrot.lane.b32.xlu0 %v375, 16
      %v639 = vpop.permute.xlu0 %638
      %640 = vrot.lane.b32.xlu0 %v376, 16
      %v641 = vpop.permute.xlu0 %640
      %vm672 = vcmask 261248
      %673 = vst.msk [vmem:[%s550] sm:$0xff] %vm672, %v583
      %674 = vst.msk [vmem:[%s550 + $0x10] sm:$0xff] %vm672, %v585
      %675 = vst.msk [vmem:[%s550 + $0x20] sm:$0xff] %vm672, %v587
      %676 = vst.msk [vmem:[%s550 + $0x30] sm:$0xff] %vm672, %v589
      %677 = vst.msk [vmem:[%s550 + $0x40] sm:$0xff] %vm672, %v591
      %678 = vst.msk [vmem:[%s550 + $0x50] sm:$0xff] %vm672, %v593
      %679 = vst.msk [vmem:[%s550 + $0x60] sm:$0xff] %vm672, %v595
      %680 = vst.msk [vmem:[%s550 + $0x70] sm:$0xff] %vm672, %v597
      %681 = vst.msk [vmem:[%s550 + $0x80] sm:$0xff] %vm672, %v599
      %682 = vst.msk [vmem:[%s550 + $0x90] sm:$0xff] %vm672, %v601
      %683 = vst.msk [vmem:[%s550 + $0xa0] sm:$0xff] %vm672, %v603
      %684 = vst.msk [vmem:[%s550 + $0xb0] sm:$0xff] %vm672, %v605
      %685 = vst.msk [vmem:[%s550 + $0xc0] sm:$0xff] %vm672, %v607
      %686 = vst.msk [vmem:[%s550 + $0xd0] sm:$0xff] %vm672, %v609
      %687 = vst.msk [vmem:[%s550 + $0xe0] sm:$0xff] %vm672, %v611
      %688 = vst.msk [vmem:[%s550 + $0xf0] sm:$0xff] %vm672, %v613
      %689 = vst.msk [vmem:[%s550 + $0x100] sm:$0xff] %vm672, %v615
      %690 = vst.msk [vmem:[%s550 + $0x110] sm:$0xff] %vm672, %v617
      %691 = vst.msk [vmem:[%s550 + $0x120] sm:$0xff] %vm672, %v619
      %692 = vst.msk [vmem:[%s550 + $0x130] sm:$0xff] %vm672, %v621
      %693 = vst.msk [vmem:[%s550 + $0x140] sm:$0xff] %vm672, %v623
      %694 = vst.msk [vmem:[%s550 + $0x150] sm:$0xff] %vm672, %v625
      %695 = vst.msk [vmem:[%s550 + $0x160] sm:$0xff] %vm672, %v627
      %696 = vst.msk [vmem:[%s550 + $0x170] sm:$0xff] %vm672, %v629
      %697 = vst.msk [vmem:[%s550 + $0x180] sm:$0xff] %vm672, %v631
      %698 = vst.msk [vmem:[%s550 + $0x190] sm:$0xff] %vm672, %v633
      %699 = vst.msk [vmem:[%s550 + $0x1a0] sm:$0xff] %vm672, %v635
      %700 = vst.msk [vmem:[%s550 + $0x1b0] sm:$0xff] %vm672, %v637
      %701 = vst.msk [vmem:[%s550 + $0x1c0] sm:$0xff] %vm672, %v639
      %702 = vst.msk [vmem:[%s550 + $0x1d0] sm:$0xff] %vm672, %v641
      %vm703 = vcmask 1046528
      %v704 = vrot.slane %v347, 1
      %v705 = vrot.slane %v348, 1
      %v706 = vsel %vm703, %v704, %v705
      %v707 = vrot.slane %v349, 1
      %v708 = vrot.slane %v350, 1
      %v709 = vsel %vm703, %v707, %v708
      %v710 = vrot.slane %v351, 1
      %v711 = vrot.slane %v352, 1
      %v712 = vsel %vm703, %v710, %v711
      %v713 = vrot.slane %v353, 1
      %v714 = vrot.slane %v354, 1
      %v715 = vsel %vm703, %v713, %v714
      %v716 = vrot.slane %v355, 1
      %v717 = vrot.slane %v356, 1
      %v718 = vsel %vm703, %v716, %v717
      %v719 = vrot.slane %v357, 1
      %v720 = vrot.slane %v358, 1
      %v721 = vsel %vm703, %v719, %v720
      %v722 = vrot.slane %v359, 1
      %v723 = vrot.slane %v360, 1
      %v724 = vsel %vm703, %v722, %v723
      %v725 = vrot.slane %v361, 1
      %v726 = vrot.slane %v362, 1
      %v727 = vsel %vm703, %v725, %v726
      %v728 = vrot.slane %v363, 1
      %v729 = vrot.slane %v364, 1
      %v730 = vsel %vm703, %v728, %v729
      %v731 = vrot.slane %v365, 1
      %v732 = vrot.slane %v366, 1
      %v733 = vsel %vm703, %v731, %v732
      %v734 = vrot.slane %v367, 1
      %v735 = vrot.slane %v368, 1
      %v736 = vsel %vm703, %v734, %v735
      %v737 = vrot.slane %v369, 1
      %v738 = vrot.slane %v370, 1
      %v739 = vsel %vm703, %v737, %v738
      %v740 = vrot.slane %v371, 1
      %v741 = vrot.slane %v372, 1
      %v742 = vsel %vm703, %v740, %v741
      %v743 = vrot.slane %v373, 1
      %v744 = vrot.slane %v374, 1
      %v745 = vsel %vm703, %v743, %v744
      %v746 = vrot.slane %v375, 1
      %v747 = vrot.slane %v376, 1
      %v748 = vsel %vm703, %v746, %v747
      %749 = vrot.lane.b32.xlu0 %v706, 32
      %v750 = vpop.permute.xlu0 %749
      %751 = vrot.lane.b32.xlu0 %v705, 32
      %v752 = vpop.permute.xlu0 %751
      %753 = vrot.lane.b32.xlu0 %v709, 32
      %v754 = vpop.permute.xlu0 %753
      %755 = vrot.lane.b32.xlu0 %v708, 32
      %v756 = vpop.permute.xlu0 %755
      %757 = vrot.lane.b32.xlu0 %v712, 32
      %v758 = vpop.permute.xlu0 %757
      %759 = vrot.lane.b32.xlu0 %v711, 32
      %v760 = vpop.permute.xlu0 %759
      %761 = vrot.lane.b32.xlu0 %v715, 32
      %v762 = vpop.permute.xlu0 %761
      %763 = vrot.lane.b32.xlu0 %v714, 32
      %v764 = vpop.permute.xlu0 %763
      %765 = vrot.lane.b32.xlu0 %v718, 32
      %v766 = vpop.permute.xlu0 %765
      %767 = vrot.lane.b32.xlu0 %v717, 32
      %v768 = vpop.permute.xlu0 %767
      %769 = vrot.lane.b32.xlu0 %v721, 32
      %v770 = vpop.permute.xlu0 %769
      %771 = vrot.lane.b32.xlu0 %v720, 32
      %v772 = vpop.permute.xlu0 %771
      %773 = vrot.lane.b32.xlu0 %v724, 32
      %v774 = vpop.permute.xlu0 %773
      %775 = vrot.lane.b32.xlu0 %v723, 32
      %v776 = vpop.permute.xlu0 %775
      %777 = vrot.lane.b32.xlu0 %v727, 32
      %v778 = vpop.permute.xlu0 %777
      %779 = vrot.lane.b32.xlu0 %v726, 32
      %v780 = vpop.permute.xlu0 %779
      %781 = vrot.lane.b32.xlu0 %v730, 32
      %v782 = vpop.permute.xlu0 %781
      %783 = vrot.lane.b32.xlu0 %v729, 32
      %v784 = vpop.permute.xlu0 %783
      %785 = vrot.lane.b32.xlu0 %v733, 32
      %v786 = vpop.permute.xlu0 %785
      %787 = vrot.lane.b32.xlu0 %v732, 32
      %v788 = vpop.permute.xlu0 %787
      %789 = vrot.lane.b32.xlu0 %v736, 32
      %v790 = vpop.permute.xlu0 %789
      %791 = vrot.lane.b32.xlu0 %v735, 32
      %v792 = vpop.permute.xlu0 %791
      %793 = vrot.lane.b32.xlu0 %v739, 32
      %v794 = vpop.permute.xlu0 %793
      %795 = vrot.lane.b32.xlu0 %v738, 32
      %v796 = vpop.permute.xlu0 %795
      %797 = vrot.lane.b32.xlu0 %v742, 32
      %v798 = vpop.permute.xlu0 %797
      %799 = vrot.lane.b32.xlu0 %v741, 32
      %v800 = vpop.permute.xlu0 %799
      %801 = vrot.lane.b32.xlu0 %v745, 32
      %v802 = vpop.permute.xlu0 %801
      %803 = vrot.lane.b32.xlu0 %v744, 32
      %v804 = vpop.permute.xlu0 %803
      %805 = vrot.lane.b32.xlu0 %v748, 32
      %v806 = vpop.permute.xlu0 %805
      %807 = vrot.lane.b32.xlu0 %v747, 32
      %v808 = vpop.permute.xlu0 %807
      %vm839 = vcmask 392448
      %840 = vst.msk [vmem:[%s550] sm:$0xff] %vm839, %v750
      %vm841 = vcmask 391424
      %842 = vst.msk [vmem:[%s550 + $0x10] sm:$0x7f] %vm841, %v752
      %843 = vst.msk [vmem:[%s550 + $0x20] sm:$0xff] %vm839, %v754
      %844 = vst.msk [vmem:[%s550 + $0x30] sm:$0x7f] %vm841, %v756
      %845 = vst.msk [vmem:[%s550 + $0x40] sm:$0xff] %vm839, %v758
      %846 = vst.msk [vmem:[%s550 + $0x50] sm:$0x7f] %vm841, %v760
      %847 = vst.msk [vmem:[%s550 + $0x60] sm:$0xff] %vm839, %v762
      %848 = vst.msk [vmem:[%s550 + $0x70] sm:$0x7f] %vm841, %v764
      %849 = vst.msk [vmem:[%s550 + $0x80] sm:$0xff] %vm839, %v766
      %850 = vst.msk [vmem:[%s550 + $0x90] sm:$0x7f] %vm841, %v768
      %851 = vst.msk [vmem:[%s550 + $0xa0] sm:$0xff] %vm839, %v770
      %852 = vst.msk [vmem:[%s550 + $0xb0] sm:$0x7f] %vm841, %v772
      %853 = vst.msk [vmem:[%s550 + $0xc0] sm:$0xff] %vm839, %v774
      %854 = vst.msk [vmem:[%s550 + $0xd0] sm:$0x7f] %vm841, %v776
      %855 = vst.msk [vmem:[%s550 + $0xe0] sm:$0xff] %vm839, %v778
      %856 = vst.msk [vmem:[%s550 + $0xf0] sm:$0x7f] %vm841, %v780
      %857 = vst.msk [vmem:[%s550 + $0x100] sm:$0xff] %vm839, %v782
      %858 = vst.msk [vmem:[%s550 + $0x110] sm:$0x7f] %vm841, %v784
      %859 = vst.msk [vmem:[%s550 + $0x120] sm:$0xff] %vm839, %v786
      %860 = vst.msk [vmem:[%s550 + $0x130] sm:$0x7f] %vm841, %v788
      %861 = vst.msk [vmem:[%s550 + $0x140] sm:$0xff] %vm839, %v790
      %862 = vst.msk [vmem:[%s550 + $0x150] sm:$0x7f] %vm841, %v792
      %863 = vst.msk [vmem:[%s550 + $0x160] sm:$0xff] %vm839, %v794
      %864 = vst.msk [vmem:[%s550 + $0x170] sm:$0x7f] %vm841, %v796
      %865 = vst.msk [vmem:[%s550 + $0x180] sm:$0xff] %vm839, %v798
      %866 = vst.msk [vmem:[%s550 + $0x190] sm:$0x7f] %vm841, %v800
      %867 = vst.msk [vmem:[%s550 + $0x1a0] sm:$0xff] %vm839, %v802
      %868 = vst.msk [vmem:[%s550 + $0x1b0] sm:$0x7f] %vm841, %v804
      %869 = vst.msk [vmem:[%s550 + $0x1c0] sm:$0xff] %vm839, %v806
      %870 = vst.msk [vmem:[%s550 + $0x1d0] sm:$0x7f] %vm841, %v808
      %v873 = vrot.slane %v377, 7
      %v874 = vrot.slane %v378, 7
      %v875 = vsel %vm474, %v873, %v874
      %876 = vrot.lane.b32.xlu0 %v475, 48
      %v877 = vpop.permute.xlu0 %876
      %878 = vrot.lane.b32.xlu0 %v477, 48
      %v879 = vpop.permute.xlu0 %878
      %880 = vrot.lane.b32.xlu0 %v478, 48
      %v881 = vpop.permute.xlu0 %880
      %882 = vrot.lane.b32.xlu0 %v480, 48
      %v883 = vpop.permute.xlu0 %882
      %884 = vrot.lane.b32.xlu0 %v481, 48
      %v885 = vpop.permute.xlu0 %884
      %886 = vrot.lane.b32.xlu0 %v483, 48
      %v887 = vpop.permute.xlu0 %886
      %888 = vrot.lane.b32.xlu0 %v484, 48
      %v889 = vpop.permute.xlu0 %888
      %890 = vrot.lane.b32.xlu0 %v486, 48
      %v891 = vpop.permute.xlu0 %890
      %892 = vrot.lane.b32.xlu0 %v487, 48
      %v893 = vpop.permute.xlu0 %892
      %894 = vrot.lane.b32.xlu0 %v489, 48
      %v895 = vpop.permute.xlu0 %894
      %896 = vrot.lane.b32.xlu0 %v490, 48
      %v897 = vpop.permute.xlu0 %896
      %898 = vrot.lane.b32.xlu0 %v492, 48
      %v899 = vpop.permute.xlu0 %898
      %900 = vrot.lane.b32.xlu0 %v493, 48
      %v901 = vpop.permute.xlu0 %900
      %902 = vrot.lane.b32.xlu0 %v495, 48
      %v903 = vpop.permute.xlu0 %902
      %904 = vrot.lane.b32.xlu0 %v496, 48
      %v905 = vpop.permute.xlu0 %904
      %906 = vrot.lane.b32.xlu0 %v498, 48
      %v907 = vpop.permute.xlu0 %906
      %908 = vrot.lane.b32.xlu0 %v499, 48
      %v909 = vpop.permute.xlu0 %908
      %910 = vrot.lane.b32.xlu0 %v501, 48
      %v911 = vpop.permute.xlu0 %910
      %912 = vrot.lane.b32.xlu0 %v502, 48
      %v913 = vpop.permute.xlu0 %912
      %914 = vrot.lane.b32.xlu0 %v504, 48
      %v915 = vpop.permute.xlu0 %914
      %916 = vrot.lane.b32.xlu0 %v505, 48
      %v917 = vpop.permute.xlu0 %916
      %918 = vrot.lane.b32.xlu0 %v507, 48
      %v919 = vpop.permute.xlu0 %918
      %920 = vrot.lane.b32.xlu0 %v508, 48
      %v921 = vpop.permute.xlu0 %920
      %922 = vrot.lane.b32.xlu0 %v510, 48
      %v923 = vpop.permute.xlu0 %922
      %924 = vrot.lane.b32.xlu0 %v511, 48
      %v925 = vpop.permute.xlu0 %924
      %926 = vrot.lane.b32.xlu0 %v513, 48
      %v927 = vpop.permute.xlu0 %926
      %928 = vrot.lane.b32.xlu0 %v514, 48
      %v929 = vpop.permute.xlu0 %928
      %930 = vrot.lane.b32.xlu0 %v516, 48
      %v931 = vpop.permute.xlu0 %930
      %932 = vrot.lane.b32.xlu0 %v517, 48
      %v933 = vpop.permute.xlu0 %932
      %934 = vrot.lane.b32.xlu0 %v519, 48
      %v935 = vpop.permute.xlu0 %934
      %936 = vrot.lane.b32.xlu0 %v873, 48
      %v937 = vpop.permute.xlu0 %936
      %938 = vrot.lane.b32.xlu0 %v875, 48
      %v939 = vpop.permute.xlu0 %938
      %vm972 = vcmask 523649
      %973 = vst.msk [vmem:[#allocation2] sm:$0xfe] %vm972, %v877
      %vm974 = vcmask 523648
      %975 = vst.msk [vmem:[#allocation2 + $0x10] sm:$0xff] %vm974, %v879
      %976 = vst.msk [vmem:[#allocation2 + $0x20] sm:$0xfe] %vm972, %v881
      %977 = vst.msk [vmem:[#allocation2 + $0x30] sm:$0xff] %vm974, %v883
      %978 = vst.msk [vmem:[#allocation2 + $0x40] sm:$0xfe] %vm972, %v885
      %979 = vst.msk [vmem:[#allocation2 + $0x50] sm:$0xff] %vm974, %v887
      %980 = vst.msk [vmem:[#allocation2 + $0x60] sm:$0xfe] %vm972, %v889
      %981 = vst.msk [vmem:[#allocation2 + $0x70] sm:$0xff] %vm974, %v891
      %982 = vst.msk [vmem:[#allocation2 + $0x80] sm:$0xfe] %vm972, %v893
      %983 = vst.msk [vmem:[#allocation2 + $0x90] sm:$0xff] %vm974, %v895
      %984 = vst.msk [vmem:[#allocation2 + $0xa0] sm:$0xfe] %vm972, %v897
      %985 = vst.msk [vmem:[#allocation2 + $0xb0] sm:$0xff] %vm974, %v899
      %986 = vst.msk [vmem:[#allocation2 + $0xc0] sm:$0xfe] %vm972, %v901
      %987 = vst.msk [vmem:[#allocation2 + $0xd0] sm:$0xff] %vm974, %v903
      %988 = vst.msk [vmem:[#allocation2 + $0xe0] sm:$0xfe] %vm972, %v905
      %989 = vst.msk [vmem:[#allocation2 + $0xf0] sm:$0xff] %vm974, %v907
      %990 = vst.msk [vmem:[#allocation2 + $0x100] sm:$0xfe] %vm972, %v909
      %991 = vst.msk [vmem:[#allocation2 + $0x110] sm:$0xff] %vm974, %v911
      %992 = vst.msk [vmem:[#allocation2 + $0x120] sm:$0xfe] %vm972, %v913
      %993 = vst.msk [vmem:[#allocation2 + $0x130] sm:$0xff] %vm974, %v915
      %994 = vst.msk [vmem:[#allocation2 + $0x140] sm:$0xfe] %vm972, %v917
      %995 = vst.msk [vmem:[#allocation2 + $0x150] sm:$0xff] %vm974, %v919
      %996 = vst.msk [vmem:[#allocation2 + $0x160] sm:$0xfe] %vm972, %v921
      %997 = vst.msk [vmem:[#allocation2 + $0x170] sm:$0xff] %vm974, %v923
      %998 = vst.msk [vmem:[#allocation2 + $0x180] sm:$0xfe] %vm972, %v925
      %999 = vst.msk [vmem:[#allocation2 + $0x190] sm:$0xff] %vm974, %v927
      %1000 = vst.msk [vmem:[#allocation2 + $0x1a0] sm:$0xfe] %vm972, %v929
      %1001 = vst.msk [vmem:[#allocation2 + $0x1b0] sm:$0xff] %vm974, %v931
      %1002 = vst.msk [vmem:[#allocation2 + $0x1c0] sm:$0xfe] %vm972, %v933
      %1003 = vst.msk [vmem:[#allocation2 + $0x1d0] sm:$0xff] %vm974, %v935
      %1004 = vst.msk [vmem:[#allocation2 + $0x1e0] sm:$0xfe] %vm972, %v937
      %1005 = vst.msk [vmem:[#allocation2 + $0x1f0] sm:$0xff] %vm974, %v939
      %1006 = vrot.lane.b32.xlu0 %v347, 64
      %v1007 = vpop.permute.xlu0 %1006
      %1008 = vrot.lane.b32.xlu0 %v348, 64
      %v1009 = vpop.permute.xlu0 %1008
      %1010 = vrot.lane.b32.xlu0 %v349, 64
      %v1011 = vpop.permute.xlu0 %1010
      %1012 = vrot.lane.b32.xlu0 %v350, 64
      %v1013 = vpop.permute.xlu0 %1012
      %1014 = vrot.lane.b32.xlu0 %v351, 64
      %v1015 = vpop.permute.xlu0 %1014
      %1016 = vrot.lane.b32.xlu0 %v352, 64
      %v1017 = vpop.permute.xlu0 %1016
      %1018 = vrot.lane.b32.xlu0 %v353, 64
      %v1019 = vpop.permute.xlu0 %1018
      %1020 = vrot.lane.b32.xlu0 %v354, 64
      %v1021 = vpop.permute.xlu0 %1020
      %1022 = vrot.lane.b32.xlu0 %v355, 64
      %v1023 = vpop.permute.xlu0 %1022
      %1024 = vrot.lane.b32.xlu0 %v356, 64
      %v1025 = vpop.permute.xlu0 %1024
      %1026 = vrot.lane.b32.xlu0 %v357, 64
      %v1027 = vpop.permute.xlu0 %1026
      %1028 = vrot.lane.b32.xlu0 %v358, 64
      %v1029 = vpop.permute.xlu0 %1028
      %1030 = vrot.lane.b32.xlu0 %v359, 64
      %v1031 = vpop.permute.xlu0 %1030
      %1032 = vrot.lane.b32.xlu0 %v360, 64
      %v1033 = vpop.permute.xlu0 %1032
      %1034 = vrot.lane.b32.xlu0 %v361, 64
      %v1035 = vpop.permute.xlu0 %1034
      %1036 = vrot.lane.b32.xlu0 %v362, 64
      %v1037 = vpop.permute.xlu0 %1036
      %1038 = vrot.lane.b32.xlu0 %v363, 64
      %v1039 = vpop.permute.xlu0 %1038
      %1040 = vrot.lane.b32.xlu0 %v364, 64
      %v1041 = vpop.permute.xlu0 %1040
      %1042 = vrot.lane.b32.xlu0 %v365, 64
      %v1043 = vpop.permute.xlu0 %1042
      %1044 = vrot.lane.b32.xlu0 %v366, 64
      %v1045 = vpop.permute.xlu0 %1044
      %1046 = vrot.lane.b32.xlu0 %v367, 64
      %v1047 = vpop.permute.xlu0 %1046
      %1048 = vrot.lane.b32.xlu0 %v368, 64
      %v1049 = vpop.permute.xlu0 %1048
      %1050 = vrot.lane.b32.xlu0 %v369, 64
      %v1051 = vpop.permute.xlu0 %1050
      %1052 = vrot.lane.b32.xlu0 %v370, 64
      %v1053 = vpop.permute.xlu0 %1052
      %1054 = vrot.lane.b32.xlu0 %v371, 64
      %v1055 = vpop.permute.xlu0 %1054
      %1056 = vrot.lane.b32.xlu0 %v372, 64
      %v1057 = vpop.permute.xlu0 %1056
      %1058 = vrot.lane.b32.xlu0 %v373, 64
      %v1059 = vpop.permute.xlu0 %1058
      %1060 = vrot.lane.b32.xlu0 %v374, 64
      %v1061 = vpop.permute.xlu0 %1060
      %1062 = vrot.lane.b32.xlu0 %v375, 64
      %v1063 = vpop.permute.xlu0 %1062
      %1064 = vrot.lane.b32.xlu0 %v376, 64
      %v1065 = vpop.permute.xlu0 %1064
      %1066 = vrot.lane.b32.xlu0 %v377, 64
      %v1067 = vpop.permute.xlu0 %1066
      %1068 = vrot.lane.b32.xlu0 %v378, 64
      %v1069 = vpop.permute.xlu0 %1068
      %vm1102 = vcmask 654848
      %1103 = vst.msk [vmem:[#allocation2] sm:$0xff] %vm1102, %v1007
      %1104 = vst.msk [vmem:[#allocation2 + $0x10] sm:$0xff] %vm1102, %v1009
      %1105 = vst.msk [vmem:[#allocation2 + $0x20] sm:$0xff] %vm1102, %v1011
      %1106 = vst.msk [vmem:[#allocation2 + $0x30] sm:$0xff] %vm1102, %v1013
      %1107 = vst.msk [vmem:[#allocation2 + $0x40] sm:$0xff] %vm1102, %v1015
      %1108 = vst.msk [vmem:[#allocation2 + $0x50] sm:$0xff] %vm1102, %v1017
      %1109 = vst.msk [vmem:[#allocation2 + $0x60] sm:$0xff] %vm1102, %v1019
      %1110 = vst.msk [vmem:[#allocation2 + $0x70] sm:$0xff] %vm1102, %v1021
      %1111 = vst.msk [vmem:[#allocation2 + $0x80] sm:$0xff] %vm1102, %v1023
      %1112 = vst.msk [vmem:[#allocation2 + $0x90] sm:$0xff] %vm1102, %v1025
      %1113 = vst.msk [vmem:[#allocation2 + $0xa0] sm:$0xff] %vm1102, %v1027
      %1114 = vst.msk [vmem:[#allocation2 + $0xb0] sm:$0xff] %vm1102, %v1029
      %1115 = vst.msk [vmem:[#allocation2 + $0xc0] sm:$0xff] %vm1102, %v1031
      %1116 = vst.msk [vmem:[#allocation2 + $0xd0] sm:$0xff] %vm1102, %v1033
      %1117 = vst.msk [vmem:[#allocation2 + $0xe0] sm:$0xff] %vm1102, %v1035
      %1118 = vst.msk [vmem:[#allocation2 + $0xf0] sm:$0xff] %vm1102, %v1037
      %1119 = vst.msk [vmem:[#allocation2 + $0x100] sm:$0xff] %vm1102, %v1039
      %1120 = vst.msk [vmem:[#allocation2 + $0x110] sm:$0xff] %vm1102, %v1041
      %1121 = vst.msk [vmem:[#allocation2 + $0x120] sm:$0xff] %vm1102, %v1043
      %1122 = vst.msk [vmem:[#allocation2 + $0x130] sm:$0xff] %vm1102, %v1045
      %1123 = vst.msk [vmem:[#allocation2 + $0x140] sm:$0xff] %vm1102, %v1047
      %1124 = vst.msk [vmem:[#allocation2 + $0x150] sm:$0xff] %vm1102, %v1049
      %1125 = vst.msk [vmem:[#allocation2 + $0x160] sm:$0xff] %vm1102, %v1051
      %1126 = vst.msk [vmem:[#allocation2 + $0x170] sm:$0xff] %vm1102, %v1053
      %1127 = vst.msk [vmem:[#allocation2 + $0x180] sm:$0xff] %vm1102, %v1055
      %1128 = vst.msk [vmem:[#allocation2 + $0x190] sm:$0xff] %vm1102, %v1057
      %1129 = vst.msk [vmem:[#allocation2 + $0x1a0] sm:$0xff] %vm1102, %v1059
      %1130 = vst.msk [vmem:[#allocation2 + $0x1b0] sm:$0xff] %vm1102, %v1061
      %1131 = vst.msk [vmem:[#allocation2 + $0x1c0] sm:$0xff] %vm1102, %v1063
      %1132 = vst.msk [vmem:[#allocation2 + $0x1d0] sm:$0xff] %vm1102, %v1065
      %1133 = vst.msk [vmem:[#allocation2 + $0x1e0] sm:$0xff] %vm1102, %v1067
      %1134 = vst.msk [vmem:[#allocation2 + $0x1f0] sm:$0xff] %vm1102, %v1069
      %v1135 = vrot.slane %v377, 1
      %v1136 = vrot.slane %v378, 1
      %v1137 = vsel %vm703, %v1135, %v1136
      %1138 = vrot.lane.b32.xlu0 %v706, 80
      %v1139 = vpop.permute.xlu0 %1138
      %1140 = vrot.lane.b32.xlu0 %v705, 80
      %v1141 = vpop.permute.xlu0 %1140
      %1142 = vrot.lane.b32.xlu0 %v709, 80
      %v1143 = vpop.permute.xlu0 %1142
      %1144 = vrot.lane.b32.xlu0 %v708, 80
      %v1145 = vpop.permute.xlu0 %1144
      %1146 = vrot.lane.b32.xlu0 %v712, 80
      %v1147 = vpop.permute.xlu0 %1146
      %1148 = vrot.lane.b32.xlu0 %v711, 80
      %v1149 = vpop.permute.xlu0 %1148
      %1150 = vrot.lane.b32.xlu0 %v715, 80
      %v1151 = vpop.permute.xlu0 %1150
      %1152 = vrot.lane.b32.xlu0 %v714, 80
      %v1153 = vpop.permute.xlu0 %1152
      %1154 = vrot.lane.b32.xlu0 %v718, 80
      %v1155 = vpop.permute.xlu0 %1154
      %1156 = vrot.lane.b32.xlu0 %v717, 80
      %v1157 = vpop.permute.xlu0 %1156
      %1158 = vrot.lane.b32.xlu0 %v721, 80
      %v1159 = vpop.permute.xlu0 %1158
      %1160 = vrot.lane.b32.xlu0 %v720, 80
      %v1161 = vpop.permute.xlu0 %1160
      %1162 = vrot.lane.b32.xlu0 %v724, 80
      %v1163 = vpop.permute.xlu0 %1162
      %1164 = vrot.lane.b32.xlu0 %v723, 80
      %v1165 = vpop.permute.xlu0 %1164
      %1166 = vrot.lane.b32.xlu0 %v727, 80
      %v1167 = vpop.permute.xlu0 %1166
      %1168 = vrot.lane.b32.xlu0 %v726, 80
      %v1169 = vpop.permute.xlu0 %1168
      %1170 = vrot.lane.b32.xlu0 %v730, 80
      %v1171 = vpop.permute.xlu0 %1170
      %1172 = vrot.lane.b32.xlu0 %v729, 80
      %v1173 = vpop.permute.xlu0 %1172
      %1174 = vrot.lane.b32.xlu0 %v733, 80
      %v1175 = vpop.permute.xlu0 %1174
      %1176 = vrot.lane.b32.xlu0 %v732, 80
      %v1177 = vpop.permute.xlu0 %1176
      %1178 = vrot.lane.b32.xlu0 %v736, 80
      %v1179 = vpop.permute.xlu0 %1178
      %1180 = vrot.lane.b32.xlu0 %v735, 80
      %v1181 = vpop.permute.xlu0 %1180
      %1182 = vrot.lane.b32.xlu0 %v739, 80
      %v1183 = vpop.permute.xlu0 %1182
      %1184 = vrot.lane.b32.xlu0 %v738, 80
      %v1185 = vpop.permute.xlu0 %1184
      %1186 = vrot.lane.b32.xlu0 %v742, 80
      %v1187 = vpop.permute.xlu0 %1186
      %1188 = vrot.lane.b32.xlu0 %v741, 80
      %v1189 = vpop.permute.xlu0 %1188
      %1190 = vrot.lane.b32.xlu0 %v745, 80
      %v1191 = vpop.permute.xlu0 %1190
      %1192 = vrot.lane.b32.xlu0 %v744, 80
      %v1193 = vpop.permute.xlu0 %1192
      %1194 = vrot.lane.b32.xlu0 %v748, 80
      %v1195 = vpop.permute.xlu0 %1194
      %1196 = vrot.lane.b32.xlu0 %v747, 80
      %v1197 = vpop.permute.xlu0 %1196
      %1198 = vrot.lane.b32.xlu0 %v1137, 80
      %v1199 = vpop.permute.xlu0 %1198
      %1200 = vrot.lane.b32.xlu0 %v1136, 80
      %v1201 = vpop.permute.xlu0 %1200
      %vm1234 = vcmask 786048
      %1235 = vst.msk [vmem:[#allocation2] sm:$0xff] %vm1234, %v1139
      %vm1236 = vcmask 785024
      %1237 = vst.msk [vmem:[#allocation2 + $0x10] sm:$0x7f] %vm1236, %v1141
      %1238 = vst.msk [vmem:[#allocation2 + $0x20] sm:$0xff] %vm1234, %v1143
      %1239 = vst.msk [vmem:[#allocation2 + $0x30] sm:$0x7f] %vm1236, %v1145
      %1240 = vst.msk [vmem:[#allocation2 + $0x40] sm:$0xff] %vm1234, %v1147
      %1241 = vst.msk [vmem:[#allocation2 + $0x50] sm:$0x7f] %vm1236, %v1149
      %1242 = vst.msk [vmem:[#allocation2 + $0x60] sm:$0xff] %vm1234, %v1151
      %1243 = vst.msk [vmem:[#allocation2 + $0x70] sm:$0x7f] %vm1236, %v1153
      %1244 = vst.msk [vmem:[#allocation2 + $0x80] sm:$0xff] %vm1234, %v1155
      %1245 = vst.msk [vmem:[#allocation2 + $0x90] sm:$0x7f] %vm1236, %v1157
      %1246 = vst.msk [vmem:[#allocation2 + $0xa0] sm:$0xff] %vm1234, %v1159
      %1247 = vst.msk [vmem:[#allocation2 + $0xb0] sm:$0x7f] %vm1236, %v1161
      %1248 = vst.msk [vmem:[#allocation2 + $0xc0] sm:$0xff] %vm1234, %v1163
      %1249 = vst.msk [vmem:[#allocation2 + $0xd0] sm:$0x7f] %vm1236, %v1165
      %1250 = vst.msk [vmem:[#allocation2 + $0xe0] sm:$0xff] %vm1234, %v1167
      %1251 = vst.msk [vmem:[#allocation2 + $0xf0] sm:$0x7f] %vm1236, %v1169
      %1252 = vst.msk [vmem:[#allocation2 + $0x100] sm:$0xff] %vm1234, %v1171
      %1253 = vst.msk [vmem:[#allocation2 + $0x110] sm:$0x7f] %vm1236, %v1173
      %1254 = vst.msk [vmem:[#allocation2 + $0x120] sm:$0xff] %vm1234, %v1175
      %1255 = vst.msk [vmem:[#allocation2 + $0x130] sm:$0x7f] %vm1236, %v1177
      %1256 = vst.msk [vmem:[#allocation2 + $0x140] sm:$0xff] %vm1234, %v1179
      %1257 = vst.msk [vmem:[#allocation2 + $0x150] sm:$0x7f] %vm1236, %v1181
      %1258 = vst.msk [vmem:[#allocation2 + $0x160] sm:$0xff] %vm1234, %v1183
      %1259 = vst.msk [vmem:[#allocation2 + $0x170] sm:$0x7f] %vm1236, %v1185
      %1260 = vst.msk [vmem:[#allocation2 + $0x180] sm:$0xff] %vm1234, %v1187
      %1261 = vst.msk [vmem:[#allocation2 + $0x190] sm:$0x7f] %vm1236, %v1189
      %1262 = vst.msk [vmem:[#allocation2 + $0x1a0] sm:$0xff] %vm1234, %v1191
      %1263 = vst.msk [vmem:[#allocation2 + $0x1b0] sm:$0x7f] %vm1236, %v1193
      %1264 = vst.msk [vmem:[#allocation2 + $0x1c0] sm:$0xff] %vm1234, %v1195
      %1265 = vst.msk [vmem:[#allocation2 + $0x1d0] sm:$0x7f] %vm1236, %v1197
      %1266 = vst.msk [vmem:[#allocation2 + $0x1e0] sm:$0xff] %vm1234, %v1199
      %1267 = vst.msk [vmem:[#allocation2 + $0x1f0] sm:$0x7f] %vm1236, %v1201
      %1268 = vrot.lane.b32.xlu0 %v478, 96
      %v1269 = vpop.permute.xlu0 %1268
      %1270 = vrot.lane.b32.xlu0 %v480, 96
      %v1271 = vpop.permute.xlu0 %1270
      %1272 = vrot.lane.b32.xlu0 %v481, 96
      %v1273 = vpop.permute.xlu0 %1272
      %1274 = vrot.lane.b32.xlu0 %v483, 96
      %v1275 = vpop.permute.xlu0 %1274
      %1276 = vrot.lane.b32.xlu0 %v484, 96
      %v1277 = vpop.permute.xlu0 %1276
      %1278 = vrot.lane.b32.xlu0 %v486, 96
      %v1279 = vpop.permute.xlu0 %1278
      %1280 = vrot.lane.b32.xlu0 %v487, 96
      %v1281 = vpop.permute.xlu0 %1280
      %1282 = vrot.lane.b32.xlu0 %v489, 96
      %v1283 = vpop.permute.xlu0 %1282
      %1284 = vrot.lane.b32.xlu0 %v490, 96
      %v1285 = vpop.permute.xlu0 %1284
      %1286 = vrot.lane.b32.xlu0 %v492, 96
      %v1287 = vpop.permute.xlu0 %1286
      %1288 = vrot.lane.b32.xlu0 %v493, 96
      %v1289 = vpop.permute.xlu0 %1288
      %1290 = vrot.lane.b32.xlu0 %v495, 96
      %v1291 = vpop.permute.xlu0 %1290
      %1292 = vrot.lane.b32.xlu0 %v496, 96
      %v1293 = vpop.permute.xlu0 %1292
      %1294 = vrot.lane.b32.xlu0 %v498, 96
      %v1295 = vpop.permute.xlu0 %1294
      %1296 = vrot.lane.b32.xlu0 %v499, 96
      %v1297 = vpop.permute.xlu0 %1296
      %1298 = vrot.lane.b32.xlu0 %v501, 96
      %v1299 = vpop.permute.xlu0 %1298
      %1300 = vrot.lane.b32.xlu0 %v502, 96
      %v1301 = vpop.permute.xlu0 %1300
      %1302 = vrot.lane.b32.xlu0 %v504, 96
      %v1303 = vpop.permute.xlu0 %1302
      %1304 = vrot.lane.b32.xlu0 %v505, 96
      %v1305 = vpop.permute.xlu0 %1304
      %1306 = vrot.lane.b32.xlu0 %v507, 96
      %v1307 = vpop.permute.xlu0 %1306
      %1308 = vrot.lane.b32.xlu0 %v508, 96
      %v1309 = vpop.permute.xlu0 %1308
      %1310 = vrot.lane.b32.xlu0 %v510, 96
      %v1311 = vpop.permute.xlu0 %1310
      %1312 = vrot.lane.b32.xlu0 %v511, 96
      %v1313 = vpop.permute.xlu0 %1312
      %1314 = vrot.lane.b32.xlu0 %v513, 96
      %v1315 = vpop.permute.xlu0 %1314
      %1316 = vrot.lane.b32.xlu0 %v514, 96
      %v1317 = vpop.permute.xlu0 %1316
      %1318 = vrot.lane.b32.xlu0 %v516, 96
      %v1319 = vpop.permute.xlu0 %1318
      %1320 = vrot.lane.b32.xlu0 %v517, 96
      %v1321 = vpop.permute.xlu0 %1320
      %1322 = vrot.lane.b32.xlu0 %v519, 96
      %v1323 = vpop.permute.xlu0 %1322
      %1324 = vrot.lane.b32.xlu0 %v873, 96
      %v1325 = vpop.permute.xlu0 %1324
      %1326 = vrot.lane.b32.xlu0 %v875, 96
      %v1327 = vpop.permute.xlu0 %1326
      %vm1358 = vcmask 917249
      %1359 = vst.msk [vmem:[#allocation2] sm:$0xfe] %vm1358, %v1269
      %vm1360 = vcmask 917248
      %1361 = vst.msk [vmem:[#allocation2 + $0x10] sm:$0xff] %vm1360, %v1271
      %1362 = vst.msk [vmem:[#allocation2 + $0x20] sm:$0xfe] %vm1358, %v1273
      %1363 = vst.msk [vmem:[#allocation2 + $0x30] sm:$0xff] %vm1360, %v1275
      %1364 = vst.msk [vmem:[#allocation2 + $0x40] sm:$0xfe] %vm1358, %v1277
      %1365 = vst.msk [vmem:[#allocation2 + $0x50] sm:$0xff] %vm1360, %v1279
      %1366 = vst.msk [vmem:[#allocation2 + $0x60] sm:$0xfe] %vm1358, %v1281
      %1367 = vst.msk [vmem:[#allocation2 + $0x70] sm:$0xff] %vm1360, %v1283
      %1368 = vst.msk [vmem:[#allocation2 + $0x80] sm:$0xfe] %vm1358, %v1285
      %1369 = vst.msk [vmem:[#allocation2 + $0x90] sm:$0xff] %vm1360, %v1287
      %1370 = vst.msk [vmem:[#allocation2 + $0xa0] sm:$0xfe] %vm1358, %v1289
      %1371 = vst.msk [vmem:[#allocation2 + $0xb0] sm:$0xff] %vm1360, %v1291
      %1372 = vst.msk [vmem:[#allocation2 + $0xc0] sm:$0xfe] %vm1358, %v1293
      %1373 = vst.msk [vmem:[#allocation2 + $0xd0] sm:$0xff] %vm1360, %v1295
      %1374 = vst.msk [vmem:[#allocation2 + $0xe0] sm:$0xfe] %vm1358, %v1297
      %1375 = vst.msk [vmem:[#allocation2 + $0xf0] sm:$0xff] %vm1360, %v1299
      %1376 = vst.msk [vmem:[#allocation2 + $0x100] sm:$0xfe] %vm1358, %v1301
      %1377 = vst.msk [vmem:[#allocation2 + $0x110] sm:$0xff] %vm1360, %v1303
      %1378 = vst.msk [vmem:[#allocation2 + $0x120] sm:$0xfe] %vm1358, %v1305
      %1379 = vst.msk [vmem:[#allocation2 + $0x130] sm:$0xff] %vm1360, %v1307
      %1380 = vst.msk [vmem:[#allocation2 + $0x140] sm:$0xfe] %vm1358, %v1309
      %1381 = vst.msk [vmem:[#allocation2 + $0x150] sm:$0xff] %vm1360, %v1311
      %1382 = vst.msk [vmem:[#allocation2 + $0x160] sm:$0xfe] %vm1358, %v1313
      %1383 = vst.msk [vmem:[#allocation2 + $0x170] sm:$0xff] %vm1360, %v1315
      %1384 = vst.msk [vmem:[#allocation2 + $0x180] sm:$0xfe] %vm1358, %v1317
      %1385 = vst.msk [vmem:[#allocation2 + $0x190] sm:$0xff] %vm1360, %v1319
      %1386 = vst.msk [vmem:[#allocation2 + $0x1a0] sm:$0xfe] %vm1358, %v1321
      %1387 = vst.msk [vmem:[#allocation2 + $0x1b0] sm:$0xff] %vm1360, %v1323
      %1388 = vst.msk [vmem:[#allocation2 + $0x1c0] sm:$0xfe] %vm1358, %v1325
      %1389 = vst.msk [vmem:[#allocation2 + $0x1d0] sm:$0xff] %vm1360, %v1327
      %1390 = vrot.lane.b32.xlu0 %v349, 112
      %v1391 = vpop.permute.xlu0 %1390
      %1392 = vrot.lane.b32.xlu0 %v350, 112
      %v1393 = vpop.permute.xlu0 %1392
      %1394 = vrot.lane.b32.xlu0 %v351, 112
      %v1395 = vpop.permute.xlu0 %1394
      %1396 = vrot.lane.b32.xlu0 %v352, 112
      %v1397 = vpop.permute.xlu0 %1396
      %1398 = vrot.lane.b32.xlu0 %v353, 112
      %v1399 = vpop.permute.xlu0 %1398
      %1400 = vrot.lane.b32.xlu0 %v354, 112
      %v1401 = vpop.permute.xlu0 %1400
      %1402 = vrot.lane.b32.xlu0 %v355, 112
      %v1403 = vpop.permute.xlu0 %1402
      %1404 = vrot.lane.b32.xlu0 %v356, 112
      %v1405 = vpop.permute.xlu0 %1404
      %1406 = vrot.lane.b32.xlu0 %v357, 112
      %v1407 = vpop.permute.xlu0 %1406
      %1408 = vrot.lane.b32.xlu0 %v358, 112
      %v1409 = vpop.permute.xlu0 %1408
      %1410 = vrot.lane.b32.xlu0 %v359, 112
      %v1411 = vpop.permute.xlu0 %1410
      %1412 = vrot.lane.b32.xlu0 %v360, 112
      %v1413 = vpop.permute.xlu0 %1412
      %1414 = vrot.lane.b32.xlu0 %v361, 112
      %v1415 = vpop.permute.xlu0 %1414
      %1416 = vrot.lane.b32.xlu0 %v362, 112
      %v1417 = vpop.permute.xlu0 %1416
      %1418 = vrot.lane.b32.xlu0 %v363, 112
      %v1419 = vpop.permute.xlu0 %1418
      %1420 = vrot.lane.b32.xlu0 %v364, 112
      %v1421 = vpop.permute.xlu0 %1420
      %1422 = vrot.lane.b32.xlu0 %v365, 112
      %v1423 = vpop.permute.xlu0 %1422
      %1424 = vrot.lane.b32.xlu0 %v366, 112
      %v1425 = vpop.permute.xlu0 %1424
      %1426 = vrot.lane.b32.xlu0 %v367, 112
      %v1427 = vpop.permute.xlu0 %1426
      %1428 = vrot.lane.b32.xlu0 %v368, 112
      %v1429 = vpop.permute.xlu0 %1428
      %1430 = vrot.lane.b32.xlu0 %v369, 112
      %v1431 = vpop.permute.xlu0 %1430
      %1432 = vrot.lane.b32.xlu0 %v370, 112
      %v1433 = vpop.permute.xlu0 %1432
      %1434 = vrot.lane.b32.xlu0 %v371, 112
      %v1435 = vpop.permute.xlu0 %1434
      %1436 = vrot.lane.b32.xlu0 %v372, 112
      %v1437 = vpop.permute.xlu0 %1436
      %1438 = vrot.lane.b32.xlu0 %v373, 112
      %v1439 = vpop.permute.xlu0 %1438
      %1440 = vrot.lane.b32.xlu0 %v374, 112
      %v1441 = vpop.permute.xlu0 %1440
      %1442 = vrot.lane.b32.xlu0 %v375, 112
      %v1443 = vpop.permute.xlu0 %1442
      %1444 = vrot.lane.b32.xlu0 %v376, 112
      %v1445 = vpop.permute.xlu0 %1444
      %1446 = vrot.lane.b32.xlu0 %v377, 112
      %v1447 = vpop.permute.xlu0 %1446
      %1448 = vrot.lane.b32.xlu0 %v378, 112
      %v1449 = vpop.permute.xlu0 %1448
      %vm1480 = vcmask 1048448
      %1481 = vst.msk [vmem:[#allocation2] sm:$0xff] %vm1480, %v1391
      %1482 = vst.msk [vmem:[#allocation2 + $0x10] sm:$0xff] %vm1480, %v1393
      %1483 = vst.msk [vmem:[#allocation2 + $0x20] sm:$0xff] %vm1480, %v1395
      %1484 = vst.msk [vmem:[#allocation2 + $0x30] sm:$0xff] %vm1480, %v1397
      %1485 = vst.msk [vmem:[#allocation2 + $0x40] sm:$0xff] %vm1480, %v1399
      %1486 = vst.msk [vmem:[#allocation2 + $0x50] sm:$0xff] %vm1480, %v1401
      %1487 = vst.msk [vmem:[#allocation2 + $0x60] sm:$0xff] %vm1480, %v1403
      %1488 = vst.msk [vmem:[#allocation2 + $0x70] sm:$0xff] %vm1480, %v1405
      %1489 = vst.msk [vmem:[#allocation2 + $0x80] sm:$0xff] %vm1480, %v1407
      %1490 = vst.msk [vmem:[#allocation2 + $0x90] sm:$0xff] %vm1480, %v1409
      %1491 = vst.msk [vmem:[#allocation2 + $0xa0] sm:$0xff] %vm1480, %v1411
      %1492 = vst.msk [vmem:[#allocation2 + $0xb0] sm:$0xff] %vm1480, %v1413
      %1493 = vst.msk [vmem:[#allocation2 + $0xc0] sm:$0xff] %vm1480, %v1415
      %1494 = vst.msk [vmem:[#allocation2 + $0xd0] sm:$0xff] %vm1480, %v1417
      %1495 = vst.msk [vmem:[#allocation2 + $0xe0] sm:$0xff] %vm1480, %v1419
      %1496 = vst.msk [vmem:[#allocation2 + $0xf0] sm:$0xff] %vm1480, %v1421
      %1497 = vst.msk [vmem:[#allocation2 + $0x100] sm:$0xff] %vm1480, %v1423
      %1498 = vst.msk [vmem:[#allocation2 + $0x110] sm:$0xff] %vm1480, %v1425
      %1499 = vst.msk [vmem:[#allocation2 + $0x120] sm:$0xff] %vm1480, %v1427
      %1500 = vst.msk [vmem:[#allocation2 + $0x130] sm:$0xff] %vm1480, %v1429
      %1501 = vst.msk [vmem:[#allocation2 + $0x140] sm:$0xff] %vm1480, %v1431
      %1502 = vst.msk [vmem:[#allocation2 + $0x150] sm:$0xff] %vm1480, %v1433
      %1503 = vst.msk [vmem:[#allocation2 + $0x160] sm:$0xff] %vm1480, %v1435
      %1504 = vst.msk [vmem:[#allocation2 + $0x170] sm:$0xff] %vm1480, %v1437
      %1505 = vst.msk [vmem:[#allocation2 + $0x180] sm:$0xff] %vm1480, %v1439
      %1506 = vst.msk [vmem:[#allocation2 + $0x190] sm:$0xff] %vm1480, %v1441
      %1507 = vst.msk [vmem:[#allocation2 + $0x1a0] sm:$0xff] %vm1480, %v1443
      %1508 = vst.msk [vmem:[#allocation2 + $0x1b0] sm:$0xff] %vm1480, %v1445
      %1509 = vst.msk [vmem:[#allocation2 + $0x1c0] sm:$0xff] %vm1480, %v1447
      %1510 = vst.msk [vmem:[#allocation2 + $0x1d0] sm:$0xff] %vm1480, %v1449
      %1541 = vst.msk [vmem:[#allocation2 + $0x8] sm:$0xff] %vm380, %v709
      %vm1542 = vcmask 129024
      %1543 = vst.msk [vmem:[#allocation2 + $0x18] sm:$0x7f] %vm1542, %v708
      %1544 = vst.msk [vmem:[#allocation2 + $0x28] sm:$0xff] %vm380, %v712
      %1545 = vst.msk [vmem:[#allocation2 + $0x38] sm:$0x7f] %vm1542, %v711
      %1546 = vst.msk [vmem:[#allocation2 + $0x48] sm:$0xff] %vm380, %v715
      %1547 = vst.msk [vmem:[#allocation2 + $0x58] sm:$0x7f] %vm1542, %v714
      %1548 = vst.msk [vmem:[#allocation2 + $0x68] sm:$0xff] %vm380, %v718
      %1549 = vst.msk [vmem:[#allocation2 + $0x78] sm:$0x7f] %vm1542, %v717
      %1550 = vst.msk [vmem:[#allocation2 + $0x88] sm:$0xff] %vm380, %v721
      %1551 = vst.msk [vmem:[#allocation2 + $0x98] sm:$0x7f] %vm1542, %v720
      %1552 = vst.msk [vmem:[#allocation2 + $0xa8] sm:$0xff] %vm380, %v724
      %1553 = vst.msk [vmem:[#allocation2 + $0xb8] sm:$0x7f] %vm1542, %v723
      %1554 = vst.msk [vmem:[#allocation2 + $0xc8] sm:$0xff] %vm380, %v727
      %1555 = vst.msk [vmem:[#allocation2 + $0xd8] sm:$0x7f] %vm1542, %v726
      %1556 = vst.msk [vmem:[#allocation2 + $0xe8] sm:$0xff] %vm380, %v730
      %1557 = vst.msk [vmem:[#allocation2 + $0xf8] sm:$0x7f] %vm1542, %v729
      %1558 = vst.msk [vmem:[#allocation2 + $0x108] sm:$0xff] %vm380, %v733
      %1559 = vst.msk [vmem:[#allocation2 + $0x118] sm:$0x7f] %vm1542, %v732
      %1560 = vst.msk [vmem:[#allocation2 + $0x128] sm:$0xff] %vm380, %v736
      %1561 = vst.msk [vmem:[#allocation2 + $0x138] sm:$0x7f] %vm1542, %v735
      %1562 = vst.msk [vmem:[#allocation2 + $0x148] sm:$0xff] %vm380, %v739
      %1563 = vst.msk [vmem:[#allocation2 + $0x158] sm:$0x7f] %vm1542, %v738
      %1564 = vst.msk [vmem:[#allocation2 + $0x168] sm:$0xff] %vm380, %v742
      %1565 = vst.msk [vmem:[#allocation2 + $0x178] sm:$0x7f] %vm1542, %v741
      %1566 = vst.msk [vmem:[#allocation2 + $0x188] sm:$0xff] %vm380, %v745
      %1567 = vst.msk [vmem:[#allocation2 + $0x198] sm:$0x7f] %vm1542, %v744
      %1568 = vst.msk [vmem:[#allocation2 + $0x1a8] sm:$0xff] %vm380, %v748
      %1569 = vst.msk [vmem:[#allocation2 + $0x1b8] sm:$0x7f] %vm1542, %v747
      %1570 = vst.msk [vmem:[#allocation2 + $0x1c8] sm:$0xff] %vm380, %v1137
      %1571 = vst.msk [vmem:[#allocation2 + $0x1d8] sm:$0x7f] %vm1542, %v1136
      %v1572 = vld [vmem:[#allocation2] sm:$0xff]
      %v1573 = vld [vmem:[#allocation2 + $0x8] sm:$0xff]
      %v1574 = vld [vmem:[#allocation2 + $0x10] sm:$0xff]
      %v1575 = vld [vmem:[#allocation2 + $0x18] sm:$0xff]
      %v1576 = vld [vmem:[#allocation2 + $0x20] sm:$0xff]
      %v1577 = vld [vmem:[#allocation2 + $0x28] sm:$0xff]
      %v1578 = vld [vmem:[#allocation2 + $0x30] sm:$0xff]
      %v1579 = vld [vmem:[#allocation2 + $0x38] sm:$0xff]
      %v1580 = vld [vmem:[#allocation2 + $0x40] sm:$0xff]
      %v1581 = vld [vmem:[#allocation2 + $0x48] sm:$0xff]
      %v1582 = vld [vmem:[#allocation2 + $0x50] sm:$0xff]
      %v1583 = vld [vmem:[#allocation2 + $0x58] sm:$0xff]
      %v1584 = vld [vmem:[#allocation2 + $0x60] sm:$0xff]
      %v1585 = vld [vmem:[#allocation2 + $0x68] sm:$0xff]
      %v1586 = vld [vmem:[#allocation2 + $0x70] sm:$0xff]
      %v1587 = vld [vmem:[#allocation2 + $0x78] sm:$0xff]
      %v1588 = vld [vmem:[#allocation2 + $0x80] sm:$0xff]
      %v1589 = vld [vmem:[#allocation2 + $0x88] sm:$0xff]
      %v1590 = vld [vmem:[#allocation2 + $0x90] sm:$0xff]
      %v1591 = vld [vmem:[#allocation2 + $0x98] sm:$0xff]
      %v1592 = vld [vmem:[#allocation2 + $0xa0] sm:$0xff]
      %v1593 = vld [vmem:[#allocation2 + $0xa8] sm:$0xff]
      %v1594 = vld [vmem:[#allocation2 + $0xb0] sm:$0xff]
      %v1595 = vld [vmem:[#allocation2 + $0xb8] sm:$0xff]
      %v1596 = vld [vmem:[#allocation2 + $0xc0] sm:$0xff]
      %v1597 = vld [vmem:[#allocation2 + $0xc8] sm:$0xff]
      %v1598 = vld [vmem:[#allocation2 + $0xd0] sm:$0xff]
      %v1599 = vld [vmem:[#allocation2 + $0xd8] sm:$0xff]
      %v1600 = vld [vmem:[#allocation2 + $0xe0] sm:$0xff]
      %v1601 = vld [vmem:[#allocation2 + $0xe8] sm:$0xff]
      %v1602 = vld [vmem:[#allocation2 + $0xf0] sm:$0xff]
      %v1603 = vld [vmem:[#allocation2 + $0xf8] sm:$0xff]
      %v1604 = vld [vmem:[#allocation2 + $0x100] sm:$0xff]
      %v1605 = vld [vmem:[#allocation2 + $0x108] sm:$0xff]
      %v1606 = vld [vmem:[#allocation2 + $0x110] sm:$0xff]
      %v1607 = vld [vmem:[#allocation2 + $0x118] sm:$0xff]
      %v1608 = vld [vmem:[#allocation2 + $0x120] sm:$0xff]
      %v1609 = vld [vmem:[#allocation2 + $0x128] sm:$0xff]
      %v1610 = vld [vmem:[#allocation2 + $0x130] sm:$0xff]
      %v1611 = vld [vmem:[#allocation2 + $0x138] sm:$0xff]
      %v1612 = vld [vmem:[#allocation2 + $0x140] sm:$0xff]
      %v1613 = vld [vmem:[#allocation2 + $0x148] sm:$0xff]
      %v1614 = vld [vmem:[#allocation2 + $0x150] sm:$0xff]
      %v1615 = vld [vmem:[#allocation2 + $0x158] sm:$0xff]
      %v1616 = vld [vmem:[#allocation2 + $0x160] sm:$0xff]
      %v1617 = vld [vmem:[#allocation2 + $0x168] sm:$0xff]
      %v1618 = vld [vmem:[#allocation2 + $0x170] sm:$0xff]
      %v1619 = vld [vmem:[#allocation2 + $0x178] sm:$0xff]
      %v1620 = vld [vmem:[#allocation2 + $0x180] sm:$0xff]
      %v1621 = vld [vmem:[#allocation2 + $0x188] sm:$0xff]
      %v1622 = vld [vmem:[#allocation2 + $0x190] sm:$0xff]
      %v1623 = vld [vmem:[#allocation2 + $0x198] sm:$0xff]
      %v1624 = vld [vmem:[#allocation2 + $0x1a0] sm:$0xff]
      %v1625 = vld [vmem:[#allocation2 + $0x1a8] sm:$0xff]
      %v1626 = vld [vmem:[#allocation2 + $0x1b0] sm:$0xff]
      %v1627 = vld [vmem:[#allocation2 + $0x1b8] sm:$0xff]
      %v1628 = vld [vmem:[#allocation2 + $0x1c0] sm:$0xff]
      %v1629 = vld [vmem:[#allocation2 + $0x1c8] sm:$0xff]
      %v1630 = vld [vmem:[#allocation2 + $0x1d0] sm:$0xff]
      %v1631 = vld [vmem:[#allocation2 + $0x1d8] sm:$0xff]
      %v1632 = vld [vmem:[#allocation2 + $0x1e0] sm:$0xff]
      %v1633 = vld [vmem:[#allocation2 + $0x1e8] sm:$0xff]
      %v1634 = vld [vmem:[#allocation2 + $0x1f0] sm:$0xff]
      %v1635 = vld [vmem:[#allocation2 + $0x1f8] sm:$0xff]
      %v1636 = vpack.c.bf16 %v1574, %v1572
      %v1637 = vpack.c.bf16 %v1575, %v1573
      %v1638 = vpack.c.bf16 %v1578, %v1576
      %v1639 = vpack.c.bf16 %v1579, %v1577
      %v1640 = vpack.c.bf16 %v1582, %v1580
      %v1641 = vpack.c.bf16 %v1583, %v1581
      %v1642 = vpack.c.bf16 %v1586, %v1584
      %v1643 = vpack.c.bf16 %v1587, %v1585
      %v1644 = vpack.c.bf16 %v1590, %v1588
      %v1645 = vpack.c.bf16 %v1591, %v1589
      %v1646 = vpack.c.bf16 %v1594, %v1592
      %v1647 = vpack.c.bf16 %v1595, %v1593
      %v1648 = vpack.c.bf16 %v1598, %v1596
      %v1649 = vpack.c.bf16 %v1599, %v1597
      %v1650 = vpack.c.bf16 %v1602, %v1600
      %v1651 = vpack.c.bf16 %v1603, %v1601
      %v1652 = vpack.c.bf16 %v1606, %v1604
      %v1653 = vpack.c.bf16 %v1607, %v1605
      %v1654 = vpack.c.bf16 %v1610, %v1608
      %v1655 = vpack.c.bf16 %v1611, %v1609
      %v1656 = vpack.c.bf16 %v1614, %v1612
      %v1657 = vpack.c.bf16 %v1615, %v1613
      %v1658 = vpack.c.bf16 %v1618, %v1616
      %v1659 = vpack.c.bf16 %v1619, %v1617
      %v1660 = vpack.c.bf16 %v1622, %v1620
      %v1661 = vpack.c.bf16 %v1623, %v1621
      %v1662 = vpack.c.bf16 %v1626, %v1624
      %v1663 = vpack.c.bf16 %v1627, %v1625
      %v1664 = vpack.c.bf16 %v1630, %v1628
      %v1665 = vpack.c.bf16 %v1631, %v1629
      %v1666 = vpack.c.bf16 %v1634, %v1632
      %v1667 = vpack.c.bf16 %v1635, %v1633
      %v1668 = vld [vmem:[%s1] sm:$0xf]
      %v1669 = vld [vmem:[%s1 + $0x4] sm:$0xf]
      %v1670 = vld [vmem:[%s1 + $0x8] sm:$0xf]
      %v1671 = vld [vmem:[%s1 + $0xc] sm:$0xf]
      %v1672 = vld [vmem:[%s1 + $0x10] sm:$0xf]
      %v1673 = vld [vmem:[%s1 + $0x14] sm:$0xf]
      %v1674 = vld [vmem:[%s1 + $0x18] sm:$0xf]
      %v1675 = vld [vmem:[%s1 + $0x1c] sm:$0xf]
      %v1676 = vld [vmem:[%s1 + $0x20] sm:$0xf]
      %v1677 = vld [vmem:[%s1 + $0x24] sm:$0xf]
      %v1678 = vld [vmem:[%s1 + $0x28] sm:$0xf]
      %v1679 = vld [vmem:[%s1 + $0x2c] sm:$0xf]
      %v1680 = vld [vmem:[%s1 + $0x30] sm:$0xf]
      %v1681 = vld [vmem:[%s1 + $0x34] sm:$0xf]
      %v1682 = vld [vmem:[%s1 + $0x38] sm:$0xf]
      %v1683 = vld [vmem:[%s1 + $0x3c] sm:$0xf]
      %v1684 = vld [vmem:[%s1 + $0x40] sm:$0xf]
      %v1685 = vld [vmem:[%s1 + $0x44] sm:$0xf]
      %v1704 = vunpack.c.l.b16 %v1668
      %v1705 = vunpack.c.l.b16 %v1669
      %v1706 = vunpack.c.l.b16 %v1670
      %v1707 = vunpack.c.l.b16 %v1671
      %v1708 = vunpack.c.l.b16 %v1672
      %v1709 = vunpack.c.l.b16 %v1673
      %v1710 = vunpack.c.l.b16 %v1674
      %v1711 = vunpack.c.l.b16 %v1675
      %v1712 = vunpack.c.l.b16 %v1676
      %v1713 = vunpack.c.l.b16 %v1677
      %v1714 = vunpack.c.l.b16 %v1678
      %v1715 = vunpack.c.l.b16 %v1679
      %v1716 = vunpack.c.l.b16 %v1680
      %v1717 = vunpack.c.l.b16 %v1681
      %v1718 = vunpack.c.l.b16 %v1682
      %v1719 = vunpack.c.l.b16 %v1683
      %v1720 = vunpack.c.l.b16 %v1684
      %v1721 = vunpack.c.l.b16 %v1685
      %v1722 = vpack.c.b16 %v1705, %v1704
      %v1723 = vpack.c.b16 %v1707, %v1706
      %v1724 = vpack.c.b16 %v1709, %v1708
      %v1725 = vpack.c.b16 %v1711, %v1710
      %v1726 = vpack.c.b16 %v1713, %v1712
      %v1727 = vpack.c.b16 %v1715, %v1714
      %v1728 = vpack.c.b16 %v1717, %v1716
      %v1729 = vpack.c.b16 %v1719, %v1718
      %v1730 = vpack.c.b16 %v1721, %v1720
      %v1741 = vsel %vm380, %v1637, 0
      %v1744 = vsel %vm380, %v1639, 0
      %v1747 = vsel %vm380, %v1641, 0
      %v1750 = vsel %vm380, %v1643, 0
      %v1753 = vsel %vm380, %v1645, 0
      %v1756 = vsel %vm380, %v1647, 0
      %v1759 = vsel %vm380, %v1649, 0
      %v1762 = vsel %vm380, %v1651, 0
      %v1765 = vsel %vm380, %v1653, 0
      %v1768 = vsel %vm380, %v1655, 0
      %v1771 = vsel %vm380, %v1657, 0
      %v1774 = vsel %vm380, %v1659, 0
      %v1777 = vsel %vm380, %v1661, 0
      %v1780 = vsel %vm380, %v1663, 0
      %v1783 = vsel %vm380, %v1665, 0
      %v1786 = vsel %vm380, %v1667, 0
      %1788 = vmatprep.subr.bf16.mxu0 0
      %1789 = vmatpush1.bf16.msra.mxu0 %v1722
      %1790 = vmatprep.subr.bf16.mxu0 0
      %1791 = vmatpush1.bf16.msra.mxu0 %v1723
      %1792 = vmatprep.subr.bf16.mxu0 0
      %1793 = vmatpush1.bf16.msra.mxu0 %v1724
      %1794 = vmatprep.subr.bf16.mxu0 0
      %1795 = vmatpush1.bf16.msra.mxu0 %v1725
      %1796 = vmatprep.subr.bf16.mxu0 0
      %1797 = vmatpush1.bf16.msra.mxu0 %v1726
      %1798 = vmatprep.subr.bf16.mxu0 0
      %1799 = vmatpush1.bf16.msra.mxu0 %v1727
      %1800 = vmatprep.subr.bf16.mxu0 0
      %1801 = vmatpush1.bf16.msra.mxu0 %v1728
      %1802 = vmatprep.subr.bf16.mxu0 0
      %1803 = vmatpush1.bf16.msra.mxu0 %v1729
      %1804 = vmatprep.subr.bf16.mxu0 0
      %1805 = vmatpush1.bf16.msra.mxu0 %v1730
      %1806 = vmatprep.subr.bf16.mxu0 0
      %1807 = vmatpush1.bf16.msra.mxu0 0
      %1808 = vmatprep.subr.bf16.mxu0 0
      %1809 = vmatpush1.bf16.msra.mxu0 0
      %1810 = vmatprep.subr.bf16.mxu0 0
      %1811 = vmatpush1.bf16.msra.mxu0 0
      %1812 = vmatprep.subr.bf16.mxu0 0
      %1813 = vmatpush1.bf16.msra.mxu0 0
      %1814 = vmatprep.subr.bf16.mxu0 0
      %1815 = vmatpush1.bf16.msra.mxu0 0
      %1816 = vmatprep.subr.bf16.mxu0 0
      %1817 = vmatpush1.bf16.msra.mxu0 0
      %1818 = vmatprep.subr.bf16.mxu0 0
      %1819 = vmatpush1.bf16.msra.mxu0 0
      %1820 = vmatprep.mubr.bf16.mxu0 %v1741
      %1821 = vmatmul.mubr.bf16.gmra.mrb[0].mxu0 %v1636
      %v1822 = vpop.f32.mrb[0].mxu0
      %v1823 = vadd.f32 0.0, %v1822
      %v1824 = vpop.f32.mrb[0].mxu0
      %v1825 = vpop.f32.mrb[0].mxu0
      %v1826 = vadd.f32 0.0, %v1825
      %v1827 = vpop.f32.mrb[0].mxu0
      %1828 = vmatprep.mubr.bf16.mxu0 %v1744
      %1829 = vmatmul.mubr.bf16.gmra.mrb[0].mxu0 %v1638
      %v1830 = vpop.f32.mrb[0].mxu0
      %v1831 = vadd.f32 0.0, %v1830
      %v1832 = vpop.f32.mrb[0].mxu0
      %v1833 = vpop.f32.mrb[0].mxu0
      %v1834 = vadd.f32 0.0, %v1833
      %v1835 = vpop.f32.mrb[0].mxu0
      %1836 = vmatprep.mubr.bf16.mxu0 %v1747
      %1837 = vmatmul.mubr.bf16.gmra.mrb[0].mxu0 %v1640
      %v1838 = vpop.f32.mrb[0].mxu0
      %v1839 = vadd.f32 0.0, %v1838
      %v1840 = vpop.f32.mrb[0].mxu0
      %v1841 = vpop.f32.mrb[0].mxu0
      %v1842 = vadd.f32 0.0, %v1841
      %v1843 = vpop.f32.mrb[0].mxu0
      %1844 = vmatprep.mubr.bf16.mxu0 %v1750
      %1845 = vmatmul.mubr.bf16.gmra.mrb[0].mxu0 %v1642
      %v1846 = vpop.f32.mrb[0].mxu0
      %v1847 = vadd.f32 0.0, %v1846
      %v1848 = vpop.f32.mrb[0].mxu0
      %v1849 = vpop.f32.mrb[0].mxu0
      %v1850 = vadd.f32 0.0, %v1849
      %v1851 = vpop.f32.mrb[0].mxu0
      %1852 = vmatprep.mubr.bf16.mxu0 %v1753
      %1853 = vmatmul.mubr.bf16.gmra.mrb[0].mxu0 %v1644
      %v1854 = vpop.f32.mrb[0].mxu0
      %v1855 = vadd.f32 0.0, %v1854
      %v1856 = vpop.f32.mrb[0].mxu0
      %v1857 = vpop.f32.mrb[0].mxu0
      %v1858 = vadd.f32 0.0, %v1857
      %v1859 = vpop.f32.mrb[0].mxu0
      %1860 = vmatprep.mubr.bf16.mxu0 %v1756
      %1861 = vmatmul.mubr.bf16.gmra.mrb[0].mxu0 %v1646
      %v1862 = vpop.f32.mrb[0].mxu0
      %v1863 = vadd.f32 0.0, %v1862
      %v1864 = vpop.f32.mrb[0].mxu0
      %v1865 = vpop.f32.mrb[0].mxu0
      %v1866 = vadd.f32 0.0, %v1865
      %v1867 = vpop.f32.mrb[0].mxu0
      %1868 = vmatprep.mubr.bf16.mxu0 %v1759
      %1869 = vmatmul.mubr.bf16.gmra.mrb[0].mxu0 %v1648
      %v1870 = vpop.f32.mrb[0].mxu0
      %v1871 = vadd.f32 0.0, %v1870
      %v1872 = vpop.f32.mrb[0].mxu0
      %v1873 = vpop.f32.mrb[0].mxu0
      %v1874 = vadd.f32 0.0, %v1873
      %v1875 = vpop.f32.mrb[0].mxu0
      %1876 = vmatprep.mubr.bf16.mxu0 %v1762
      %1877 = vmatmul.mubr.bf16.gmra.mrb[0].mxu0 %v1650
      %v1878 = vpop.f32.mrb[0].mxu0
      %v1879 = vadd.f32 0.0, %v1878
      %v1880 = vpop.f32.mrb[0].mxu0
      %v1881 = vpop.f32.mrb[0].mxu0
      %v1882 = vadd.f32 0.0, %v1881
      %v1883 = vpop.f32.mrb[0].mxu0
      %1884 = vmatprep.mubr.bf16.mxu0 %v1765
      %1885 = vmatmul.mubr.bf16.gmra.mrb[0].mxu0 %v1652
      %v1886 = vpop.f32.mrb[0].mxu0
      %v1887 = vadd.f32 0.0, %v1886
      %v1888 = vpop.f32.mrb[0].mxu0
      %v1889 = vpop.f32.mrb[0].mxu0
      %v1890 = vadd.f32 0.0, %v1889
      %v1891 = vpop.f32.mrb[0].mxu0
      %1892 = vmatprep.mubr.bf16.mxu0 %v1768
      %1893 = vmatmul.mubr.bf16.gmra.mrb[0].mxu0 %v1654
      %v1894 = vpop.f32.mrb[0].mxu0
      %v1895 = vadd.f32 0.0, %v1894
      %v1896 = vpop.f32.mrb[0].mxu0
      %v1897 = vpop.f32.mrb[0].mxu0
      %v1898 = vadd.f32 0.0, %v1897
      %v1899 = vpop.f32.mrb[0].mxu0
      %1900 = vmatprep.mubr.bf16.mxu0 %v1771
      %1901 = vmatmul.mubr.bf16.gmra.mrb[0].mxu0 %v1656
      %v1902 = vpop.f32.mrb[0].mxu0
      %v1903 = vadd.f32 0.0, %v1902
      %v1904 = vpop.f32.mrb[0].mxu0
      %v1905 = vpop.f32.mrb[0].mxu0
      %v1906 = vadd.f32 0.0, %v1905
      %v1907 = vpop.f32.mrb[0].mxu0
      %1908 = vmatprep.mubr.bf16.mxu0 %v1774
      %1909 = vmatmul.mubr.bf16.gmra.mrb[0].mxu0 %v1658
      %v1910 = vpop.f32.mrb[0].mxu0
      %v1911 = vadd.f32 0.0, %v1910
      %v1912 = vpop.f32.mrb[0].mxu0
      %v1913 = vpop.f32.mrb[0].mxu0
      %v1914 = vadd.f32 0.0, %v1913
      %v1915 = vpop.f32.mrb[0].mxu0
      %1916 = vmatprep.mubr.bf16.mxu0 %v1777
      %1917 = vmatmul.mubr.bf16.gmra.mrb[0].mxu0 %v1660
      %v1918 = vpop.f32.mrb[0].mxu0
      %v1919 = vadd.f32 0.0, %v1918
      %v1920 = vpop.f32.mrb[0].mxu0
      %v1921 = vpop.f32.mrb[0].mxu0
      %v1922 = vadd.f32 0.0, %v1921
      %v1923 = vpop.f32.mrb[0].mxu0
      %1924 = vmatprep.mubr.bf16.mxu0 %v1780
      %1925 = vmatmul.mubr.bf16.gmra.mrb[0].mxu0 %v1662
      %v1926 = vpop.f32.mrb[0].mxu0
      %v1927 = vadd.f32 0.0, %v1926
      %v1928 = vpop.f32.mrb[0].mxu0
      %v1929 = vpop.f32.mrb[0].mxu0
      %v1930 = vadd.f32 0.0, %v1929
      %v1931 = vpop.f32.mrb[0].mxu0
      %1932 = vmatprep.mubr.bf16.mxu0 %v1783
      %1933 = vmatmul.mubr.bf16.gmra.mrb[0].mxu0 %v1664
      %v1934 = vpop.f32.mrb[0].mxu0
      %v1935 = vadd.f32 0.0, %v1934
      %v1936 = vpop.f32.mrb[0].mxu0
      %v1937 = vpop.f32.mrb[0].mxu0
      %v1938 = vadd.f32 0.0, %v1937
      %v1939 = vpop.f32.mrb[0].mxu0
      %1940 = vmatprep.mubr.bf16.mxu0 %v1786
      %1941 = vmatmul.mubr.bf16.gmra.mrb[0].mxu0 %v1666
      %v1942 = vpop.f32.mrb[0].mxu0
      %v1943 = vadd.f32 0.0, %v1942
      %v1944 = vpop.f32.mrb[0].mxu0
      %v1945 = vpop.f32.mrb[0].mxu0
      %v1946 = vadd.f32 0.0, %v1945
      %v1947 = vpop.f32.mrb[0].mxu0
      %1948 = vdwg.mxu0
      %v1949 = vsel %vm380, %v1823, 0.0
      %v1950 = vsel %vm380, %v1826, 0.0
      %v1951 = vadd.f32 %v1949, %v1950
      %v1952 = vsel %vm380, %v1831, 0.0
      %v1953 = vadd.f32 %v1951, %v1952
      %v1954 = vsel %vm380, %v1834, 0.0
      %v1955 = vadd.f32 %v1953, %v1954
      %v1956 = vsel %vm380, %v1839, 0.0
      %v1957 = vadd.f32 %v1955, %v1956
      %v1958 = vsel %vm380, %v1842, 0.0
      %v1959 = vadd.f32 %v1957, %v1958
      %v1960 = vsel %vm380, %v1847, 0.0
      %v1961 = vadd.f32 %v1959, %v1960
      %v1962 = vsel %vm380, %v1850, 0.0
      %v1963 = vadd.f32 %v1961, %v1962
      %v1964 = vsel %vm380, %v1855, 0.0
      %v1965 = vadd.f32 %v1963, %v1964
      %v1966 = vsel %vm380, %v1858, 0.0
      %v1967 = vadd.f32 %v1965, %v1966
      %v1968 = vsel %vm380, %v1863, 0.0
      %v1969 = vadd.f32 %v1967, %v1968
      %v1970 = vsel %vm380, %v1866, 0.0
      %v1971 = vadd.f32 %v1969, %v1970
      %v1972 = vsel %vm380, %v1871, 0.0
      %v1973 = vadd.f32 %v1971, %v1972
      %v1974 = vsel %vm380, %v1874, 0.0
      %v1975 = vadd.f32 %v1973, %v1974
      %v1976 = vsel %vm380, %v1879, 0.0
      %v1977 = vadd.f32 %v1975, %v1976
      %v1978 = vsel %vm380, %v1882, 0.0
      %v1979 = vadd.f32 %v1977, %v1978
      %v1980 = vsel %vm380, %v1887, 0.0
      %v1981 = vadd.f32 %v1979, %v1980
      %v1982 = vsel %vm380, %v1890, 0.0
      %v1983 = vadd.f32 %v1981, %v1982
      %v1984 = vsel %vm380, %v1895, 0.0
      %v1985 = vadd.f32 %v1983, %v1984
      %v1986 = vsel %vm380, %v1898, 0.0
      %v1987 = vadd.f32 %v1985, %v1986
      %v1988 = vsel %vm380, %v1903, 0.0
      %v1989 = vadd.f32 %v1987, %v1988
      %v1990 = vsel %vm380, %v1906, 0.0
      %v1991 = vadd.f32 %v1989, %v1990
      %v1992 = vsel %vm380, %v1911, 0.0
      %v1993 = vadd.f32 %v1991, %v1992
      %v1994 = vsel %vm380, %v1914, 0.0
      %v1995 = vadd.f32 %v1993, %v1994
      %v1996 = vsel %vm380, %v1919, 0.0
      %v1997 = vadd.f32 %v1995, %v1996
      %v1998 = vsel %vm380, %v1922, 0.0
      %v1999 = vadd.f32 %v1997, %v1998
      %v2000 = vsel %vm380, %v1927, 0.0
      %v2001 = vadd.f32 %v1999, %v2000
      %v2002 = vsel %vm380, %v1930, 0.0
      %v2003 = vadd.f32 %v2001, %v2002
      %v2004 = vsel %vm380, %v1935, 0.0
      %v2005 = vadd.f32 %v2003, %v2004
      %v2006 = vsel %vm380, %v1938, 0.0
      %v2007 = vadd.f32 %v2005, %v2006
      %v2008 = vsel %vm380, %v1943, 0.0
      %v2009 = vadd.f32 %v2007, %v2008
      %v2010 = vsel %vm380, %v1946, 0.0
      %v2011 = vadd.f32 %v2009, %v2010
      %v2012 = vrot.slane %v2011, 4
      %v2013 = vadd.f32 %v2011, %v2012
      %v2014 = vrot.slane %v2013, 2
      %v2015 = vadd.f32 %v2013, %v2014
      %v2016 = vrot.slane %v2015, 1
      %v2017 = vadd.f32 %v2015, %v2016
      %v2018 = vmul.f32 %v1823, %v1823
      %v2019 = vmul.f32 %v1826, %v1826
      %v2020 = vmul.f32 %v1831, %v1831
      %v2021 = vmul.f32 %v1834, %v1834
      %v2022 = vmul.f32 %v1839, %v1839
      %v2023 = vmul.f32 %v1842, %v1842
      %v2024 = vmul.f32 %v1847, %v1847
      %v2025 = vmul.f32 %v1850, %v1850
      %v2026 = vmul.f32 %v1855, %v1855
      %v2027 = vmul.f32 %v1858, %v1858
      %v2028 = vmul.f32 %v1863, %v1863
      %v2029 = vmul.f32 %v1866, %v1866
      %v2030 = vmul.f32 %v1871, %v1871
      %v2031 = vmul.f32 %v1874, %v1874
      %v2032 = vmul.f32 %v1879, %v1879
      %v2033 = vmul.f32 %v1882, %v1882
      %v2034 = vmul.f32 %v1887, %v1887
      %v2035 = vmul.f32 %v1890, %v1890
      %v2036 = vmul.f32 %v1895, %v1895
      %v2037 = vmul.f32 %v1898, %v1898
      %v2038 = vmul.f32 %v1903, %v1903
      %v2039 = vmul.f32 %v1906, %v1906
      %v2040 = vmul.f32 %v1911, %v1911
      %v2041 = vmul.f32 %v1914, %v1914
      %v2042 = vmul.f32 %v1919, %v1919
      %v2043 = vmul.f32 %v1922, %v1922
      %v2044 = vmul.f32 %v1927, %v1927
      %v2045 = vmul.f32 %v1930, %v1930
      %v2046 = vmul.f32 %v1935, %v1935
      %v2047 = vmul.f32 %v1938, %v1938
      %v2048 = vmul.f32 %v1943, %v1943
      %v2049 = vmul.f32 %v1946, %v1946
      %v2050 = vsel %vm380, %v2018, 0.0
      %v2051 = vsel %vm380, %v2019, 0.0
      %v2052 = vadd.f32 %v2050, %v2051
      %v2053 = vsel %vm380, %v2020, 0.0
      %v2054 = vadd.f32 %v2052, %v2053
      %v2055 = vsel %vm380, %v2021, 0.0
      %v2056 = vadd.f32 %v2054, %v2055
      %v2057 = vsel %vm380, %v2022, 0.0
      %v2058 = vadd.f32 %v2056, %v2057
      %v2059 = vsel %vm380, %v2023, 0.0
      %v2060 = vadd.f32 %v2058, %v2059
      %v2061 = vsel %vm380, %v2024, 0.0
      %v2062 = vadd.f32 %v2060, %v2061
      %v2063 = vsel %vm380, %v2025, 0.0
      %v2064 = vadd.f32 %v2062, %v2063
      %v2065 = vsel %vm380, %v2026, 0.0
      %v2066 = vadd.f32 %v2064, %v2065
      %v2067 = vsel %vm380, %v2027, 0.0
      %v2068 = vadd.f32 %v2066, %v2067
      %v2069 = vsel %vm380, %v2028, 0.0
      %v2070 = vadd.f32 %v2068, %v2069
      %v2071 = vsel %vm380, %v2029, 0.0
      %v2072 = vadd.f32 %v2070, %v2071
      %v2073 = vsel %vm380, %v2030, 0.0
      %v2074 = vadd.f32 %v2072, %v2073
      %v2075 = vsel %vm380, %v2031, 0.0
      %v2076 = vadd.f32 %v2074, %v2075
      %v2077 = vsel %vm380, %v2032, 0.0
      %v2078 = vadd.f32 %v2076, %v2077
      %v2079 = vsel %vm380, %v2033, 0.0
      %v2080 = vadd.f32 %v2078, %v2079
      %v2081 = vsel %vm380, %v2034, 0.0
      %v2082 = vadd.f32 %v2080, %v2081
      %v2083 = vsel %vm380, %v2035, 0.0
      %v2084 = vadd.f32 %v2082, %v2083
      %v2085 = vsel %vm380, %v2036, 0.0
      %v2086 = vadd.f32 %v2084, %v2085
      %v2087 = vsel %vm380, %v2037, 0.0
      %v2088 = vadd.f32 %v2086, %v2087
      %v2089 = vsel %vm380, %v2038, 0.0
      %v2090 = vadd.f32 %v2088, %v2089
      %v2091 = vsel %vm380, %v2039, 0.0
      %v2092 = vadd.f32 %v2090, %v2091
      %v2093 = vsel %vm380, %v2040, 0.0
      %v2094 = vadd.f32 %v2092, %v2093
      %v2095 = vsel %vm380, %v2041, 0.0
      %v2096 = vadd.f32 %v2094, %v2095
      %v2097 = vsel %vm380, %v2042, 0.0
      %v2098 = vadd.f32 %v2096, %v2097
      %v2099 = vsel %vm380, %v2043, 0.0
      %v2100 = vadd.f32 %v2098, %v2099
      %v2101 = vsel %vm380, %v2044, 0.0
      %v2102 = vadd.f32 %v2100, %v2101
      %v2103 = vsel %vm380, %v2045, 0.0
      %v2104 = vadd.f32 %v2102, %v2103
      %v2105 = vsel %vm380, %v2046, 0.0
      %v2106 = vadd.f32 %v2104, %v2105
      %v2107 = vsel %vm380, %v2047, 0.0
      %v2108 = vadd.f32 %v2106, %v2107
      %v2109 = vsel %vm380, %v2048, 0.0
      %v2110 = vadd.f32 %v2108, %v2109
      %v2111 = vsel %vm380, %v2049, 0.0
      %v2112 = vadd.f32 %v2110, %v2111
      %v2113 = vrot.slane %v2112, 4
      %v2114 = vadd.f32 %v2112, %v2113
      %v2115 = vrot.slane %v2114, 2
      %v2116 = vadd.f32 %v2114, %v2115
      %v2117 = vrot.slane %v2116, 1
      %v2118 = vadd.f32 %v2116, %v2117
      %v2119 = vsel %vm474, %v2017, %v2118
      %vm2120 = vcmask 123904
      %2121 = vst.msk [vmem:[%s235] sm:$0x3] %vm2120, %v2119
      %2122 = vst.msk [vmem:[%s231] sm:$0xff] %vm380, %v1823
      %2123 = vst.msk [vmem:[%s231 + $0x8] sm:$0xff] %vm380, %v1826
      %2124 = vst.msk [vmem:[%s231 + $0x10] sm:$0xff] %vm380, %v1831
      %2125 = vst.msk [vmem:[%s231 + $0x18] sm:$0xff] %vm380, %v1834
      %2126 = vst.msk [vmem:[%s231 + $0x20] sm:$0xff] %vm380, %v1839
      %2127 = vst.msk [vmem:[%s231 + $0x28] sm:$0xff] %vm380, %v1842
      %2128 = vst.msk [vmem:[%s231 + $0x30] sm:$0xff] %vm380, %v1847
      %2129 = vst.msk [vmem:[%s231 + $0x38] sm:$0xff] %vm380, %v1850
      %2130 = vst.msk [vmem:[%s231 + $0x40] sm:$0xff] %vm380, %v1855
      %2131 = vst.msk [vmem:[%s231 + $0x48] sm:$0xff] %vm380, %v1858
      %2132 = vst.msk [vmem:[%s231 + $0x50] sm:$0xff] %vm380, %v1863
      %2133 = vst.msk [vmem:[%s231 + $0x58] sm:$0xff] %vm380, %v1866
      %2134 = vst.msk [vmem:[%s231 + $0x60] sm:$0xff] %vm380, %v1871
      %2135 = vst.msk [vmem:[%s231 + $0x68] sm:$0xff] %vm380, %v1874
      %2136 = vst.msk [vmem:[%s231 + $0x70] sm:$0xff] %vm380, %v1879
      %2137 = vst.msk [vmem:[%s231 + $0x78] sm:$0xff] %vm380, %v1882
      %2138 = vst.msk [vmem:[%s231 + $0x80] sm:$0xff] %vm380, %v1887
      %2139 = vst.msk [vmem:[%s231 + $0x88] sm:$0xff] %vm380, %v1890
      %2140 = vst.msk [vmem:[%s231 + $0x90] sm:$0xff] %vm380, %v1895
      %2141 = vst.msk [vmem:[%s231 + $0x98] sm:$0xff] %vm380, %v1898
      %2142 = vst.msk [vmem:[%s231 + $0xa0] sm:$0xff] %vm380, %v1903
      %2143 = vst.msk [vmem:[%s231 + $0xa8] sm:$0xff] %vm380, %v1906
      %2144 = vst.msk [vmem:[%s231 + $0xb0] sm:$0xff] %vm380, %v1911
      %2145 = vst.msk [vmem:[%s231 + $0xb8] sm:$0xff] %vm380, %v1914
      %2146 = vst.msk [vmem:[%s231 + $0xc0] sm:$0xff] %vm380, %v1919
      %2147 = vst.msk [vmem:[%s231 + $0xc8] sm:$0xff] %vm380, %v1922
      %2148 = vst.msk [vmem:[%s231 + $0xd0] sm:$0xff] %vm380, %v1927
      %2149 = vst.msk [vmem:[%s231 + $0xd8] sm:$0xff] %vm380, %v1930
      %2150 = vst.msk [vmem:[%s231 + $0xe0] sm:$0xff] %vm380, %v1935
      %2151 = vst.msk [vmem:[%s231 + $0xe8] sm:$0xff] %vm380, %v1938
      %2152 = vst.msk [vmem:[%s231 + $0xf0] sm:$0xff] %vm380, %v1943
      %2153 = vst.msk [vmem:[%s231 + $0xf8] sm:$0xff] %vm380, %v1946
      %p2154 = scmp.lt.s32.totalorder %s17, 1
      %s2155 = scalar_select %p2154, %s17, 1
      %s2156 = smul.addr %s2155, 32
      %s2157 = smul.addr %s2156, 8
      %s2158 = scalar_lea.vmem %s4, %s2157
      %p2159 = scmp.lt.s32.totalorder %s17, 1
      %s2160 = scalar_select %p2159, %s17, 1
      %s2161 = smul.addr %s2160, 2
      %s2162 = scalar_lea.vmem %s5, %s2161
      // Predicated region
      $region37: #{basic_block_forward.4} parent=35 // pred_check
        %p2163 = pneg %p124
      $region38: #{basic_block_forward.4} parent=35 // pred_check_branch
        %2165 = sbr.rel (%p2163) target = $region40
      $region39: #{basic_block_forward.4} parent=35 // pred_region
        _
      $region40: #{basic_block_forward.4} parent=35 // pred_fallthru
        _
      // Predicated region
      $region41: #{basic_block_forward.4} parent=35 // pred_check
        %p2166 = pneg %p150
      $region42: #{basic_block_forward.4} parent=35 // pred_check_branch
        %2168 = sbr.rel (%p2166) target = $region44
      $region43: #{basic_block_forward.4} parent=35 // pred_region
        _
      $region44: #{basic_block_forward.4} parent=35 // pred_fallthru
        _
    $region36: #{basic_block_forward.4} parent=5 // pred_fallthru
      _
    %p2169 = scmp.le.s32.totalorder 2, %s12
    // Predicated region
    $region45: #{basic_block_forward.4} parent=5 // pred_check
      %p2170 = pneg %p2169
    $region46: #{basic_block_forward.4} parent=5 // pred_check_branch
      %2172 = sbr.rel (%p2170) target = $region48
    $region47: #{basic_block_forward.4} parent=5 // pred_region
      %s2173 = ssub.s32 %s12, 2
      // Predicated region
      $region49: #{basic_block_forward.4} parent=47 // pred_check
        %p2174 = pneg %p130
      $region50: #{basic_block_forward.4} parent=47 // pred_check_branch
        %2176 = sbr.rel (%p2174) target = $region52
      $region51: #{basic_block_forward.4} parent=47 // pred_region
        %p2177 = scmp.lt.s32.totalorder %s18, 1
        %s2178 = scalar_select %p2177, %s18, 1
        %s2179 = smul.addr %s2178, 32
        %s2180 = smul.addr %s2179, 8
        %s2181 = scalar_lea.vmem %s4, %s2180
      $region52: #{basic_block_forward.4} parent=47 // pred_fallthru
        _
      // Predicated region
      $region53: #{basic_block_forward.4} parent=47 // pred_check
        %p2182 = pneg %p156
      $region54: #{basic_block_forward.4} parent=47 // pred_check_branch
        %2184 = sbr.rel (%p2182) target = $region56
      $region55: #{basic_block_forward.4} parent=47 // pred_region
        %p2185 = scmp.lt.s32.totalorder %s18, 1
        %s2186 = scalar_select %p2185, %s18, 1
        %s2187 = smul.addr %s2186, 2
        %s2188 = scalar_lea.vmem %s5, %s2187
      $region56: #{basic_block_forward.4} parent=47 // pred_fallthru
        _
    $region48: #{basic_block_forward.4} parent=5 // pred_fallthru
      _
  $region6: #{basic_block_forward.4} parent=0 // loop_footer
    %s16 = sadd.s32 1, %s12
  $region7: #{basic_block_forward.4} parent=0 // loop_footer_branch
    %11 = sbr.rel target = $region3
  $region8: #{basic_block_forward.4} parent=0 // loop_exit
    _

</llo_original>
